<compile_context>
chip_gen: v6e
topology: v6e:2x2x1
jax: 0.10.0
libtpu: 0.0.40
codegen_flags: <defaults>
</compile_context>

<pallas_src>
import numpy as np
import jax
import jax.numpy as jnp
from jax.experimental import pallas as pl
from jax.experimental.pallas import tpu as pltpu

HIDDEN = 32
N_HEADS = 2
HEAD_DIM = HIDDEN // N_HEADS
INTERMEDIATE = 64
N_LAYERS_TF1 = 2
N_LAYERS_TF2 = 2
VOCAB = 64
MAX_POS = 64
MAX_SENTENCES = 8          # static sentence capacity (>= max #SEP per sequence)
PAD_TOKEN_ID = 0
CLS_TOKEN_ID = 2
SEP_TOKEN_ID = 3
LN_EPS = 1e-12
NEG_INF = -1e9

assert HIDDEN % N_HEADS == 0
assert MAX_SENTENCES <= MAX_POS

# rows of the packed per-layer "small" param array (L, 10, INTERMEDIATE):
R_BQ, R_BK, R_BV, R_BO, R_B2, R_LN1G, R_LN1B, R_LN2G, R_LN2B, R_B1 = range(10)


# ----------------------------- fused Pallas kernel ------------------------------ #

def _hier_kernel(x0_ref, aux_ref, gsm_ref,
                 t1_wqkv_ref, t1_wo_ref, t1_w1_ref, t1_w2_ref, t1_sm_ref,
                 pw_ref,
                 t2_wqkv_ref, t2_wo_ref, t2_w1_ref, t2_w2_ref, t2_sm_ref,
                 out_ref):
    f32, bf16 = jnp.float32, jnp.bfloat16
    D = HIDDEN
    S = x0_ref.shape[1]
    Smax = MAX_SENTENCES

    def layer_norm(h, g, b):
        mu = jnp.mean(h, axis=-1, keepdims=True)
        hc = h - mu
        var = jnp.mean(hc * hc, axis=-1, keepdims=True)
        return hc * jax.lax.rsqrt(var + LN_EPS) * g + b

    # Per-head lane masks (built once).  The 1/sqrt(head_dim) softmax scale is folded into
    # the query-side mask, so no extra VALU multiply on the (H*S, S) score tensor.
    lane = jax.lax.broadcasted_iota(jnp.int32, (1, D), 1)
    head_masks = [((lane >= h * HEAD_DIM) & (lane < (h + 1) * HEAD_DIM)).astype(f32)
                  for h in range(N_HEADS)]
    scale = 1.0 / float(np.sqrt(HEAD_DIM))
    head_q_masks = [m * scale for m in head_masks]

    def encoder(h, bias, wqkv_ref, wo_ref, w1_ref, w2_ref, sm_ref):
        n_layers = wqkv_ref.shape[0]
        rows = h.shape[0]
        for l in range(n_layers):                       # static loop over stacked weights
            sm = sm_ref[l]                              # (10, I) packed biases / LN params
            # fused QKV projection (bf16 MXU operands, f32 accumulation)
            qkv = jnp.dot(h.astype(bf16), wqkv_ref[l], preferred_element_type=f32)  # (rows, 3D)
            q = qkv[:, 0 * D:1 * D] + sm[R_BQ:R_BQ + 1, :D]
            k = qkv[:, 1 * D:2 * D] + sm[R_BK:R_BK + 1, :D]
            v = qkv[:, 2 * D:3 * D] + sm[R_BV:R_BV + 1, :D]
            # head-batched attention: stack masked q per head along the sublane axis
            qs = jnp.concatenate([q * m for m in head_q_masks], axis=0)     # (H*rows, D)
            s = jax.lax.dot_general(qs.astype(bf16), k.astype(bf16),
                                    (((1,), (1,)), ((), ())),
                                    preferred_element_type=f32) + bias       # (H*rows, rows)
            s = s - jnp.max(s, axis=-1, keepdims=True)
            p = jnp.exp(s)
            p = p * pl.reciprocal(jnp.sum(p, axis=-1, keepdims=True), approx=True)
            pv = jnp.dot(p.astype(bf16), v.astype(bf16), preferred_element_type=f32)  # (H*rows, D)
            ctx = pv[0:rows] * head_masks[0]
            for hh in range(1, N_HEADS):
                ctx = ctx + pv[hh * rows:(hh + 1) * rows] * head_masks[hh]
            attn = (jnp.dot(ctx.astype(bf16), wo_ref[l], preferred_element_type=f32)
                    + sm[R_BO:R_BO + 1, :D])
            h1 = layer_norm(h + attn, sm[R_LN1G:R_LN1G + 1, :D], sm[R_LN1B:R_LN1B + 1, :D])
            ff = jax.nn.gelu(jnp.dot(h1.astype(bf16), w1_ref[l], preferred_element_type=f32)
                             + sm[R_B1:R_B1 + 1, :], approximate=True)
            ff = (jnp.dot(ff.astype(bf16), w2_ref[l], preferred_element_type=f32)
                  + sm[R_B2:R_B2 + 1, :D])
            h = layer_norm(h1 + ff, sm[R_LN2G:R_LN2G + 1, :D], sm[R_LN2B:R_LN2B + 1, :D])
        return h

    # ---- unpack per-batch masks and packed small params ----
    aux = aux_ref[0]                                     # (Smax+2, S)
    smask = aux[0:Smax, :]                               # (Smax, S) sentence membership
    tok_valid = aux[Smax:Smax + 1, :]                    # (1, S)
    sent_valid = aux[Smax + 1:Smax + 2, 0:Smax]          # (1, Smax)
    bias1 = (tok_valid - 1.0) * -NEG_INF * -1.0 if False else (tok_valid - 1.0) * (-NEG_INF) * 0 + (tok_valid - 1.0) * 1e9
    # (simpler, equivalent): 0 where valid, -1e9 where padded
    bias1 = (tok_valid - 1.0) * 1e9
    bias2 = (sent_valid - 1.0) * 1e9

    gsm = gsm_ref[...]                                   # (Smax+6, D)
    y_add = gsm[0:Smax, :]                               # tf2 position + type-0 embeddings
    e1_g = gsm[Smax:Smax + 1, :]
    e1_b = gsm[Smax + 1:Smax + 2, :]
    e2_g = gsm[Smax + 2:Smax + 3, :]
    e2_b = gsm[Smax + 3:Smax + 4, :]
    pool_b = gsm[Smax + 4:Smax + 5, :]
    pool_v = gsm[Smax + 5:Smax + 6, :]

    # ---- tf1 over this batch's S token rows ----
    h = layer_norm(x0_ref[0], e1_g, e1_b)
    h = encoder(h, bias1, t1_wqkv_ref, t1_wo_ref, t1_w1_ref, t1_w2_ref, t1_sm_ref)

    # ---- attention sentence-pooling (per-sentence softmax via membership matmul) ----
    rep = jnp.tanh(jnp.dot(h.astype(bf16), pw_ref[...], preferred_element_type=f32) + pool_b)
    sc = jnp.sum(rep * pool_v, axis=-1, keepdims=True)   # (S, 1)  VPU multiply + lane reduce
    e = jnp.exp(sc - jnp.max(sc))                        # global shift cancels per sentence
    numer = jnp.dot(smask, e * h, preferred_element_type=f32)   # (Smax, D)  exact f32 (tiny)
    denom = jnp.dot(smask, e, preferred_element_type=f32)       # (Smax, 1)
    sent = numer / jnp.where(denom > 0.0, denom, 1.0)           # empty slots stay exactly 0

    # ---- tf2 over Smax sentence rows ----
    y = layer_norm(sent + y_add, e2_g, e2_b)
    y = encoder(y, bias2, t2_wqkv_ref, t2_wo_ref, t2_w1_ref, t2_w2_ref, t2_sm_ref)

    # ---- CLS row (no selector matmul) ----
    out_ref[0] = y[0:1, :]


def fused_pallas_forward(x0, aux, gsm, tf1, pool, tf2):
    B, S, D = x0.shape
    Smax = MAX_SENTENCES

    def const_spec(a):
        n = a.ndim
        return pl.BlockSpec(a.shape, lambda b, _n=n: (0,) * _n)

    args = (x0, aux, gsm,
            tf1["wqkv"], tf1["wo"], tf1["w1"], tf1["w2"], tf1["small"],
            pool["w"],
            tf2["wqkv"], tf2["wo"], tf2["w1"], tf2["w2"], tf2["small"])

    in_specs = ([pl.BlockSpec((1, S, D), lambda b: (b, 0, 0)),
                 pl.BlockSpec((1, Smax + 2, S), lambda b: (b, 0, 0))]
                + [const_spec(a) for a in args[2:]])

    out = pl.pallas_call(
        _hier_kernel,
        out_shape=jax.ShapeDtypeStruct((B, 1, D), jnp.float32),
        grid=(B,),                                   # one batch per step; both TCs on v7x
        in_specs=in_specs,
        out_specs=pl.BlockSpec((1, 1, D), lambda b: (b, 0, 0)),
        compiler_params=pltpu.CompilerParams(dimension_semantics=("parallel",)),
    )(*args)
    return out[:, 0, :]


# ----------------------------- parameters ---------------------------------- #

def init_params(key):
    ks = iter(jax.random.split(key, 64))

    def nrm(shape, scale=0.02, dtype=jnp.float32):
        return (scale * jax.random.normal(next(ks), shape)).astype(dtype)

    def encoder(n_layers):
        D, I, L = HIDDEN, INTERMEDIATE, n_layers
        small = np.zeros((L, 10, I), np.float32)     # packed biases + LN params
        small[:, R_LN1G, :D] = 1.0
        small[:, R_LN2G, :D] = 1.0
        return dict(
            word_emb=nrm((VOCAB, D)),
            pos_emb=nrm((MAX_POS, D)),
            type_emb=nrm((2, D)),
            emb_ln=jnp.concatenate([jnp.ones((1, D), jnp.float32),
                                    jnp.zeros((1, D), jnp.float32)], axis=0),   # gamma, beta
            wqkv=nrm((L, D, 3 * D), dtype=jnp.bfloat16),   # fused q|k|v
            wo=nrm((L, D, D), dtype=jnp.bfloat16),
            w1=nrm((L, D, I), dtype=jnp.bfloat16),
            w2=nrm((L, I, D), dtype=jnp.bfloat16),
            small=jnp.asarray(small),
        )

    # attention-pooling params: nn.Linear(H, H) + xavier_uniform (gain=sqrt(2)) (H, 1)
    limit = float(np.sqrt(2.0) * np.sqrt(6.0 / (HIDDEN + 1)))
    pool = dict(w=nrm((HIDDEN, HIDDEN), dtype=jnp.bfloat16),
                b=jnp.zeros((1, HIDDEN), jnp.float32),
                v=jax.random.uniform(next(ks), (1, HIDDEN), jnp.float32, -limit, limit))
    return dict(tf1=encoder(N_LAYERS_TF1), tf2=encoder(N_LAYERS_TF2), pool=pool)


# ----------------------------- model glue ---------------------------------- #

def hierarchical_forward(input_ids, attention_mask, params):
    B, S = input_ids.shape
    D, Smax = HIDDEN, MAX_SENTENCES
    assert S >= Smax
    tf1, tf2, pool = params["tf1"], params["tf2"], params["pool"]

    # token embeddings (data-dependent gather stays in XLA; everything else is fused)
    x0 = (tf1["word_emb"][input_ids] + tf1["pos_emb"][:S][None]
          + tf1["type_emb"][0][None, None])                                  # (B, S, D)

    # sentence membership from [SEP] positions (vectorized version of the reference's
    # per-batch python loop; span = tokens strictly between SEPs, excluding CLS)
    is_sep = input_ids == SEP_TOKEN_ID
    sep_counts = jnp.sum(is_sep, axis=-1)                                    # (B,)
    seps_before = jnp.cumsum(is_sep.astype(jnp.int32), axis=-1) - is_sep.astype(jnp.int32)
    t_idx = jnp.arange(S)[None, :]
    s_idx = jnp.arange(Smax)
    valid_tok = (t_idx >= 1) & (~is_sep)
    sent_mask = ((seps_before[:, None, :] == s_idx[None, :, None])
                 & valid_tok[:, None, :]
                 & (s_idx[None, :, None] < sep_counts[:, None, None]))
    # batches with no SEP: single "sentence" = CLS token (pooling a 1-token span == CLS vec)
    no_sep = sep_counts == 0
    cls_mask = (s_idx[None, :, None] == 0) & (t_idx[:, None, :] == 0)
    smask = jnp.where(no_sep[:, None, None], cls_mask, sent_mask).astype(jnp.float32)  # (B,Smax,S)

    # small per-batch validity rows (masks are built additively in-kernel from these)
    tok_valid = attention_mask.astype(jnp.float32)                           # (B, S)
    sent_valid = (s_idx[None, :] < jnp.maximum(sep_counts, 1)[:, None]).astype(jnp.float32)
    sent_valid_p = jnp.pad(sent_valid, ((0, 0), (0, S - Smax)))              # (B, S)
    aux = jnp.concatenate([smask, tok_valid[:, None, :], sent_valid_p[:, None, :]], axis=1)

    # packed global small params: tf2 pos+type embeddings, emb-LNs, pooling b and v
    y_add = tf2["pos_emb"][:Smax] + tf2["type_emb"][0][None, :]              # (Smax, D)
    gsm = jnp.concatenate([y_add, tf1["emb_ln"], tf2["emb_ln"],
                           pool["b"], pool["v"]], axis=0)                    # (Smax+6, D)

    return fused_pallas_forward(x0, aux, gsm, tf1, pool, tf2)


# --------------------------------- main ------------------------------------ #

if __name__ == "__main__":
    key = jax.random.PRNGKey(0)
    pkey, dkey = jax.random.split(key)
    params = init_params(pkey)

    B, S = 2, 16
    ids = np.array(jax.random.randint(dkey, (B, S), 5, VOCAB, dtype=jnp.int32))
    ids[:, 0] = CLS_TOKEN_ID
    # batch 0: three sentences (SEP at 4, 7, 12), padded after
    ids[0, 4] = SEP_TOKEN_ID; ids[0, 7] = SEP_TOKEN_ID; ids[0, 12] = SEP_TOKEN_ID
    ids[0, 13:] = PAD_TOKEN_ID
    # batch 1: two sentences (SEP at 3, 9), padded after
    ids[1, 3] = SEP_TOKEN_ID; ids[1, 9] = SEP_TOKEN_ID
    ids[1, 10:] = PAD_TOKEN_ID
    assert int((ids == SEP_TOKEN_ID).sum(axis=-1).max()) <= MAX_SENTENCES

    input_ids = jnp.asarray(ids, dtype=jnp.int32)
    attention_mask = (input_ids != PAD_TOKEN_ID).astype(jnp.int32)

    forward = jax.jit(hierarchical_forward)
    out = jax.block_until_ready(forward(input_ids, attention_mask, params))
    assert out.shape == (B, HIDDEN), out.shape
    assert bool(jnp.all(jnp.isfinite(out)))
    print("KERNEL_OK")
</pallas_src>

<mosaic_0001>
module attributes {stable_mosaic.version = 11 : i64} {
  func.func @_hier_kernel(%arg0: i32, %arg1: memref<1x16x32xf32, #tpu.memory_space<vmem>>, %arg2: memref<1x10x16xf32, #tpu.memory_space<vmem>>, %arg3: memref<14x32xf32, #tpu.memory_space<vmem>>, %arg4: memref<2x32x96xbf16, #tpu.memory_space<vmem>>, %arg5: memref<2x32x32xbf16, #tpu.memory_space<vmem>>, %arg6: memref<2x32x64xbf16, #tpu.memory_space<vmem>>, %arg7: memref<2x64x32xbf16, #tpu.memory_space<vmem>>, %arg8: memref<2x10x64xf32, #tpu.memory_space<vmem>>, %arg9: memref<32x32xbf16, #tpu.memory_space<vmem>>, %arg10: memref<2x32x96xbf16, #tpu.memory_space<vmem>>, %arg11: memref<2x32x32xbf16, #tpu.memory_space<vmem>>, %arg12: memref<2x32x64xbf16, #tpu.memory_space<vmem>>, %arg13: memref<2x64x32xbf16, #tpu.memory_space<vmem>>, %arg14: memref<2x10x64xf32, #tpu.memory_space<vmem>>, %arg15: memref<1x1x32xf32, #tpu.memory_space<vmem>>) attributes {dimension_semantics = [#tpu.dimension_semantics<parallel>], iteration_bounds = array<i64: 2>, scalar_prefetch = 0 : i64, scratch_operands = 0 : i64, tpu.core_type = #tpu.core_type<tc>, window_params = [{transform_indices = @transform_0, window_bounds = array<i64: 1, 16, 32>}, {transform_indices = @transform_1, window_bounds = array<i64: 1, 10, 16>}, {pipeline_mode = #tpu.pipeline_mode<synchronous>, transform_indices = @transform_2, window_bounds = array<i64: 14, 32>}, {pipeline_mode = #tpu.pipeline_mode<synchronous>, transform_indices = @transform_3, window_bounds = array<i64: 2, 32, 96>}, {pipeline_mode = #tpu.pipeline_mode<synchronous>, transform_indices = @transform_4, window_bounds = array<i64: 2, 32, 32>}, {pipeline_mode = #tpu.pipeline_mode<synchronous>, transform_indices = @transform_5, window_bounds = array<i64: 2, 32, 64>}, {pipeline_mode = #tpu.pipeline_mode<synchronous>, transform_indices = @transform_6, window_bounds = array<i64: 2, 64, 32>}, {pipeline_mode = #tpu.pipeline_mode<synchronous>, transform_indices = @transform_7, window_bounds = array<i64: 2, 10, 64>}, {pipeline_mode = #tpu.pipeline_mode<synchronous>, transform_indices = @transform_8, window_bounds = array<i64: 32, 32>}, {pipeline_mode = #tpu.pipeline_mode<synchronous>, transform_indices = @transform_9, window_bounds = array<i64: 2, 32, 96>}, {pipeline_mode = #tpu.pipeline_mode<synchronous>, transform_indices = @transform_10, window_bounds = array<i64: 2, 32, 32>}, {pipeline_mode = #tpu.pipeline_mode<synchronous>, transform_indices = @transform_11, window_bounds = array<i64: 2, 32, 64>}, {pipeline_mode = #tpu.pipeline_mode<synchronous>, transform_indices = @transform_12, window_bounds = array<i64: 2, 64, 32>}, {pipeline_mode = #tpu.pipeline_mode<synchronous>, transform_indices = @transform_13, window_bounds = array<i64: 2, 10, 64>}, {transform_indices = @transform_14, window_bounds = array<i64: 1, 1, 32>}]} {
    %0 = tpu.iota {dimensions = array<i32: 1>} : vector<1x32xi32>
    %c0_i32 = arith.constant 0 : i32
    %1 = vector.broadcast %c0_i32 : i32 to vector<1x32xi32>
    %2 = arith.cmpi sge, %0, %1 : vector<1x32xi32>
    %c16_i32 = arith.constant 16 : i32
    %3 = vector.broadcast %c16_i32 : i32 to vector<1x32xi32>
    %4 = arith.cmpi slt, %0, %3 : vector<1x32xi32>
    %5 = arith.andi %2, %4 : vector<1x32xi1>
    %6 = arith.extui %5 : vector<1x32xi1> to vector<1x32xi32>
    %7 = arith.sitofp %6 : vector<1x32xi32> to vector<1x32xf32>
    %c16_i32_0 = arith.constant 16 : i32
    %8 = vector.broadcast %c16_i32_0 : i32 to vector<1x32xi32>
    %9 = arith.cmpi sge, %0, %8 : vector<1x32xi32>
    %c32_i32 = arith.constant 32 : i32
    %10 = vector.broadcast %c32_i32 : i32 to vector<1x32xi32>
    %11 = arith.cmpi slt, %0, %10 : vector<1x32xi32>
    %12 = arith.andi %9, %11 : vector<1x32xi1>
    %13 = arith.extui %12 : vector<1x32xi1> to vector<1x32xi32>
    %14 = arith.sitofp %13 : vector<1x32xi32> to vector<1x32xf32>
    %cst = arith.constant 2.500000e-01 : f32
    %15 = vector.broadcast %cst : f32 to vector<1x32xf32>
    %16 = arith.mulf %7, %15 : vector<1x32xf32>
    %cst_1 = arith.constant 2.500000e-01 : f32
    %17 = vector.broadcast %cst_1 : f32 to vector<1x32xf32>
    %18 = arith.mulf %14, %17 : vector<1x32xf32>
    %c0 = arith.constant 0 : index
    %c0_2 = arith.constant 0 : index
    %c0_3 = arith.constant 0 : index
    %19 = vector.load %arg2[%c0, %c0_2, %c0_3] : memref<1x10x16xf32, #tpu.memory_space<vmem>>, vector<1x10x16xf32>
    %20 = vector.shape_cast %19 : vector<1x10x16xf32> to vector<10x16xf32>
    %21 = vector.extract_strided_slice %20 {offsets = [0, 0], sizes = [8, 16], strides = [1, 1]} : vector<10x16xf32> to vector<8x16xf32>
    %22 = vector.extract_strided_slice %20 {offsets = [8, 0], sizes = [1, 16], strides = [1, 1]} : vector<10x16xf32> to vector<1x16xf32>
    %23 = vector.extract_strided_slice %20 {offsets = [9, 0], sizes = [1, 8], strides = [1, 1]} : vector<10x16xf32> to vector<1x8xf32>
    %cst_4 = arith.constant 1.000000e+00 : f32
    %24 = vector.broadcast %cst_4 : f32 to vector<1x16xf32>
    %25 = arith.subf %22, %24 : vector<1x16xf32>
    %cst_5 = arith.constant 1.000000e+09 : f32
    %26 = vector.broadcast %cst_5 : f32 to vector<1x16xf32>
    %27 = arith.mulf %25, %26 : vector<1x16xf32>
    %cst_6 = arith.constant 1.000000e+00 : f32
    %28 = vector.broadcast %cst_6 : f32 to vector<1x8xf32>
    %29 = arith.subf %23, %28 : vector<1x8xf32>
    %cst_7 = arith.constant 1.000000e+09 : f32
    %30 = vector.broadcast %cst_7 : f32 to vector<1x8xf32>
    %31 = arith.mulf %29, %30 : vector<1x8xf32>
    %c0_8 = arith.constant 0 : index
    %c0_9 = arith.constant 0 : index
    %32 = vector.load %arg3[%c0_8, %c0_9] : memref<14x32xf32, #tpu.memory_space<vmem>>, vector<14x32xf32>
    %33 = vector.extract_strided_slice %32 {offsets = [0, 0], sizes = [8, 32], strides = [1, 1]} : vector<14x32xf32> to vector<8x32xf32>
    %34 = vector.extract_strided_slice %32 {offsets = [8, 0], sizes = [1, 32], strides = [1, 1]} : vector<14x32xf32> to vector<1x32xf32>
    %35 = vector.extract_strided_slice %32 {offsets = [9, 0], sizes = [1, 32], strides = [1, 1]} : vector<14x32xf32> to vector<1x32xf32>
    %36 = vector.extract_strided_slice %32 {offsets = [10, 0], sizes = [1, 32], strides = [1, 1]} : vector<14x32xf32> to vector<1x32xf32>
    %37 = vector.extract_strided_slice %32 {offsets = [11, 0], sizes = [1, 32], strides = [1, 1]} : vector<14x32xf32> to vector<1x32xf32>
    %38 = vector.extract_strided_slice %32 {offsets = [12, 0], sizes = [1, 32], strides = [1, 1]} : vector<14x32xf32> to vector<1x32xf32>
    %39 = vector.extract_strided_slice %32 {offsets = [13, 0], sizes = [1, 32], strides = [1, 1]} : vector<14x32xf32> to vector<1x32xf32>
    %c0_10 = arith.constant 0 : index
    %c0_11 = arith.constant 0 : index
    %c0_12 = arith.constant 0 : index
    %40 = vector.load %arg1[%c0_10, %c0_11, %c0_12] : memref<1x16x32xf32, #tpu.memory_space<vmem>>, vector<1x16x32xf32>
    %41 = vector.shape_cast %40 : vector<1x16x32xf32> to vector<16x32xf32>
    %cst_13 = arith.constant dense<0.000000e+00> : vector<16xf32>
    %42 = vector.multi_reduction <add>, %41, %cst_13 [1] : vector<16x32xf32> to vector<16xf32>
    %43 = vector.shape_cast %42 : vector<16xf32> to vector<16x1xf32>
    %cst_14 = arith.constant 3.200000e+01 : f32
    %44 = vector.broadcast %cst_14 : f32 to vector<16x1xf32>
    %45 = arith.divf %43, %44 : vector<16x1xf32>
    %46 = vector.broadcast %45 : vector<16x1xf32> to vector<16x32xf32>
    %47 = arith.subf %41, %46 : vector<16x32xf32>
    %48 = arith.mulf %47, %47 : vector<16x32xf32>
    %cst_15 = arith.constant dense<0.000000e+00> : vector<16xf32>
    %49 = vector.multi_reduction <add>, %48, %cst_15 [1] : vector<16x32xf32> to vector<16xf32>
    %50 = vector.shape_cast %49 : vector<16xf32> to vector<16x1xf32>
    %cst_16 = arith.constant 3.200000e+01 : f32
    %51 = vector.broadcast %cst_16 : f32 to vector<16x1xf32>
    %52 = arith.divf %50, %51 : vector<16x1xf32>
    %cst_17 = arith.constant 9.99999996E-13 : f32
    %53 = vector.broadcast %cst_17 : f32 to vector<16x1xf32>
    %54 = arith.addf %52, %53 : vector<16x1xf32>
    %55 = math.rsqrt %54 : vector<16x1xf32>
    %56 = vector.broadcast %55 : vector<16x1xf32> to vector<16x32xf32>
    %57 = arith.mulf %47, %56 : vector<16x32xf32>
    %58 = vector.broadcast %34 : vector<1x32xf32> to vector<16x32xf32>
    %59 = arith.mulf %57, %58 : vector<16x32xf32>
    %60 = vector.broadcast %35 : vector<1x32xf32> to vector<16x32xf32>
    %61 = arith.addf %59, %60 : vector<16x32xf32>
    %c0_18 = arith.constant 0 : index
    %c0_19 = arith.constant 0 : index
    %c0_20 = arith.constant 0 : index
    %62 = vector.load %arg8[%c0_18, %c0_19, %c0_20] : memref<2x10x64xf32, #tpu.memory_space<vmem>>, vector<1x10x64xf32>
    %63 = vector.shape_cast %62 : vector<1x10x64xf32> to vector<10x64xf32>
    %64 = arith.truncf %61 : vector<16x32xf32> to vector<16x32xbf16>
    %c0_21 = arith.constant 0 : index
    %c0_22 = arith.constant 0 : index
    %c0_23 = arith.constant 0 : index
    %65 = vector.load %arg4[%c0_21, %c0_22, %c0_23] : memref<2x32x96xbf16, #tpu.memory_space<vmem>>, vector<1x32x96xbf16>
    %66 = vector.shape_cast %65 : vector<1x32x96xbf16> to vector<32x96xbf16>
    %cst_24 = arith.constant dense<0.000000e+00> : vector<16x96xf32>
    %67 = tpu.matmul %64, %66, %cst_24 {dimension_numbers = #tpu.dot_dimension_numbers<[1], [0], [0], [1], [0, 0, 1, 1], [], []>} : vector<16x32xbf16>, vector<32x96xbf16>, vector<16x96xf32> -> vector<16x96xf32>
    %68 = vector.extract_strided_slice %67 {offsets = [0, 0], sizes = [16, 32], strides = [1, 1]} : vector<16x96xf32> to vector<16x32xf32>
    %69 = vector.extract_strided_slice %63 {offsets = [0, 0], sizes = [1, 32], strides = [1, 1]} : vector<10x64xf32> to vector<1x32xf32>
    %70 = vector.broadcast %69 : vector<1x32xf32> to vector<16x32xf32>
    %71 = arith.addf %68, %70 : vector<16x32xf32>
    %72 = vector.extract_strided_slice %67 {offsets = [0, 32], sizes = [16, 32], strides = [1, 1]} : vector<16x96xf32> to vector<16x32xf32>
    %73 = vector.extract_strided_slice %63 {offsets = [1, 0], sizes = [1, 32], strides = [1, 1]} : vector<10x64xf32> to vector<1x32xf32>
    %74 = vector.broadcast %73 : vector<1x32xf32> to vector<16x32xf32>
    %75 = arith.addf %72, %74 : vector<16x32xf32>
    %76 = vector.extract_strided_slice %67 {offsets = [0, 64], sizes = [16, 32], strides = [1, 1]} : vector<16x96xf32> to vector<16x32xf32>
    %77 = vector.extract_strided_slice %63 {offsets = [2, 0], sizes = [1, 32], strides = [1, 1]} : vector<10x64xf32> to vector<1x32xf32>
    %78 = vector.broadcast %77 : vector<1x32xf32> to vector<16x32xf32>
    %79 = arith.addf %76, %78 : vector<16x32xf32>
    %80 = vector.broadcast %16 : vector<1x32xf32> to vector<16x32xf32>
    %81 = arith.mulf %71, %80 : vector<16x32xf32>
    %82 = vector.broadcast %18 : vector<1x32xf32> to vector<16x32xf32>
    %83 = arith.mulf %71, %82 : vector<16x32xf32>
    %84 = tpu.concatenate %81, %83 in 0 : vector<16x32xf32>, vector<16x32xf32> -> vector<32x32xf32>
    %85 = arith.truncf %84 : vector<32x32xf32> to vector<32x32xbf16>
    %86 = arith.truncf %75 : vector<16x32xf32> to vector<16x32xbf16>
    %cst_25 = arith.constant dense<0.000000e+00> : vector<32x16xf32>
    %87 = tpu.matmul %85, %86, %cst_25 {dimension_numbers = #tpu.dot_dimension_numbers<[1], [1], [0], [0], [0, 0, 1, 0], [], []>} : vector<32x32xbf16>, vector<16x32xbf16>, vector<32x16xf32> -> vector<32x16xf32>
    %88 = vector.broadcast %27 : vector<1x16xf32> to vector<32x16xf32>
    %89 = arith.addf %87, %88 : vector<32x16xf32>
    %cst_26 = arith.constant dense<0xFF800000> : vector<32xf32>
    %90 = vector.multi_reduction <maximumf>, %89, %cst_26 [1] : vector<32x16xf32> to vector<32xf32>
    %91 = vector.shape_cast %90 : vector<32xf32> to vector<32x1xf32>
    %92 = vector.broadcast %91 : vector<32x1xf32> to vector<32x16xf32>
    %93 = arith.subf %89, %92 : vector<32x16xf32>
    %94 = math.exp %93 : vector<32x16xf32>
    %cst_27 = arith.constant dense<0.000000e+00> : vector<32xf32>
    %95 = vector.multi_reduction <add>, %94, %cst_27 [1] : vector<32x16xf32> to vector<32xf32>
    %96 = vector.shape_cast %95 : vector<32xf32> to vector<32x1xf32>
    %97 = tpu.reciprocal %96 {approx = true} : vector<32x1xf32> -> vector<32x1xf32>
    %98 = vector.broadcast %97 : vector<32x1xf32> to vector<32x16xf32>
    %99 = arith.mulf %94, %98 : vector<32x16xf32>
    %100 = arith.truncf %99 : vector<32x16xf32> to vector<32x16xbf16>
    %101 = arith.truncf %79 : vector<16x32xf32> to vector<16x32xbf16>
    %cst_28 = arith.constant dense<0.000000e+00> : vector<32x32xf32>
    %102 = tpu.matmul %100, %101, %cst_28 {dimension_numbers = #tpu.dot_dimension_numbers<[1], [0], [0], [1], [0, 0, 1, 1], [], []>} : vector<32x16xbf16>, vector<16x32xbf16>, vector<32x32xf32> -> vector<32x32xf32>
    %103 = vector.extract_strided_slice %102 {offsets = [0, 0], sizes = [16, 32], strides = [1, 1]} : vector<32x32xf32> to vector<16x32xf32>
    %104 = vector.broadcast %7 : vector<1x32xf32> to vector<16x32xf32>
    %105 = arith.mulf %103, %104 : vector<16x32xf32>
    %106 = vector.extract_strided_slice %102 {offsets = [16, 0], sizes = [16, 32], strides = [1, 1]} : vector<32x32xf32> to vector<16x32xf32>
    %107 = vector.broadcast %14 : vector<1x32xf32> to vector<16x32xf32>
    %108 = arith.mulf %106, %107 : vector<16x32xf32>
    %109 = arith.addf %105, %108 : vector<16x32xf32>
    %110 = arith.truncf %109 : vector<16x32xf32> to vector<16x32xbf16>
    %c0_29 = arith.constant 0 : index
    %c0_30 = arith.constant 0 : index
    %c0_31 = arith.constant 0 : index
    %111 = vector.load %arg5[%c0_29, %c0_30, %c0_31] : memref<2x32x32xbf16, #tpu.memory_space<vmem>>, vector<1x32x32xbf16>
    %112 = vector.shape_cast %111 : vector<1x32x32xbf16> to vector<32x32xbf16>
    %cst_32 = arith.constant dense<0.000000e+00> : vector<16x32xf32>
    %113 = tpu.matmul %110, %112, %cst_32 {dimension_numbers = #tpu.dot_dimension_numbers<[1], [0], [0], [1], [0, 0, 1, 1], [], []>} : vector<16x32xbf16>, vector<32x32xbf16>, vector<16x32xf32> -> vector<16x32xf32>
    %114 = vector.extract_strided_slice %63 {offsets = [3, 0], sizes = [1, 32], strides = [1, 1]} : vector<10x64xf32> to vector<1x32xf32>
    %115 = vector.broadcast %114 : vector<1x32xf32> to vector<16x32xf32>
    %116 = arith.addf %113, %115 : vector<16x32xf32>
    %117 = arith.addf %61, %116 : vector<16x32xf32>
    %118 = vector.extract_strided_slice %63 {offsets = [5, 0], sizes = [1, 32], strides = [1, 1]} : vector<10x64xf32> to vector<1x32xf32>
    %119 = vector.extract_strided_slice %63 {offsets = [6, 0], sizes = [1, 32], strides = [1, 1]} : vector<10x64xf32> to vector<1x32xf32>
    %cst_33 = arith.constant dense<0.000000e+00> : vector<16xf32>
    %120 = vector.multi_reduction <add>, %117, %cst_33 [1] : vector<16x32xf32> to vector<16xf32>
    %121 = vector.shape_cast %120 : vector<16xf32> to vector<16x1xf32>
    %cst_34 = arith.constant 3.200000e+01 : f32
    %122 = vector.broadcast %cst_34 : f32 to vector<16x1xf32>
    %123 = arith.divf %121, %122 : vector<16x1xf32>
    %124 = vector.broadcast %123 : vector<16x1xf32> to vector<16x32xf32>
    %125 = arith.subf %117, %124 : vector<16x32xf32>
    %126 = arith.mulf %125, %125 : vector<16x32xf32>
    %cst_35 = arith.constant dense<0.000000e+00> : vector<16xf32>
    %127 = vector.multi_reduction <add>, %126, %cst_35 [1] : vector<16x32xf32> to vector<16xf32>
    %128 = vector.shape_cast %127 : vector<16xf32> to vector<16x1xf32>
    %cst_36 = arith.constant 3.200000e+01 : f32
    %129 = vector.broadcast %cst_36 : f32 to vector<16x1xf32>
    %130 = arith.divf %128, %129 : vector<16x1xf32>
    %cst_37 = arith.constant 9.99999996E-13 : f32
    %131 = vector.broadcast %cst_37 : f32 to vector<16x1xf32>
    %132 = arith.addf %130, %131 : vector<16x1xf32>
    %133 = math.rsqrt %132 : vector<16x1xf32>
    %134 = vector.broadcast %133 : vector<16x1xf32> to vector<16x32xf32>
    %135 = arith.mulf %125, %134 : vector<16x32xf32>
    %136 = vector.broadcast %118 : vector<1x32xf32> to vector<16x32xf32>
    %137 = arith.mulf %135, %136 : vector<16x32xf32>
    %138 = vector.broadcast %119 : vector<1x32xf32> to vector<16x32xf32>
    %139 = arith.addf %137, %138 : vector<16x32xf32>
    %140 = arith.truncf %139 : vector<16x32xf32> to vector<16x32xbf16>
    %c0_38 = arith.constant 0 : index
    %c0_39 = arith.constant 0 : index
    %c0_40 = arith.constant 0 : index
    %141 = vector.load %arg6[%c0_38, %c0_39, %c0_40] : memref<2x32x64xbf16, #tpu.memory_space<vmem>>, vector<1x32x64xbf16>
    %142 = vector.shape_cast %141 : vector<1x32x64xbf16> to vector<32x64xbf16>
    %cst_41 = arith.constant dense<0.000000e+00> : vector<16x64xf32>
    %143 = tpu.matmul %140, %142, %cst_41 {dimension_numbers = #tpu.dot_dimension_numbers<[1], [0], [0], [1], [0, 0, 1, 1], [], []>} : vector<16x32xbf16>, vector<32x64xbf16>, vector<16x64xf32> -> vector<16x64xf32>
    %144 = vector.extract_strided_slice %63 {offsets = [9, 0], sizes = [1, 64], strides = [1, 1]} : vector<10x64xf32> to vector<1x64xf32>
    %145 = vector.broadcast %144 : vector<1x64xf32> to vector<16x64xf32>
    %146 = arith.addf %143, %145 : vector<16x64xf32>
    %147 = arith.mulf %146, %146 : vector<16x64xf32>
    %148 = arith.mulf %146, %147 : vector<16x64xf32>
    %cst_42 = arith.constant 4.471500e-02 : f32
    %149 = vector.broadcast %cst_42 : f32 to vector<16x64xf32>
    %150 = arith.mulf %149, %148 : vector<16x64xf32>
    %151 = arith.addf %146, %150 : vector<16x64xf32>
    %cst_43 = arith.constant 0.797884583 : f32
    %152 = vector.broadcast %cst_43 : f32 to vector<16x64xf32>
    %153 = arith.mulf %152, %151 : vector<16x64xf32>
    %154 = math.tanh %153 : vector<16x64xf32>
    %cst_44 = arith.constant 1.000000e+00 : f32
    %155 = vector.broadcast %cst_44 : f32 to vector<16x64xf32>
    %156 = arith.addf %155, %154 : vector<16x64xf32>
    %cst_45 = arith.constant 5.000000e-01 : f32
    %157 = vector.broadcast %cst_45 : f32 to vector<16x64xf32>
    %158 = arith.mulf %157, %156 : vector<16x64xf32>
    %159 = arith.mulf %146, %158 : vector<16x64xf32>
    %160 = arith.truncf %159 : vector<16x64xf32> to vector<16x64xbf16>
    %c0_46 = arith.constant 0 : index
    %c0_47 = arith.constant 0 : index
    %c0_48 = arith.constant 0 : index
    %161 = vector.load %arg7[%c0_46, %c0_47, %c0_48] : memref<2x64x32xbf16, #tpu.memory_space<vmem>>, vector<1x64x32xbf16>
    %162 = vector.shape_cast %161 : vector<1x64x32xbf16> to vector<64x32xbf16>
    %cst_49 = arith.constant dense<0.000000e+00> : vector<16x32xf32>
    %163 = tpu.matmul %160, %162, %cst_49 {dimension_numbers = #tpu.dot_dimension_numbers<[1], [0], [0], [1], [0, 0, 1, 1], [], []>} : vector<16x64xbf16>, vector<64x32xbf16>, vector<16x32xf32> -> vector<16x32xf32>
    %164 = vector.extract_strided_slice %63 {offsets = [4, 0], sizes = [1, 32], strides = [1, 1]} : vector<10x64xf32> to vector<1x32xf32>
    %165 = vector.broadcast %164 : vector<1x32xf32> to vector<16x32xf32>
    %166 = arith.addf %163, %165 : vector<16x32xf32>
    %167 = arith.addf %139, %166 : vector<16x32xf32>
    %168 = vector.extract_strided_slice %63 {offsets = [7, 0], sizes = [1, 32], strides = [1, 1]} : vector<10x64xf32> to vector<1x32xf32>
    %169 = vector.extract_strided_slice %63 {offsets = [8, 0], sizes = [1, 32], strides = [1, 1]} : vector<10x64xf32> to vector<1x32xf32>
    %cst_50 = arith.constant dense<0.000000e+00> : vector<16xf32>
    %170 = vector.multi_reduction <add>, %167, %cst_50 [1] : vector<16x32xf32> to vector<16xf32>
    %171 = vector.shape_cast %170 : vector<16xf32> to vector<16x1xf32>
    %cst_51 = arith.constant 3.200000e+01 : f32
    %172 = vector.broadcast %cst_51 : f32 to vector<16x1xf32>
    %173 = arith.divf %171, %172 : vector<16x1xf32>
    %174 = vector.broadcast %173 : vector<16x1xf32> to vector<16x32xf32>
    %175 = arith.subf %167, %174 : vector<16x32xf32>
    %176 = arith.mulf %175, %175 : vector<16x32xf32>
    %cst_52 = arith.constant dense<0.000000e+00> : vector<16xf32>
    %177 = vector.multi_reduction <add>, %176, %cst_52 [1] : vector<16x32xf32> to vector<16xf32>
    %178 = vector.shape_cast %177 : vector<16xf32> to vector<16x1xf32>
    %cst_53 = arith.constant 3.200000e+01 : f32
    %179 = vector.broadcast %cst_53 : f32 to vector<16x1xf32>
    %180 = arith.divf %178, %179 : vector<16x1xf32>
    %cst_54 = arith.constant 9.99999996E-13 : f32
    %181 = vector.broadcast %cst_54 : f32 to vector<16x1xf32>
    %182 = arith.addf %180, %181 : vector<16x1xf32>
    %183 = math.rsqrt %182 : vector<16x1xf32>
    %184 = vector.broadcast %183 : vector<16x1xf32> to vector<16x32xf32>
    %185 = arith.mulf %175, %184 : vector<16x32xf32>
    %186 = vector.broadcast %168 : vector<1x32xf32> to vector<16x32xf32>
    %187 = arith.mulf %185, %186 : vector<16x32xf32>
    %188 = vector.broadcast %169 : vector<1x32xf32> to vector<16x32xf32>
    %189 = arith.addf %187, %188 : vector<16x32xf32>
    %c1 = arith.constant 1 : index
    %c0_55 = arith.constant 0 : index
    %c0_56 = arith.constant 0 : index
    %190 = vector.load %arg8[%c1, %c0_55, %c0_56] : memref<2x10x64xf32, #tpu.memory_space<vmem>>, vector<1x10x64xf32>
    %191 = vector.shape_cast %190 : vector<1x10x64xf32> to vector<10x64xf32>
    %192 = arith.truncf %189 : vector<16x32xf32> to vector<16x32xbf16>
    %c1_57 = arith.constant 1 : index
    %c0_58 = arith.constant 0 : index
    %c0_59 = arith.constant 0 : index
    %193 = vector.load %arg4[%c1_57, %c0_58, %c0_59] : memref<2x32x96xbf16, #tpu.memory_space<vmem>>, vector<1x32x96xbf16>
    %194 = vector.shape_cast %193 : vector<1x32x96xbf16> to vector<32x96xbf16>
    %cst_60 = arith.constant dense<0.000000e+00> : vector<16x96xf32>
    %195 = tpu.matmul %192, %194, %cst_60 {dimension_numbers = #tpu.dot_dimension_numbers<[1], [0], [0], [1], [0, 0, 1, 1], [], []>} : vector<16x32xbf16>, vector<32x96xbf16>, vector<16x96xf32> -> vector<16x96xf32>
    %196 = vector.extract_strided_slice %195 {offsets = [0, 0], sizes = [16, 32], strides = [1, 1]} : vector<16x96xf32> to vector<16x32xf32>
    %197 = vector.extract_strided_slice %191 {offsets = [0, 0], sizes = [1, 32], strides = [1, 1]} : vector<10x64xf32> to vector<1x32xf32>
    %198 = vector.broadcast %197 : vector<1x32xf32> to vector<16x32xf32>
    %199 = arith.addf %196, %198 : vector<16x32xf32>
    %200 = vector.extract_strided_slice %195 {offsets = [0, 32], sizes = [16, 32], strides = [1, 1]} : vector<16x96xf32> to vector<16x32xf32>
    %201 = vector.extract_strided_slice %191 {offsets = [1, 0], sizes = [1, 32], strides = [1, 1]} : vector<10x64xf32> to vector<1x32xf32>
    %202 = vector.broadcast %201 : vector<1x32xf32> to vector<16x32xf32>
    %203 = arith.addf %200, %202 : vector<16x32xf32>
    %204 = vector.extract_strided_slice %195 {offsets = [0, 64], sizes = [16, 32], strides = [1, 1]} : vector<16x96xf32> to vector<16x32xf32>
    %205 = vector.extract_strided_slice %191 {offsets = [2, 0], sizes = [1, 32], strides = [1, 1]} : vector<10x64xf32> to vector<1x32xf32>
    %206 = vector.broadcast %205 : vector<1x32xf32> to vector<16x32xf32>
    %207 = arith.addf %204, %206 : vector<16x32xf32>
    %208 = vector.broadcast %16 : vector<1x32xf32> to vector<16x32xf32>
    %209 = arith.mulf %199, %208 : vector<16x32xf32>
    %210 = vector.broadcast %18 : vector<1x32xf32> to vector<16x32xf32>
    %211 = arith.mulf %199, %210 : vector<16x32xf32>
    %212 = tpu.concatenate %209, %211 in 0 : vector<16x32xf32>, vector<16x32xf32> -> vector<32x32xf32>
    %213 = arith.truncf %212 : vector<32x32xf32> to vector<32x32xbf16>
    %214 = arith.truncf %203 : vector<16x32xf32> to vector<16x32xbf16>
    %cst_61 = arith.constant dense<0.000000e+00> : vector<32x16xf32>
    %215 = tpu.matmul %213, %214, %cst_61 {dimension_numbers = #tpu.dot_dimension_numbers<[1], [1], [0], [0], [0, 0, 1, 0], [], []>} : vector<32x32xbf16>, vector<16x32xbf16>, vector<32x16xf32> -> vector<32x16xf32>
    %216 = vector.broadcast %27 : vector<1x16xf32> to vector<32x16xf32>
    %217 = arith.addf %215, %216 : vector<32x16xf32>
    %cst_62 = arith.constant dense<0xFF800000> : vector<32xf32>
    %218 = vector.multi_reduction <maximumf>, %217, %cst_62 [1] : vector<32x16xf32> to vector<32xf32>
    %219 = vector.shape_cast %218 : vector<32xf32> to vector<32x1xf32>
    %220 = vector.broadcast %219 : vector<32x1xf32> to vector<32x16xf32>
    %221 = arith.subf %217, %220 : vector<32x16xf32>
    %222 = math.exp %221 : vector<32x16xf32>
    %cst_63 = arith.constant dense<0.000000e+00> : vector<32xf32>
    %223 = vector.multi_reduction <add>, %222, %cst_63 [1] : vector<32x16xf32> to vector<32xf32>
    %224 = vector.shape_cast %223 : vector<32xf32> to vector<32x1xf32>
    %225 = tpu.reciprocal %224 {approx = true} : vector<32x1xf32> -> vector<32x1xf32>
    %226 = vector.broadcast %225 : vector<32x1xf32> to vector<32x16xf32>
    %227 = arith.mulf %222, %226 : vector<32x16xf32>
    %228 = arith.truncf %227 : vector<32x16xf32> to vector<32x16xbf16>
    %229 = arith.truncf %207 : vector<16x32xf32> to vector<16x32xbf16>
    %cst_64 = arith.constant dense<0.000000e+00> : vector<32x32xf32>
    %230 = tpu.matmul %228, %229, %cst_64 {dimension_numbers = #tpu.dot_dimension_numbers<[1], [0], [0], [1], [0, 0, 1, 1], [], []>} : vector<32x16xbf16>, vector<16x32xbf16>, vector<32x32xf32> -> vector<32x32xf32>
    %231 = vector.extract_strided_slice %230 {offsets = [0, 0], sizes = [16, 32], strides = [1, 1]} : vector<32x32xf32> to vector<16x32xf32>
    %232 = vector.broadcast %7 : vector<1x32xf32> to vector<16x32xf32>
    %233 = arith.mulf %231, %232 : vector<16x32xf32>
    %234 = vector.extract_strided_slice %230 {offsets = [16, 0], sizes = [16, 32], strides = [1, 1]} : vector<32x32xf32> to vector<16x32xf32>
    %235 = vector.broadcast %14 : vector<1x32xf32> to vector<16x32xf32>
    %236 = arith.mulf %234, %235 : vector<16x32xf32>
    %237 = arith.addf %233, %236 : vector<16x32xf32>
    %238 = arith.truncf %237 : vector<16x32xf32> to vector<16x32xbf16>
    %c1_65 = arith.constant 1 : index
    %c0_66 = arith.constant 0 : index
    %c0_67 = arith.constant 0 : index
    %239 = vector.load %arg5[%c1_65, %c0_66, %c0_67] : memref<2x32x32xbf16, #tpu.memory_space<vmem>>, vector<1x32x32xbf16>
    %240 = vector.shape_cast %239 : vector<1x32x32xbf16> to vector<32x32xbf16>
    %cst_68 = arith.constant dense<0.000000e+00> : vector<16x32xf32>
    %241 = tpu.matmul %238, %240, %cst_68 {dimension_numbers = #tpu.dot_dimension_numbers<[1], [0], [0], [1], [0, 0, 1, 1], [], []>} : vector<16x32xbf16>, vector<32x32xbf16>, vector<16x32xf32> -> vector<16x32xf32>
    %242 = vector.extract_strided_slice %191 {offsets = [3, 0], sizes = [1, 32], strides = [1, 1]} : vector<10x64xf32> to vector<1x32xf32>
    %243 = vector.broadcast %242 : vector<1x32xf32> to vector<16x32xf32>
    %244 = arith.addf %241, %243 : vector<16x32xf32>
    %245 = arith.addf %189, %244 : vector<16x32xf32>
    %246 = vector.extract_strided_slice %191 {offsets = [5, 0], sizes = [1, 32], strides = [1, 1]} : vector<10x64xf32> to vector<1x32xf32>
    %247 = vector.extract_strided_slice %191 {offsets = [6, 0], sizes = [1, 32], strides = [1, 1]} : vector<10x64xf32> to vector<1x32xf32>
    %cst_69 = arith.constant dense<0.000000e+00> : vector<16xf32>
    %248 = vector.multi_reduction <add>, %245, %cst_69 [1] : vector<16x32xf32> to vector<16xf32>
    %249 = vector.shape_cast %248 : vector<16xf32> to vector<16x1xf32>
    %cst_70 = arith.constant 3.200000e+01 : f32
    %250 = vector.broadcast %cst_70 : f32 to vector<16x1xf32>
    %251 = arith.divf %249, %250 : vector<16x1xf32>
    %252 = vector.broadcast %251 : vector<16x1xf32> to vector<16x32xf32>
    %253 = arith.subf %245, %252 : vector<16x32xf32>
    %254 = arith.mulf %253, %253 : vector<16x32xf32>
    %cst_71 = arith.constant dense<0.000000e+00> : vector<16xf32>
    %255 = vector.multi_reduction <add>, %254, %cst_71 [1] : vector<16x32xf32> to vector<16xf32>
    %256 = vector.shape_cast %255 : vector<16xf32> to vector<16x1xf32>
    %cst_72 = arith.constant 3.200000e+01 : f32
    %257 = vector.broadcast %cst_72 : f32 to vector<16x1xf32>
    %258 = arith.divf %256, %257 : vector<16x1xf32>
    %cst_73 = arith.constant 9.99999996E-13 : f32
    %259 = vector.broadcast %cst_73 : f32 to vector<16x1xf32>
    %260 = arith.addf %258, %259 : vector<16x1xf32>
    %261 = math.rsqrt %260 : vector<16x1xf32>
    %262 = vector.broadcast %261 : vector<16x1xf32> to vector<16x32xf32>
    %263 = arith.mulf %253, %262 : vector<16x32xf32>
    %264 = vector.broadcast %246 : vector<1x32xf32> to vector<16x32xf32>
    %265 = arith.mulf %263, %264 : vector<16x32xf32>
    %266 = vector.broadcast %247 : vector<1x32xf32> to vector<16x32xf32>
    %267 = arith.addf %265, %266 : vector<16x32xf32>
    %268 = arith.truncf %267 : vector<16x32xf32> to vector<16x32xbf16>
    %c1_74 = arith.constant 1 : index
    %c0_75 = arith.constant 0 : index
    %c0_76 = arith.constant 0 : index
    %269 = vector.load %arg6[%c1_74, %c0_75, %c0_76] : memref<2x32x64xbf16, #tpu.memory_space<vmem>>, vector<1x32x64xbf16>
    %270 = vector.shape_cast %269 : vector<1x32x64xbf16> to vector<32x64xbf16>
    %cst_77 = arith.constant dense<0.000000e+00> : vector<16x64xf32>
    %271 = tpu.matmul %268, %270, %cst_77 {dimension_numbers = #tpu.dot_dimension_numbers<[1], [0], [0], [1], [0, 0, 1, 1], [], []>} : vector<16x32xbf16>, vector<32x64xbf16>, vector<16x64xf32> -> vector<16x64xf32>
    %272 = vector.extract_strided_slice %191 {offsets = [9, 0], sizes = [1, 64], strides = [1, 1]} : vector<10x64xf32> to vector<1x64xf32>
    %273 = vector.broadcast %272 : vector<1x64xf32> to vector<16x64xf32>
    %274 = arith.addf %271, %273 : vector<16x64xf32>
    %275 = arith.mulf %274, %274 : vector<16x64xf32>
    %276 = arith.mulf %274, %275 : vector<16x64xf32>
    %cst_78 = arith.constant 4.471500e-02 : f32
    %277 = vector.broadcast %cst_78 : f32 to vector<16x64xf32>
    %278 = arith.mulf %277, %276 : vector<16x64xf32>
    %279 = arith.addf %274, %278 : vector<16x64xf32>
    %cst_79 = arith.constant 0.797884583 : f32
    %280 = vector.broadcast %cst_79 : f32 to vector<16x64xf32>
    %281 = arith.mulf %280, %279 : vector<16x64xf32>
    %282 = math.tanh %281 : vector<16x64xf32>
    %cst_80 = arith.constant 1.000000e+00 : f32
    %283 = vector.broadcast %cst_80 : f32 to vector<16x64xf32>
    %284 = arith.addf %283, %282 : vector<16x64xf32>
    %cst_81 = arith.constant 5.000000e-01 : f32
    %285 = vector.broadcast %cst_81 : f32 to vector<16x64xf32>
    %286 = arith.mulf %285, %284 : vector<16x64xf32>
    %287 = arith.mulf %274, %286 : vector<16x64xf32>
    %288 = arith.truncf %287 : vector<16x64xf32> to vector<16x64xbf16>
    %c1_82 = arith.constant 1 : index
    %c0_83 = arith.constant 0 : index
    %c0_84 = arith.constant 0 : index
    %289 = vector.load %arg7[%c1_82, %c0_83, %c0_84] : memref<2x64x32xbf16, #tpu.memory_space<vmem>>, vector<1x64x32xbf16>
    %290 = vector.shape_cast %289 : vector<1x64x32xbf16> to vector<64x32xbf16>
    %cst_85 = arith.constant dense<0.000000e+00> : vector<16x32xf32>
    %291 = tpu.matmul %288, %290, %cst_85 {dimension_numbers = #tpu.dot_dimension_numbers<[1], [0], [0], [1], [0, 0, 1, 1], [], []>} : vector<16x64xbf16>, vector<64x32xbf16>, vector<16x32xf32> -> vector<16x32xf32>
    %292 = vector.extract_strided_slice %191 {offsets = [4, 0], sizes = [1, 32], strides = [1, 1]} : vector<10x64xf32> to vector<1x32xf32>
    %293 = vector.broadcast %292 : vector<1x32xf32> to vector<16x32xf32>
    %294 = arith.addf %291, %293 : vector<16x32xf32>
    %295 = arith.addf %267, %294 : vector<16x32xf32>
    %296 = vector.extract_strided_slice %191 {offsets = [7, 0], sizes = [1, 32], strides = [1, 1]} : vector<10x64xf32> to vector<1x32xf32>
    %297 = vector.extract_strided_slice %191 {offsets = [8, 0], sizes = [1, 32], strides = [1, 1]} : vector<10x64xf32> to vector<1x32xf32>
    %cst_86 = arith.constant dense<0.000000e+00> : vector<16xf32>
    %298 = vector.multi_reduction <add>, %295, %cst_86 [1] : vector<16x32xf32> to vector<16xf32>
    %299 = vector.shape_cast %298 : vector<16xf32> to vector<16x1xf32>
    %cst_87 = arith.constant 3.200000e+01 : f32
    %300 = vector.broadcast %cst_87 : f32 to vector<16x1xf32>
    %301 = arith.divf %299, %300 : vector<16x1xf32>
    %302 = vector.broadcast %301 : vector<16x1xf32> to vector<16x32xf32>
    %303 = arith.subf %295, %302 : vector<16x32xf32>
    %304 = arith.mulf %303, %303 : vector<16x32xf32>
    %cst_88 = arith.constant dense<0.000000e+00> : vector<16xf32>
    %305 = vector.multi_reduction <add>, %304, %cst_88 [1] : vector<16x32xf32> to vector<16xf32>
    %306 = vector.shape_cast %305 : vector<16xf32> to vector<16x1xf32>
    %cst_89 = arith.constant 3.200000e+01 : f32
    %307 = vector.broadcast %cst_89 : f32 to vector<16x1xf32>
    %308 = arith.divf %306, %307 : vector<16x1xf32>
    %cst_90 = arith.constant 9.99999996E-13 : f32
    %309 = vector.broadcast %cst_90 : f32 to vector<16x1xf32>
    %310 = arith.addf %308, %309 : vector<16x1xf32>
    %311 = math.rsqrt %310 : vector<16x1xf32>
    %312 = vector.broadcast %311 : vector<16x1xf32> to vector<16x32xf32>
    %313 = arith.mulf %303, %312 : vector<16x32xf32>
    %314 = vector.broadcast %296 : vector<1x32xf32> to vector<16x32xf32>
    %315 = arith.mulf %313, %314 : vector<16x32xf32>
    %316 = vector.broadcast %297 : vector<1x32xf32> to vector<16x32xf32>
    %317 = arith.addf %315, %316 : vector<16x32xf32>
    %318 = arith.truncf %317 : vector<16x32xf32> to vector<16x32xbf16>
    %c0_91 = arith.constant 0 : index
    %c0_92 = arith.constant 0 : index
    %319 = vector.load %arg9[%c0_91, %c0_92] : memref<32x32xbf16, #tpu.memory_space<vmem>>, vector<32x32xbf16>
    %cst_93 = arith.constant dense<0.000000e+00> : vector<16x32xf32>
    %320 = tpu.matmul %318, %319, %cst_93 {dimension_numbers = #tpu.dot_dimension_numbers<[1], [0], [0], [1], [0, 0, 1, 1], [], []>} : vector<16x32xbf16>, vector<32x32xbf16>, vector<16x32xf32> -> vector<16x32xf32>
    %321 = vector.broadcast %38 : vector<1x32xf32> to vector<16x32xf32>
    %322 = arith.addf %320, %321 : vector<16x32xf32>
    %323 = math.tanh %322 : vector<16x32xf32>
    %324 = vector.broadcast %39 : vector<1x32xf32> to vector<16x32xf32>
    %325 = arith.mulf %323, %324 : vector<16x32xf32>
    %cst_94 = arith.constant dense<0.000000e+00> : vector<16xf32>
    %326 = vector.multi_reduction <add>, %325, %cst_94 [1] : vector<16x32xf32> to vector<16xf32>
    %327 = vector.shape_cast %326 : vector<16xf32> to vector<16x1xf32>
    %328 = vector.shape_cast %327 : vector<16x1xf32> to vector<1x16x1xf32>
    %cst_95 = arith.constant dense<0xFF800000> : vector<1xf32>
    %329 = vector.multi_reduction <maximumf>, %328, %cst_95 [1, 2] : vector<1x16x1xf32> to vector<1xf32>
    %330 = vector.shape_cast %329 : vector<1xf32> to vector<1x1x1xf32>
    %331 = vector.extract %330[0, 0, 0] : f32 from vector<1x1x1xf32>
    %332 = vector.broadcast %331 : f32 to vector<16x1xf32>
    %333 = arith.subf %327, %332 : vector<16x1xf32>
    %334 = math.exp %333 : vector<16x1xf32>
    %335 = vector.broadcast %334 : vector<16x1xf32> to vector<16x32xf32>
    %336 = arith.mulf %335, %317 : vector<16x32xf32>
    %cst_96 = arith.constant dense<0.000000e+00> : vector<8x32xf32>
    %337 = tpu.matmul %21, %336, %cst_96 {dimension_numbers = #tpu.dot_dimension_numbers<[1], [0], [0], [1], [0, 0, 1, 1], [], []>} : vector<8x16xf32>, vector<16x32xf32>, vector<8x32xf32> -> vector<8x32xf32>
    %cst_97 = arith.constant dense<0.000000e+00> : vector<8x1xf32>
    %338 = tpu.matmul %21, %334, %cst_97 {dimension_numbers = #tpu.dot_dimension_numbers<[1], [0], [0], [1], [0, 0, 1, 1], [], []>} : vector<8x16xf32>, vector<16x1xf32>, vector<8x1xf32> -> vector<8x1xf32>
    %cst_98 = arith.constant 0.000000e+00 : f32
    %339 = vector.broadcast %cst_98 : f32 to vector<8x1xf32>
    %340 = arith.cmpf ogt, %338, %339 : vector<8x1xf32>
    %cst_99 = arith.constant 1.000000e+00 : f32
    %341 = vector.broadcast %cst_99 : f32 to vector<8x1xf32>
    %342 = arith.select %340, %338, %341 : vector<8x1xi1>, vector<8x1xf32>
    %343 = vector.broadcast %342 : vector<8x1xf32> to vector<8x32xf32>
    %344 = arith.divf %337, %343 : vector<8x32xf32>
    %345 = arith.addf %344, %33 : vector<8x32xf32>
    %cst_100 = arith.constant dense<0.000000e+00> : vector<8xf32>
    %346 = vector.multi_reduction <add>, %345, %cst_100 [1] : vector<8x32xf32> to vector<8xf32>
    %347 = vector.shape_cast %346 : vector<8xf32> to vector<8x1xf32>
    %cst_101 = arith.constant 3.200000e+01 : f32
    %348 = vector.broadcast %cst_101 : f32 to vector<8x1xf32>
    %349 = arith.divf %347, %348 : vector<8x1xf32>
    %350 = vector.broadcast %349 : vector<8x1xf32> to vector<8x32xf32>
    %351 = arith.subf %345, %350 : vector<8x32xf32>
    %352 = arith.mulf %351, %351 : vector<8x32xf32>
    %cst_102 = arith.constant dense<0.000000e+00> : vector<8xf32>
    %353 = vector.multi_reduction <add>, %352, %cst_102 [1] : vector<8x32xf32> to vector<8xf32>
    %354 = vector.shape_cast %353 : vector<8xf32> to vector<8x1xf32>
    %cst_103 = arith.constant 3.200000e+01 : f32
    %355 = vector.broadcast %cst_103 : f32 to vector<8x1xf32>
    %356 = arith.divf %354, %355 : vector<8x1xf32>
    %cst_104 = arith.constant 9.99999996E-13 : f32
    %357 = vector.broadcast %cst_104 : f32 to vector<8x1xf32>
    %358 = arith.addf %356, %357 : vector<8x1xf32>
    %359 = math.rsqrt %358 : vector<8x1xf32>
    %360 = vector.broadcast %359 : vector<8x1xf32> to vector<8x32xf32>
    %361 = arith.mulf %351, %360 : vector<8x32xf32>
    %362 = vector.broadcast %36 : vector<1x32xf32> to vector<8x32xf32>
    %363 = arith.mulf %361, %362 : vector<8x32xf32>
    %364 = vector.broadcast %37 : vector<1x32xf32> to vector<8x32xf32>
    %365 = arith.addf %363, %364 : vector<8x32xf32>
    %c0_105 = arith.constant 0 : index
    %c0_106 = arith.constant 0 : index
    %c0_107 = arith.constant 0 : index
    %366 = vector.load %arg14[%c0_105, %c0_106, %c0_107] : memref<2x10x64xf32, #tpu.memory_space<vmem>>, vector<1x10x64xf32>
    %367 = vector.shape_cast %366 : vector<1x10x64xf32> to vector<10x64xf32>
    %368 = arith.truncf %365 : vector<8x32xf32> to vector<8x32xbf16>
    %c0_108 = arith.constant 0 : index
    %c0_109 = arith.constant 0 : index
    %c0_110 = arith.constant 0 : index
    %369 = vector.load %arg10[%c0_108, %c0_109, %c0_110] : memref<2x32x96xbf16, #tpu.memory_space<vmem>>, vector<1x32x96xbf16>
    %370 = vector.shape_cast %369 : vector<1x32x96xbf16> to vector<32x96xbf16>
    %cst_111 = arith.constant dense<0.000000e+00> : vector<8x96xf32>
    %371 = tpu.matmul %368, %370, %cst_111 {dimension_numbers = #tpu.dot_dimension_numbers<[1], [0], [0], [1], [0, 0, 1, 1], [], []>} : vector<8x32xbf16>, vector<32x96xbf16>, vector<8x96xf32> -> vector<8x96xf32>
    %372 = vector.extract_strided_slice %371 {offsets = [0, 0], sizes = [8, 32], strides = [1, 1]} : vector<8x96xf32> to vector<8x32xf32>
    %373 = vector.extract_strided_slice %367 {offsets = [0, 0], sizes = [1, 32], strides = [1, 1]} : vector<10x64xf32> to vector<1x32xf32>
    %374 = vector.broadcast %373 : vector<1x32xf32> to vector<8x32xf32>
    %375 = arith.addf %372, %374 : vector<8x32xf32>
    %376 = vector.extract_strided_slice %371 {offsets = [0, 32], sizes = [8, 32], strides = [1, 1]} : vector<8x96xf32> to vector<8x32xf32>
    %377 = vector.extract_strided_slice %367 {offsets = [1, 0], sizes = [1, 32], strides = [1, 1]} : vector<10x64xf32> to vector<1x32xf32>
    %378 = vector.broadcast %377 : vector<1x32xf32> to vector<8x32xf32>
    %379 = arith.addf %376, %378 : vector<8x32xf32>
    %380 = vector.extract_strided_slice %371 {offsets = [0, 64], sizes = [8, 32], strides = [1, 1]} : vector<8x96xf32> to vector<8x32xf32>
    %381 = vector.extract_strided_slice %367 {offsets = [2, 0], sizes = [1, 32], strides = [1, 1]} : vector<10x64xf32> to vector<1x32xf32>
    %382 = vector.broadcast %381 : vector<1x32xf32> to vector<8x32xf32>
    %383 = arith.addf %380, %382 : vector<8x32xf32>
    %384 = vector.broadcast %16 : vector<1x32xf32> to vector<8x32xf32>
    %385 = arith.mulf %375, %384 : vector<8x32xf32>
    %386 = vector.broadcast %18 : vector<1x32xf32> to vector<8x32xf32>
    %387 = arith.mulf %375, %386 : vector<8x32xf32>
    %388 = tpu.concatenate %385, %387 in 0 : vector<8x32xf32>, vector<8x32xf32> -> vector<16x32xf32>
    %389 = arith.truncf %388 : vector<16x32xf32> to vector<16x32xbf16>
    %390 = arith.truncf %379 : vector<8x32xf32> to vector<8x32xbf16>
    %cst_112 = arith.constant dense<0.000000e+00> : vector<16x8xf32>
    %391 = tpu.matmul %389, %390, %cst_112 {dimension_numbers = #tpu.dot_dimension_numbers<[1], [1], [0], [0], [0, 0, 1, 0], [], []>} : vector<16x32xbf16>, vector<8x32xbf16>, vector<16x8xf32> -> vector<16x8xf32>
    %392 = vector.broadcast %31 : vector<1x8xf32> to vector<16x8xf32>
    %393 = arith.addf %391, %392 : vector<16x8xf32>
    %cst_113 = arith.constant dense<0xFF800000> : vector<16xf32>
    %394 = vector.multi_reduction <maximumf>, %393, %cst_113 [1] : vector<16x8xf32> to vector<16xf32>
    %395 = vector.shape_cast %394 : vector<16xf32> to vector<16x1xf32>
    %396 = vector.broadcast %395 : vector<16x1xf32> to vector<16x8xf32>
    %397 = arith.subf %393, %396 : vector<16x8xf32>
    %398 = math.exp %397 : vector<16x8xf32>
    %cst_114 = arith.constant dense<0.000000e+00> : vector<16xf32>
    %399 = vector.multi_reduction <add>, %398, %cst_114 [1] : vector<16x8xf32> to vector<16xf32>
    %400 = vector.shape_cast %399 : vector<16xf32> to vector<16x1xf32>
    %401 = tpu.reciprocal %400 {approx = true} : vector<16x1xf32> -> vector<16x1xf32>
    %402 = vector.broadcast %401 : vector<16x1xf32> to vector<16x8xf32>
    %403 = arith.mulf %398, %402 : vector<16x8xf32>
    %404 = arith.truncf %403 : vector<16x8xf32> to vector<16x8xbf16>
    %405 = arith.truncf %383 : vector<8x32xf32> to vector<8x32xbf16>
    %cst_115 = arith.constant dense<0.000000e+00> : vector<16x32xf32>
    %406 = tpu.matmul %404, %405, %cst_115 {dimension_numbers = #tpu.dot_dimension_numbers<[1], [0], [0], [1], [0, 0, 1, 1], [], []>} : vector<16x8xbf16>, vector<8x32xbf16>, vector<16x32xf32> -> vector<16x32xf32>
    %407 = vector.extract_strided_slice %406 {offsets = [0, 0], sizes = [8, 32], strides = [1, 1]} : vector<16x32xf32> to vector<8x32xf32>
    %408 = vector.broadcast %7 : vector<1x32xf32> to vector<8x32xf32>
    %409 = arith.mulf %407, %408 : vector<8x32xf32>
    %410 = vector.extract_strided_slice %406 {offsets = [8, 0], sizes = [8, 32], strides = [1, 1]} : vector<16x32xf32> to vector<8x32xf32>
    %411 = vector.broadcast %14 : vector<1x32xf32> to vector<8x32xf32>
    %412 = arith.mulf %410, %411 : vector<8x32xf32>
    %413 = arith.addf %409, %412 : vector<8x32xf32>
    %414 = arith.truncf %413 : vector<8x32xf32> to vector<8x32xbf16>
    %c0_116 = arith.constant 0 : index
    %c0_117 = arith.constant 0 : index
    %c0_118 = arith.constant 0 : index
    %415 = vector.load %arg11[%c0_116, %c0_117, %c0_118] : memref<2x32x32xbf16, #tpu.memory_space<vmem>>, vector<1x32x32xbf16>
    %416 = vector.shape_cast %415 : vector<1x32x32xbf16> to vector<32x32xbf16>
    %cst_119 = arith.constant dense<0.000000e+00> : vector<8x32xf32>
    %417 = tpu.matmul %414, %416, %cst_119 {dimension_numbers = #tpu.dot_dimension_numbers<[1], [0], [0], [1], [0, 0, 1, 1], [], []>} : vector<8x32xbf16>, vector<32x32xbf16>, vector<8x32xf32> -> vector<8x32xf32>
    %418 = vector.extract_strided_slice %367 {offsets = [3, 0], sizes = [1, 32], strides = [1, 1]} : vector<10x64xf32> to vector<1x32xf32>
    %419 = vector.broadcast %418 : vector<1x32xf32> to vector<8x32xf32>
    %420 = arith.addf %417, %419 : vector<8x32xf32>
    %421 = arith.addf %365, %420 : vector<8x32xf32>
    %422 = vector.extract_strided_slice %367 {offsets = [5, 0], sizes = [1, 32], strides = [1, 1]} : vector<10x64xf32> to vector<1x32xf32>
    %423 = vector.extract_strided_slice %367 {offsets = [6, 0], sizes = [1, 32], strides = [1, 1]} : vector<10x64xf32> to vector<1x32xf32>
    %cst_120 = arith.constant dense<0.000000e+00> : vector<8xf32>
    %424 = vector.multi_reduction <add>, %421, %cst_120 [1] : vector<8x32xf32> to vector<8xf32>
    %425 = vector.shape_cast %424 : vector<8xf32> to vector<8x1xf32>
    %cst_121 = arith.constant 3.200000e+01 : f32
    %426 = vector.broadcast %cst_121 : f32 to vector<8x1xf32>
    %427 = arith.divf %425, %426 : vector<8x1xf32>
    %428 = vector.broadcast %427 : vector<8x1xf32> to vector<8x32xf32>
    %429 = arith.subf %421, %428 : vector<8x32xf32>
    %430 = arith.mulf %429, %429 : vector<8x32xf32>
    %cst_122 = arith.constant dense<0.000000e+00> : vector<8xf32>
    %431 = vector.multi_reduction <add>, %430, %cst_122 [1] : vector<8x32xf32> to vector<8xf32>
    %432 = vector.shape_cast %431 : vector<8xf32> to vector<8x1xf32>
    %cst_123 = arith.constant 3.200000e+01 : f32
    %433 = vector.broadcast %cst_123 : f32 to vector<8x1xf32>
    %434 = arith.divf %432, %433 : vector<8x1xf32>
    %cst_124 = arith.constant 9.99999996E-13 : f32
    %435 = vector.broadcast %cst_124 : f32 to vector<8x1xf32>
    %436 = arith.addf %434, %435 : vector<8x1xf32>
    %437 = math.rsqrt %436 : vector<8x1xf32>
    %438 = vector.broadcast %437 : vector<8x1xf32> to vector<8x32xf32>
    %439 = arith.mulf %429, %438 : vector<8x32xf32>
    %440 = vector.broadcast %422 : vector<1x32xf32> to vector<8x32xf32>
    %441 = arith.mulf %439, %440 : vector<8x32xf32>
    %442 = vector.broadcast %423 : vector<1x32xf32> to vector<8x32xf32>
    %443 = arith.addf %441, %442 : vector<8x32xf32>
    %444 = arith.truncf %443 : vector<8x32xf32> to vector<8x32xbf16>
    %c0_125 = arith.constant 0 : index
    %c0_126 = arith.constant 0 : index
    %c0_127 = arith.constant 0 : index
    %445 = vector.load %arg12[%c0_125, %c0_126, %c0_127] : memref<2x32x64xbf16, #tpu.memory_space<vmem>>, vector<1x32x64xbf16>
    %446 = vector.shape_cast %445 : vector<1x32x64xbf16> to vector<32x64xbf16>
    %cst_128 = arith.constant dense<0.000000e+00> : vector<8x64xf32>
    %447 = tpu.matmul %444, %446, %cst_128 {dimension_numbers = #tpu.dot_dimension_numbers<[1], [0], [0], [1], [0, 0, 1, 1], [], []>} : vector<8x32xbf16>, vector<32x64xbf16>, vector<8x64xf32> -> vector<8x64xf32>
    %448 = vector.extract_strided_slice %367 {offsets = [9, 0], sizes = [1, 64], strides = [1, 1]} : vector<10x64xf32> to vector<1x64xf32>
    %449 = vector.broadcast %448 : vector<1x64xf32> to vector<8x64xf32>
    %450 = arith.addf %447, %449 : vector<8x64xf32>
    %451 = arith.mulf %450, %450 : vector<8x64xf32>
    %452 = arith.mulf %450, %451 : vector<8x64xf32>
    %cst_129 = arith.constant 4.471500e-02 : f32
    %453 = vector.broadcast %cst_129 : f32 to vector<8x64xf32>
    %454 = arith.mulf %453, %452 : vector<8x64xf32>
    %455 = arith.addf %450, %454 : vector<8x64xf32>
    %cst_130 = arith.constant 0.797884583 : f32
    %456 = vector.broadcast %cst_130 : f32 to vector<8x64xf32>
    %457 = arith.mulf %456, %455 : vector<8x64xf32>
    %458 = math.tanh %457 : vector<8x64xf32>
    %cst_131 = arith.constant 1.000000e+00 : f32
    %459 = vector.broadcast %cst_131 : f32 to vector<8x64xf32>
    %460 = arith.addf %459, %458 : vector<8x64xf32>
    %cst_132 = arith.constant 5.000000e-01 : f32
    %461 = vector.broadcast %cst_132 : f32 to vector<8x64xf32>
    %462 = arith.mulf %461, %460 : vector<8x64xf32>
    %463 = arith.mulf %450, %462 : vector<8x64xf32>
    %464 = arith.truncf %463 : vector<8x64xf32> to vector<8x64xbf16>
    %c0_133 = arith.constant 0 : index
    %c0_134 = arith.constant 0 : index
    %c0_135 = arith.constant 0 : index
    %465 = vector.load %arg13[%c0_133, %c0_134, %c0_135] : memref<2x64x32xbf16, #tpu.memory_space<vmem>>, vector<1x64x32xbf16>
    %466 = vector.shape_cast %465 : vector<1x64x32xbf16> to vector<64x32xbf16>
    %cst_136 = arith.constant dense<0.000000e+00> : vector<8x32xf32>
    %467 = tpu.matmul %464, %466, %cst_136 {dimension_numbers = #tpu.dot_dimension_numbers<[1], [0], [0], [1], [0, 0, 1, 1], [], []>} : vector<8x64xbf16>, vector<64x32xbf16>, vector<8x32xf32> -> vector<8x32xf32>
    %468 = vector.extract_strided_slice %367 {offsets = [4, 0], sizes = [1, 32], strides = [1, 1]} : vector<10x64xf32> to vector<1x32xf32>
    %469 = vector.broadcast %468 : vector<1x32xf32> to vector<8x32xf32>
    %470 = arith.addf %467, %469 : vector<8x32xf32>
    %471 = arith.addf %443, %470 : vector<8x32xf32>
    %472 = vector.extract_strided_slice %367 {offsets = [7, 0], sizes = [1, 32], strides = [1, 1]} : vector<10x64xf32> to vector<1x32xf32>
    %473 = vector.extract_strided_slice %367 {offsets = [8, 0], sizes = [1, 32], strides = [1, 1]} : vector<10x64xf32> to vector<1x32xf32>
    %cst_137 = arith.constant dense<0.000000e+00> : vector<8xf32>
    %474 = vector.multi_reduction <add>, %471, %cst_137 [1] : vector<8x32xf32> to vector<8xf32>
    %475 = vector.shape_cast %474 : vector<8xf32> to vector<8x1xf32>
    %cst_138 = arith.constant 3.200000e+01 : f32
    %476 = vector.broadcast %cst_138 : f32 to vector<8x1xf32>
    %477 = arith.divf %475, %476 : vector<8x1xf32>
    %478 = vector.broadcast %477 : vector<8x1xf32> to vector<8x32xf32>
    %479 = arith.subf %471, %478 : vector<8x32xf32>
    %480 = arith.mulf %479, %479 : vector<8x32xf32>
    %cst_139 = arith.constant dense<0.000000e+00> : vector<8xf32>
    %481 = vector.multi_reduction <add>, %480, %cst_139 [1] : vector<8x32xf32> to vector<8xf32>
    %482 = vector.shape_cast %481 : vector<8xf32> to vector<8x1xf32>
    %cst_140 = arith.constant 3.200000e+01 : f32
    %483 = vector.broadcast %cst_140 : f32 to vector<8x1xf32>
    %484 = arith.divf %482, %483 : vector<8x1xf32>
    %cst_141 = arith.constant 9.99999996E-13 : f32
    %485 = vector.broadcast %cst_141 : f32 to vector<8x1xf32>
    %486 = arith.addf %484, %485 : vector<8x1xf32>
    %487 = math.rsqrt %486 : vector<8x1xf32>
    %488 = vector.broadcast %487 : vector<8x1xf32> to vector<8x32xf32>
    %489 = arith.mulf %479, %488 : vector<8x32xf32>
    %490 = vector.broadcast %472 : vector<1x32xf32> to vector<8x32xf32>
    %491 = arith.mulf %489, %490 : vector<8x32xf32>
    %492 = vector.broadcast %473 : vector<1x32xf32> to vector<8x32xf32>
    %493 = arith.addf %491, %492 : vector<8x32xf32>
    %c1_142 = arith.constant 1 : index
    %c0_143 = arith.constant 0 : index
    %c0_144 = arith.constant 0 : index
    %494 = vector.load %arg14[%c1_142, %c0_143, %c0_144] : memref<2x10x64xf32, #tpu.memory_space<vmem>>, vector<1x10x64xf32>
    %495 = vector.shape_cast %494 : vector<1x10x64xf32> to vector<10x64xf32>
    %496 = arith.truncf %493 : vector<8x32xf32> to vector<8x32xbf16>
    %c1_145 = arith.constant 1 : index
    %c0_146 = arith.constant 0 : index
    %c0_147 = arith.constant 0 : index
    %497 = vector.load %arg10[%c1_145, %c0_146, %c0_147] : memref<2x32x96xbf16, #tpu.memory_space<vmem>>, vector<1x32x96xbf16>
    %498 = vector.shape_cast %497 : vector<1x32x96xbf16> to vector<32x96xbf16>
    %cst_148 = arith.constant dense<0.000000e+00> : vector<8x96xf32>
    %499 = tpu.matmul %496, %498, %cst_148 {dimension_numbers = #tpu.dot_dimension_numbers<[1], [0], [0], [1], [0, 0, 1, 1], [], []>} : vector<8x32xbf16>, vector<32x96xbf16>, vector<8x96xf32> -> vector<8x96xf32>
    %500 = vector.extract_strided_slice %499 {offsets = [0, 0], sizes = [8, 32], strides = [1, 1]} : vector<8x96xf32> to vector<8x32xf32>
    %501 = vector.extract_strided_slice %495 {offsets = [0, 0], sizes = [1, 32], strides = [1, 1]} : vector<10x64xf32> to vector<1x32xf32>
    %502 = vector.broadcast %501 : vector<1x32xf32> to vector<8x32xf32>
    %503 = arith.addf %500, %502 : vector<8x32xf32>
    %504 = vector.extract_strided_slice %499 {offsets = [0, 32], sizes = [8, 32], strides = [1, 1]} : vector<8x96xf32> to vector<8x32xf32>
    %505 = vector.extract_strided_slice %495 {offsets = [1, 0], sizes = [1, 32], strides = [1, 1]} : vector<10x64xf32> to vector<1x32xf32>
    %506 = vector.broadcast %505 : vector<1x32xf32> to vector<8x32xf32>
    %507 = arith.addf %504, %506 : vector<8x32xf32>
    %508 = vector.extract_strided_slice %499 {offsets = [0, 64], sizes = [8, 32], strides = [1, 1]} : vector<8x96xf32> to vector<8x32xf32>
    %509 = vector.extract_strided_slice %495 {offsets = [2, 0], sizes = [1, 32], strides = [1, 1]} : vector<10x64xf32> to vector<1x32xf32>
    %510 = vector.broadcast %509 : vector<1x32xf32> to vector<8x32xf32>
    %511 = arith.addf %508, %510 : vector<8x32xf32>
    %512 = vector.broadcast %16 : vector<1x32xf32> to vector<8x32xf32>
    %513 = arith.mulf %503, %512 : vector<8x32xf32>
    %514 = vector.broadcast %18 : vector<1x32xf32> to vector<8x32xf32>
    %515 = arith.mulf %503, %514 : vector<8x32xf32>
    %516 = tpu.concatenate %513, %515 in 0 : vector<8x32xf32>, vector<8x32xf32> -> vector<16x32xf32>
    %517 = arith.truncf %516 : vector<16x32xf32> to vector<16x32xbf16>
    %518 = arith.truncf %507 : vector<8x32xf32> to vector<8x32xbf16>
    %cst_149 = arith.constant dense<0.000000e+00> : vector<16x8xf32>
    %519 = tpu.matmul %517, %518, %cst_149 {dimension_numbers = #tpu.dot_dimension_numbers<[1], [1], [0], [0], [0, 0, 1, 0], [], []>} : vector<16x32xbf16>, vector<8x32xbf16>, vector<16x8xf32> -> vector<16x8xf32>
    %520 = vector.broadcast %31 : vector<1x8xf32> to vector<16x8xf32>
    %521 = arith.addf %519, %520 : vector<16x8xf32>
    %cst_150 = arith.constant dense<0xFF800000> : vector<16xf32>
    %522 = vector.multi_reduction <maximumf>, %521, %cst_150 [1] : vector<16x8xf32> to vector<16xf32>
    %523 = vector.shape_cast %522 : vector<16xf32> to vector<16x1xf32>
    %524 = vector.broadcast %523 : vector<16x1xf32> to vector<16x8xf32>
    %525 = arith.subf %521, %524 : vector<16x8xf32>
    %526 = math.exp %525 : vector<16x8xf32>
    %cst_151 = arith.constant dense<0.000000e+00> : vector<16xf32>
    %527 = vector.multi_reduction <add>, %526, %cst_151 [1] : vector<16x8xf32> to vector<16xf32>
    %528 = vector.shape_cast %527 : vector<16xf32> to vector<16x1xf32>
    %529 = tpu.reciprocal %528 {approx = true} : vector<16x1xf32> -> vector<16x1xf32>
    %530 = vector.broadcast %529 : vector<16x1xf32> to vector<16x8xf32>
    %531 = arith.mulf %526, %530 : vector<16x8xf32>
    %532 = arith.truncf %531 : vector<16x8xf32> to vector<16x8xbf16>
    %533 = arith.truncf %511 : vector<8x32xf32> to vector<8x32xbf16>
    %cst_152 = arith.constant dense<0.000000e+00> : vector<16x32xf32>
    %534 = tpu.matmul %532, %533, %cst_152 {dimension_numbers = #tpu.dot_dimension_numbers<[1], [0], [0], [1], [0, 0, 1, 1], [], []>} : vector<16x8xbf16>, vector<8x32xbf16>, vector<16x32xf32> -> vector<16x32xf32>
    %535 = vector.extract_strided_slice %534 {offsets = [0, 0], sizes = [8, 32], strides = [1, 1]} : vector<16x32xf32> to vector<8x32xf32>
    %536 = vector.broadcast %7 : vector<1x32xf32> to vector<8x32xf32>
    %537 = arith.mulf %535, %536 : vector<8x32xf32>
    %538 = vector.extract_strided_slice %534 {offsets = [8, 0], sizes = [8, 32], strides = [1, 1]} : vector<16x32xf32> to vector<8x32xf32>
    %539 = vector.broadcast %14 : vector<1x32xf32> to vector<8x32xf32>
    %540 = arith.mulf %538, %539 : vector<8x32xf32>
    %541 = arith.addf %537, %540 : vector<8x32xf32>
    %542 = arith.truncf %541 : vector<8x32xf32> to vector<8x32xbf16>
    %c1_153 = arith.constant 1 : index
    %c0_154 = arith.constant 0 : index
    %c0_155 = arith.constant 0 : index
    %543 = vector.load %arg11[%c1_153, %c0_154, %c0_155] : memref<2x32x32xbf16, #tpu.memory_space<vmem>>, vector<1x32x32xbf16>
    %544 = vector.shape_cast %543 : vector<1x32x32xbf16> to vector<32x32xbf16>
    %cst_156 = arith.constant dense<0.000000e+00> : vector<8x32xf32>
    %545 = tpu.matmul %542, %544, %cst_156 {dimension_numbers = #tpu.dot_dimension_numbers<[1], [0], [0], [1], [0, 0, 1, 1], [], []>} : vector<8x32xbf16>, vector<32x32xbf16>, vector<8x32xf32> -> vector<8x32xf32>
    %546 = vector.extract_strided_slice %495 {offsets = [3, 0], sizes = [1, 32], strides = [1, 1]} : vector<10x64xf32> to vector<1x32xf32>
    %547 = vector.broadcast %546 : vector<1x32xf32> to vector<8x32xf32>
    %548 = arith.addf %545, %547 : vector<8x32xf32>
    %549 = arith.addf %493, %548 : vector<8x32xf32>
    %550 = vector.extract_strided_slice %495 {offsets = [5, 0], sizes = [1, 32], strides = [1, 1]} : vector<10x64xf32> to vector<1x32xf32>
    %551 = vector.extract_strided_slice %495 {offsets = [6, 0], sizes = [1, 32], strides = [1, 1]} : vector<10x64xf32> to vector<1x32xf32>
    %cst_157 = arith.constant dense<0.000000e+00> : vector<8xf32>
    %552 = vector.multi_reduction <add>, %549, %cst_157 [1] : vector<8x32xf32> to vector<8xf32>
    %553 = vector.shape_cast %552 : vector<8xf32> to vector<8x1xf32>
    %cst_158 = arith.constant 3.200000e+01 : f32
    %554 = vector.broadcast %cst_158 : f32 to vector<8x1xf32>
    %555 = arith.divf %553, %554 : vector<8x1xf32>
    %556 = vector.broadcast %555 : vector<8x1xf32> to vector<8x32xf32>
    %557 = arith.subf %549, %556 : vector<8x32xf32>
    %558 = arith.mulf %557, %557 : vector<8x32xf32>
    %cst_159 = arith.constant dense<0.000000e+00> : vector<8xf32>
    %559 = vector.multi_reduction <add>, %558, %cst_159 [1] : vector<8x32xf32> to vector<8xf32>
    %560 = vector.shape_cast %559 : vector<8xf32> to vector<8x1xf32>
    %cst_160 = arith.constant 3.200000e+01 : f32
    %561 = vector.broadcast %cst_160 : f32 to vector<8x1xf32>
    %562 = arith.divf %560, %561 : vector<8x1xf32>
    %cst_161 = arith.constant 9.99999996E-13 : f32
    %563 = vector.broadcast %cst_161 : f32 to vector<8x1xf32>
    %564 = arith.addf %562, %563 : vector<8x1xf32>
    %565 = math.rsqrt %564 : vector<8x1xf32>
    %566 = vector.broadcast %565 : vector<8x1xf32> to vector<8x32xf32>
    %567 = arith.mulf %557, %566 : vector<8x32xf32>
    %568 = vector.broadcast %550 : vector<1x32xf32> to vector<8x32xf32>
    %569 = arith.mulf %567, %568 : vector<8x32xf32>
    %570 = vector.broadcast %551 : vector<1x32xf32> to vector<8x32xf32>
    %571 = arith.addf %569, %570 : vector<8x32xf32>
    %572 = arith.truncf %571 : vector<8x32xf32> to vector<8x32xbf16>
    %c1_162 = arith.constant 1 : index
    %c0_163 = arith.constant 0 : index
    %c0_164 = arith.constant 0 : index
    %573 = vector.load %arg12[%c1_162, %c0_163, %c0_164] : memref<2x32x64xbf16, #tpu.memory_space<vmem>>, vector<1x32x64xbf16>
    %574 = vector.shape_cast %573 : vector<1x32x64xbf16> to vector<32x64xbf16>
    %cst_165 = arith.constant dense<0.000000e+00> : vector<8x64xf32>
    %575 = tpu.matmul %572, %574, %cst_165 {dimension_numbers = #tpu.dot_dimension_numbers<[1], [0], [0], [1], [0, 0, 1, 1], [], []>} : vector<8x32xbf16>, vector<32x64xbf16>, vector<8x64xf32> -> vector<8x64xf32>
    %576 = vector.extract_strided_slice %495 {offsets = [9, 0], sizes = [1, 64], strides = [1, 1]} : vector<10x64xf32> to vector<1x64xf32>
    %577 = vector.broadcast %576 : vector<1x64xf32> to vector<8x64xf32>
    %578 = arith.addf %575, %577 : vector<8x64xf32>
    %579 = arith.mulf %578, %578 : vector<8x64xf32>
    %580 = arith.mulf %578, %579 : vector<8x64xf32>
    %cst_166 = arith.constant 4.471500e-02 : f32
    %581 = vector.broadcast %cst_166 : f32 to vector<8x64xf32>
    %582 = arith.mulf %581, %580 : vector<8x64xf32>
    %583 = arith.addf %578, %582 : vector<8x64xf32>
    %cst_167 = arith.constant 0.797884583 : f32
    %584 = vector.broadcast %cst_167 : f32 to vector<8x64xf32>
    %585 = arith.mulf %584, %583 : vector<8x64xf32>
    %586 = math.tanh %585 : vector<8x64xf32>
    %cst_168 = arith.constant 1.000000e+00 : f32
    %587 = vector.broadcast %cst_168 : f32 to vector<8x64xf32>
    %588 = arith.addf %587, %586 : vector<8x64xf32>
    %cst_169 = arith.constant 5.000000e-01 : f32
    %589 = vector.broadcast %cst_169 : f32 to vector<8x64xf32>
    %590 = arith.mulf %589, %588 : vector<8x64xf32>
    %591 = arith.mulf %578, %590 : vector<8x64xf32>
    %592 = arith.truncf %591 : vector<8x64xf32> to vector<8x64xbf16>
    %c1_170 = arith.constant 1 : index
    %c0_171 = arith.constant 0 : index
    %c0_172 = arith.constant 0 : index
    %593 = vector.load %arg13[%c1_170, %c0_171, %c0_172] : memref<2x64x32xbf16, #tpu.memory_space<vmem>>, vector<1x64x32xbf16>
    %594 = vector.shape_cast %593 : vector<1x64x32xbf16> to vector<64x32xbf16>
    %cst_173 = arith.constant dense<0.000000e+00> : vector<8x32xf32>
    %595 = tpu.matmul %592, %594, %cst_173 {dimension_numbers = #tpu.dot_dimension_numbers<[1], [0], [0], [1], [0, 0, 1, 1], [], []>} : vector<8x64xbf16>, vector<64x32xbf16>, vector<8x32xf32> -> vector<8x32xf32>
    %596 = vector.extract_strided_slice %495 {offsets = [4, 0], sizes = [1, 32], strides = [1, 1]} : vector<10x64xf32> to vector<1x32xf32>
    %597 = vector.broadcast %596 : vector<1x32xf32> to vector<8x32xf32>
    %598 = arith.addf %595, %597 : vector<8x32xf32>
    %599 = arith.addf %571, %598 : vector<8x32xf32>
    %600 = vector.extract_strided_slice %495 {offsets = [7, 0], sizes = [1, 32], strides = [1, 1]} : vector<10x64xf32> to vector<1x32xf32>
    %601 = vector.extract_strided_slice %495 {offsets = [8, 0], sizes = [1, 32], strides = [1, 1]} : vector<10x64xf32> to vector<1x32xf32>
    %cst_174 = arith.constant dense<0.000000e+00> : vector<8xf32>
    %602 = vector.multi_reduction <add>, %599, %cst_174 [1] : vector<8x32xf32> to vector<8xf32>
    %603 = vector.shape_cast %602 : vector<8xf32> to vector<8x1xf32>
    %cst_175 = arith.constant 3.200000e+01 : f32
    %604 = vector.broadcast %cst_175 : f32 to vector<8x1xf32>
    %605 = arith.divf %603, %604 : vector<8x1xf32>
    %606 = vector.broadcast %605 : vector<8x1xf32> to vector<8x32xf32>
    %607 = arith.subf %599, %606 : vector<8x32xf32>
    %608 = arith.mulf %607, %607 : vector<8x32xf32>
    %cst_176 = arith.constant dense<0.000000e+00> : vector<8xf32>
    %609 = vector.multi_reduction <add>, %608, %cst_176 [1] : vector<8x32xf32> to vector<8xf32>
    %610 = vector.shape_cast %609 : vector<8xf32> to vector<8x1xf32>
    %cst_177 = arith.constant 3.200000e+01 : f32
    %611 = vector.broadcast %cst_177 : f32 to vector<8x1xf32>
    %612 = arith.divf %610, %611 : vector<8x1xf32>
    %cst_178 = arith.constant 9.99999996E-13 : f32
    %613 = vector.broadcast %cst_178 : f32 to vector<8x1xf32>
    %614 = arith.addf %612, %613 : vector<8x1xf32>
    %615 = math.rsqrt %614 : vector<8x1xf32>
    %616 = vector.broadcast %615 : vector<8x1xf32> to vector<8x32xf32>
    %617 = arith.mulf %607, %616 : vector<8x32xf32>
    %618 = vector.broadcast %600 : vector<1x32xf32> to vector<8x32xf32>
    %619 = arith.mulf %617, %618 : vector<8x32xf32>
    %620 = vector.broadcast %601 : vector<1x32xf32> to vector<8x32xf32>
    %621 = arith.addf %619, %620 : vector<8x32xf32>
    %622 = vector.extract_strided_slice %621 {offsets = [0, 0], sizes = [1, 32], strides = [1, 1]} : vector<8x32xf32> to vector<1x32xf32>
    %c0_179 = arith.constant 0 : index
    %c0_180 = arith.constant 0 : index
    %c0_181 = arith.constant 0 : index
    %623 = vector.load %arg15[%c0_179, %c0_180, %c0_181] : memref<1x1x32xf32, #tpu.memory_space<vmem>>, vector<1x1x32xf32>
    %624 = vector.shape_cast %623 : vector<1x1x32xf32> to vector<1x32xf32>
    %625 = vector.shape_cast %622 : vector<1x32xf32> to vector<1x1x32xf32>
    tpu.vector_store %arg15[%c0_179, %c0_180, %c0_181], %625 {strides = array<i32>} : memref<1x1x32xf32, #tpu.memory_space<vmem>>, vector<1x1x32xf32>,
    return
  }
  func.func @transform_0(%arg0: i32) -> (i32, i32, i32) {
    %c0_i32 = arith.constant 0 : i32
    %c0_i32_0 = arith.constant 0 : i32
    %c0_i32_1 = arith.constant 0 : i32
    return %arg0, %c0_i32, %c0_i32_0 : i32, i32, i32
  }
  func.func @transform_1(%arg0: i32) -> (i32, i32, i32) {
    %c0_i32 = arith.constant 0 : i32
    %c0_i32_0 = arith.constant 0 : i32
    %c0_i32_1 = arith.constant 0 : i32
    return %arg0, %c0_i32, %c0_i32_0 : i32, i32, i32
  }
  func.func @transform_2(%arg0: i32) -> (i32, i32) {
    %c0_i32 = arith.constant 0 : i32
    %c0_i32_0 = arith.constant 0 : i32
    %c0_i32_1 = arith.constant 0 : i32
    return %c0_i32, %c0_i32_0 : i32, i32
  }
  func.func @transform_3(%arg0: i32) -> (i32, i32, i32) {
    %c0_i32 = arith.constant 0 : i32
    %c0_i32_0 = arith.constant 0 : i32
    %c0_i32_1 = arith.constant 0 : i32
    %c0_i32_2 = arith.constant 0 : i32
    return %c0_i32, %c0_i32_0, %c0_i32_1 : i32, i32, i32
  }
  func.func @transform_4(%arg0: i32) -> (i32, i32, i32) {
    %c0_i32 = arith.constant 0 : i32
    %c0_i32_0 = arith.constant 0 : i32
    %c0_i32_1 = arith.constant 0 : i32
    %c0_i32_2 = arith.constant 0 : i32
    return %c0_i32, %c0_i32_0, %c0_i32_1 : i32, i32, i32
  }
  func.func @transform_5(%arg0: i32) -> (i32, i32, i32) {
    %c0_i32 = arith.constant 0 : i32
    %c0_i32_0 = arith.constant 0 : i32
    %c0_i32_1 = arith.constant 0 : i32
    %c0_i32_2 = arith.constant 0 : i32
    return %c0_i32, %c0_i32_0, %c0_i32_1 : i32, i32, i32
  }
  func.func @transform_6(%arg0: i32) -> (i32, i32, i32) {
    %c0_i32 = arith.constant 0 : i32
    %c0_i32_0 = arith.constant 0 : i32
    %c0_i32_1 = arith.constant 0 : i32
    %c0_i32_2 = arith.constant 0 : i32
    return %c0_i32, %c0_i32_0, %c0_i32_1 : i32, i32, i32
  }
  func.func @transform_7(%arg0: i32) -> (i32, i32, i32) {
    %c0_i32 = arith.constant 0 : i32
    %c0_i32_0 = arith.constant 0 : i32
    %c0_i32_1 = arith.constant 0 : i32
    %c0_i32_2 = arith.constant 0 : i32
    return %c0_i32, %c0_i32_0, %c0_i32_1 : i32, i32, i32
  }
  func.func @transform_8(%arg0: i32) -> (i32, i32) {
    %c0_i32 = arith.constant 0 : i32
    %c0_i32_0 = arith.constant 0 : i32
    %c0_i32_1 = arith.constant 0 : i32
    return %c0_i32, %c0_i32_0 : i32, i32
  }
  func.func @transform_9(%arg0: i32) -> (i32, i32, i32) {
    %c0_i32 = arith.constant 0 : i32
    %c0_i32_0 = arith.constant 0 : i32
    %c0_i32_1 = arith.constant 0 : i32
    %c0_i32_2 = arith.constant 0 : i32
    return %c0_i32, %c0_i32_0, %c0_i32_1 : i32, i32, i32
  }
  func.func @transform_10(%arg0: i32) -> (i32, i32, i32) {
    %c0_i32 = arith.constant 0 : i32
    %c0_i32_0 = arith.constant 0 : i32
    %c0_i32_1 = arith.constant 0 : i32
    %c0_i32_2 = arith.constant 0 : i32
    return %c0_i32, %c0_i32_0, %c0_i32_1 : i32, i32, i32
  }
  func.func @transform_11(%arg0: i32) -> (i32, i32, i32) {
    %c0_i32 = arith.constant 0 : i32
    %c0_i32_0 = arith.constant 0 : i32
    %c0_i32_1 = arith.constant 0 : i32
    %c0_i32_2 = arith.constant 0 : i32
    return %c0_i32, %c0_i32_0, %c0_i32_1 : i32, i32, i32
  }
  func.func @transform_12(%arg0: i32) -> (i32, i32, i32) {
    %c0_i32 = arith.constant 0 : i32
    %c0_i32_0 = arith.constant 0 : i32
    %c0_i32_1 = arith.constant 0 : i32
    %c0_i32_2 = arith.constant 0 : i32
    return %c0_i32, %c0_i32_0, %c0_i32_1 : i32, i32, i32
  }
  func.func @transform_13(%arg0: i32) -> (i32, i32, i32) {
    %c0_i32 = arith.constant 0 : i32
    %c0_i32_0 = arith.constant 0 : i32
    %c0_i32_1 = arith.constant 0 : i32
    %c0_i32_2 = arith.constant 0 : i32
    return %c0_i32, %c0_i32_0, %c0_i32_1 : i32, i32, i32
  }
  func.func @transform_14(%arg0: i32) -> (i32, i32, i32) {
    %c0_i32 = arith.constant 0 : i32
    %c0_i32_0 = arith.constant 0 : i32
    %c0_i32_1 = arith.constant 0 : i32
    return %arg0, %c0_i32, %c0_i32_0 : i32, i32, i32
  }
}

</mosaic_0001>

<llo_original>
// kernel: hierarchical_forward.1
$region0: #{hierarchical_forward.1}
  #allocation0 [shape = 'u32[]', space=smem, size = 0x4, offset = 0x4, fixed_abs, tag = 'smem constant byte address 0x4 - core index']
  #allocation1 [shape = 'u32[144,128]{1,0:T(1,128)}', space=vmem, size = 0x12000, scoped, tag = 'internal scratch']
  %s0 = inlined_call_operand.vmem [shape: f32[2,16,32], index: 0, kind: input, shape index: {}]
  %s1 = inlined_call_operand.vmem [shape: f32[2,10,16], index: 1, kind: input, shape index: {}]
  %s2 = inlined_call_operand.vmem [shape: f32[14,32], index: 2, kind: input, shape index: {}]
  %s3 = inlined_call_operand.vmem [shape: bf16[2,32,96], index: 3, kind: input, shape index: {}]
  %s4 = inlined_call_operand.vmem [shape: bf16[2,32,32], index: 4, kind: input, shape index: {}]
  %s5 = inlined_call_operand.vmem [shape: bf16[2,32,64], index: 5, kind: input, shape index: {}]
  %s6 = inlined_call_operand.vmem [shape: bf16[2,64,32], index: 6, kind: input, shape index: {}]
  %s7 = inlined_call_operand.vmem [shape: f32[2,10,64], index: 7, kind: input, shape index: {}]
  %s8 = inlined_call_operand.vmem [shape: bf16[32,32], index: 8, kind: input, shape index: {}]
  %s9 = inlined_call_operand.vmem [shape: bf16[2,32,96], index: 9, kind: input, shape index: {}]
  %s10 = inlined_call_operand.vmem [shape: bf16[2,32,32], index: 10, kind: input, shape index: {}]
  %s11 = inlined_call_operand.vmem [shape: bf16[2,32,64], index: 11, kind: input, shape index: {}]
  %s12 = inlined_call_operand.vmem [shape: bf16[2,64,32], index: 12, kind: input, shape index: {}]
  %s13 = inlined_call_operand.vmem [shape: f32[2,10,64], index: 13, kind: input, shape index: {}]
  %s14 = inlined_call_operand.hbm [shape: f32[2,1,32], index: 14, kind: output, shape index: {}]
  %s15 = sld [smem:[#allocation0]]
  $region89: #{hierarchical_forward.1} parent=0
    _
  %s17 = ssub.s32 1, %s15
  %s18 = scalar_select 0, %s17, %s15
  $region1: #{hierarchical_forward.1} parent=0
    #allocation2 [shape = 'u8[1024]{0}', space=vmem, size = 0x400, scoped, tag = 'output window, operand 0']
    #allocation3 [shape = 's32[2]{0}', space=sflag, size = 0x8, scoped, tag = 'scoped memory for hierarchical_forward.1']
    %19 = vsyncpa [#allocation3], 0
    %s20 = scalar_lea.sflag [#allocation3], 1
    %21 = vsyncpa %s20, 0
    loop: start=0, step=1, limit=4
    $region2: #{hierarchical_forward.1} parent=1 // loop_pre_header
      _
    $region3: #{hierarchical_forward.1} parent=1 // loop_header
      %s23 = sphi 0, %s27
      %p24 = scmp.ge.s32.totalorder %s23, 4
      %s33 = sphi 0, %s35
      %s36 = sphi 0, %s33
      %s37 = sphi 0, %s36
      %s53 = sphi 0, %s37
      %s59 = sphi 0, %s61
      %s62 = sphi 0, %s59
      %s63 = sphi 0, %s62
      %s79 = sphi 0, %s63
      %s83 = sphi 0, %s83
      %s85 = sphi 0, %s83
      %s86 = sphi 0, %s85
      %s100 = sphi 0, %s86
      %s104 = sphi 0, %s104
      %s106 = sphi 0, %s104
      %s107 = sphi 0, %s106
      %s121 = sphi 0, %s107
      %s125 = sphi 0, %s125
      %s127 = sphi 0, %s125
      %s128 = sphi 0, %s127
      %s142 = sphi 0, %s128
      %s146 = sphi 0, %s146
      %s148 = sphi 0, %s146
      %s149 = sphi 0, %s148
      %s163 = sphi 0, %s149
      %s167 = sphi 0, %s167
      %s169 = sphi 0, %s167
      %s170 = sphi 0, %s169
      %s184 = sphi 0, %s170
      %s188 = sphi 0, %s188
      %s190 = sphi 0, %s188
      %s191 = sphi 0, %s190
      %s205 = sphi 0, %s191
      %s209 = sphi 0, %s209
      %s211 = sphi 0, %s209
      %s212 = sphi 0, %s211
      %s226 = sphi 0, %s212
      %s230 = sphi 0, %s230
      %s232 = sphi 0, %s230
      %s233 = sphi 0, %s232
      %s247 = sphi 0, %s233
      %s251 = sphi 0, %s251
      %s253 = sphi 0, %s251
      %s254 = sphi 0, %s253
      %s268 = sphi 0, %s254
      %s272 = sphi 0, %s272
      %s274 = sphi 0, %s272
      %s275 = sphi 0, %s274
      %s289 = sphi 0, %s275
      %s293 = sphi 0, %s293
      %s295 = sphi 0, %s293
      %s296 = sphi 0, %s295
      %s310 = sphi 0, %s296
      %s314 = sphi 0, %s314
      %s316 = sphi 0, %s314
      %s317 = sphi 0, %s316
      %s331 = sphi 0, %s317
      %s337 = sphi 0, %s339
      %s340 = sphi 0, %s337
      %s341 = sphi 0, %s340
      %s357 = sphi 0, %s341
    $region4: #{hierarchical_forward.1} parent=1 // loop_header_branch
      %26 = sbr.rel (%p24) target = $region8
    $region5: #{hierarchical_forward.1} parent=1 // loop_body
      %s28 = ssub.s32 %s23, 1
      %s29 = ssub.s32 %s23, 2
      %s30 = sadd.s32 %s23, 1
      %s31 = ssub.s32 %s23, %s30
      %p32 = scmp.eq.s32.totalorder %s31, 0
      %s34 = sadd.s32 %s33, 1
      %s35 = scalar_select %p32, %s33, %s34
      %p38 = pneg %p32
      %p39 = scmp.eq.s32.totalorder %s23, 1
      %p40 = por %p38, %p39
      %p41 = scmp.ne.s32.totalorder %s33, %s36
      %p42 = scmp.eq.s32.totalorder %s23, 0
      %p43 = por %p41, %p42
      %p44 = scmp.ne.s32.totalorder %s33, %s36
      %p45 = scmp.eq.s32.totalorder %s28, 1
      %p46 = por %p44, %p45
      %p47 = scmp.ne.s32.totalorder %s36, %s37
      %p48 = scmp.eq.s32.totalorder %s28, 0
      %p49 = por %p47, %p48
      %p50 = scmp.ne.s32.totalorder %s36, %s37
      %p51 = scmp.eq.s32.totalorder %s29, 1
      %p52 = por %p50, %p51
      %p54 = scmp.ne.s32.totalorder %s37, %s53
      %p55 = scmp.eq.s32.totalorder %s29, 0
      %p56 = por %p54, %p55
      %s57 = ssub.s32 %s23, %s30
      %p58 = scmp.eq.s32.totalorder %s57, 0
      %s60 = sadd.s32 %s59, 1
      %s61 = scalar_select %p58, %s59, %s60
      %p64 = pneg %p58
      %p65 = scmp.eq.s32.totalorder %s23, 1
      %p66 = por %p64, %p65
      %p67 = scmp.ne.s32.totalorder %s59, %s62
      %p68 = scmp.eq.s32.totalorder %s23, 0
      %p69 = por %p67, %p68
      %p70 = scmp.ne.s32.totalorder %s59, %s62
      %p71 = scmp.eq.s32.totalorder %s28, 1
      %p72 = por %p70, %p71
      %p73 = scmp.ne.s32.totalorder %s62, %s63
      %p74 = scmp.eq.s32.totalorder %s28, 0
      %p75 = por %p73, %p74
      %p76 = scmp.ne.s32.totalorder %s62, %s63
      %p77 = scmp.eq.s32.totalorder %s29, 1
      %p78 = por %p76, %p77
      %p80 = scmp.ne.s32.totalorder %s63, %s79
      %p81 = scmp.eq.s32.totalorder %s29, 0
      %p82 = por %p80, %p81
      %s84 = sadd.s32 %s83, 1
      %p87 = scmp.eq.s32.totalorder %s23, 1
      %p88 = scmp.ne.s32.totalorder %s83, %s85
      %p89 = scmp.eq.s32.totalorder %s23, 0
      %p90 = por %p88, %p89
      %p91 = scmp.ne.s32.totalorder %s83, %s85
      %p92 = scmp.eq.s32.totalorder %s28, 1
      %p93 = por %p91, %p92
      %p94 = scmp.ne.s32.totalorder %s85, %s86
      %p95 = scmp.eq.s32.totalorder %s28, 0
      %p96 = por %p94, %p95
      %p97 = scmp.ne.s32.totalorder %s85, %s86
      %p98 = scmp.eq.s32.totalorder %s29, 1
      %p99 = por %p97, %p98
      %p101 = scmp.ne.s32.totalorder %s86, %s100
      %p102 = scmp.eq.s32.totalorder %s29, 0
      %p103 = por %p101, %p102
      %s105 = sadd.s32 %s104, 1
      %p108 = scmp.eq.s32.totalorder %s23, 1
      %p109 = scmp.ne.s32.totalorder %s104, %s106
      %p110 = scmp.eq.s32.totalorder %s23, 0
      %p111 = por %p109, %p110
      %p112 = scmp.ne.s32.totalorder %s104, %s106
      %p113 = scmp.eq.s32.totalorder %s28, 1
      %p114 = por %p112, %p113
      %p115 = scmp.ne.s32.totalorder %s106, %s107
      %p116 = scmp.eq.s32.totalorder %s28, 0
      %p117 = por %p115, %p116
      %p118 = scmp.ne.s32.totalorder %s106, %s107
      %p119 = scmp.eq.s32.totalorder %s29, 1
      %p120 = por %p118, %p119
      %p122 = scmp.ne.s32.totalorder %s107, %s121
      %p123 = scmp.eq.s32.totalorder %s29, 0
      %p124 = por %p122, %p123
      %s126 = sadd.s32 %s125, 1
      %p129 = scmp.eq.s32.totalorder %s23, 1
      %p130 = scmp.ne.s32.totalorder %s125, %s127
      %p131 = scmp.eq.s32.totalorder %s23, 0
      %p132 = por %p130, %p131
      %p133 = scmp.ne.s32.totalorder %s125, %s127
      %p134 = scmp.eq.s32.totalorder %s28, 1
      %p135 = por %p133, %p134
      %p136 = scmp.ne.s32.totalorder %s127, %s128
      %p137 = scmp.eq.s32.totalorder %s28, 0
      %p138 = por %p136, %p137
      %p139 = scmp.ne.s32.totalorder %s127, %s128
      %p140 = scmp.eq.s32.totalorder %s29, 1
      %p141 = por %p139, %p140
      %p143 = scmp.ne.s32.totalorder %s128, %s142
      %p144 = scmp.eq.s32.totalorder %s29, 0
      %p145 = por %p143, %p144
      %s147 = sadd.s32 %s146, 1
      %p150 = scmp.eq.s32.totalorder %s23, 1
      %p151 = scmp.ne.s32.totalorder %s146, %s148
      %p152 = scmp.eq.s32.totalorder %s23, 0
      %p153 = por %p151, %p152
      %p154 = scmp.ne.s32.totalorder %s146, %s148
      %p155 = scmp.eq.s32.totalorder %s28, 1
      %p156 = por %p154, %p155
      %p157 = scmp.ne.s32.totalorder %s148, %s149
      %p158 = scmp.eq.s32.totalorder %s28, 0
      %p159 = por %p157, %p158
      %p160 = scmp.ne.s32.totalorder %s148, %s149
      %p161 = scmp.eq.s32.totalorder %s29, 1
      %p162 = por %p160, %p161
      %p164 = scmp.ne.s32.totalorder %s149, %s163
      %p165 = scmp.eq.s32.totalorder %s29, 0
      %p166 = por %p164, %p165
      %s168 = sadd.s32 %s167, 1
      %p171 = scmp.eq.s32.totalorder %s23, 1
      %p172 = scmp.ne.s32.totalorder %s167, %s169
      %p173 = scmp.eq.s32.totalorder %s23, 0
      %p174 = por %p172, %p173
      %p175 = scmp.ne.s32.totalorder %s167, %s169
      %p176 = scmp.eq.s32.totalorder %s28, 1
      %p177 = por %p175, %p176
      %p178 = scmp.ne.s32.totalorder %s169, %s170
      %p179 = scmp.eq.s32.totalorder %s28, 0
      %p180 = por %p178, %p179
      %p181 = scmp.ne.s32.totalorder %s169, %s170
      %p182 = scmp.eq.s32.totalorder %s29, 1
      %p183 = por %p181, %p182
      %p185 = scmp.ne.s32.totalorder %s170, %s184
      %p186 = scmp.eq.s32.totalorder %s29, 0
      %p187 = por %p185, %p186
      %s189 = sadd.s32 %s188, 1
      %p192 = scmp.eq.s32.totalorder %s23, 1
      %p193 = scmp.ne.s32.totalorder %s188, %s190
      %p194 = scmp.eq.s32.totalorder %s23, 0
      %p195 = por %p193, %p194
      %p196 = scmp.ne.s32.totalorder %s188, %s190
      %p197 = scmp.eq.s32.totalorder %s28, 1
      %p198 = por %p196, %p197
      %p199 = scmp.ne.s32.totalorder %s190, %s191
      %p200 = scmp.eq.s32.totalorder %s28, 0
      %p201 = por %p199, %p200
      %p202 = scmp.ne.s32.totalorder %s190, %s191
      %p203 = scmp.eq.s32.totalorder %s29, 1
      %p204 = por %p202, %p203
      %p206 = scmp.ne.s32.totalorder %s191, %s205
      %p207 = scmp.eq.s32.totalorder %s29, 0
      %p208 = por %p206, %p207
      %s210 = sadd.s32 %s209, 1
      %p213 = scmp.eq.s32.totalorder %s23, 1
      %p214 = scmp.ne.s32.totalorder %s209, %s211
      %p215 = scmp.eq.s32.totalorder %s23, 0
      %p216 = por %p214, %p215
      %p217 = scmp.ne.s32.totalorder %s209, %s211
      %p218 = scmp.eq.s32.totalorder %s28, 1
      %p219 = por %p217, %p218
      %p220 = scmp.ne.s32.totalorder %s211, %s212
      %p221 = scmp.eq.s32.totalorder %s28, 0
      %p222 = por %p220, %p221
      %p223 = scmp.ne.s32.totalorder %s211, %s212
      %p224 = scmp.eq.s32.totalorder %s29, 1
      %p225 = por %p223, %p224
      %p227 = scmp.ne.s32.totalorder %s212, %s226
      %p228 = scmp.eq.s32.totalorder %s29, 0
      %p229 = por %p227, %p228
      %s231 = sadd.s32 %s230, 1
      %p234 = scmp.eq.s32.totalorder %s23, 1
      %p235 = scmp.ne.s32.totalorder %s230, %s232
      %p236 = scmp.eq.s32.totalorder %s23, 0
      %p237 = por %p235, %p236
      %p238 = scmp.ne.s32.totalorder %s230, %s232
      %p239 = scmp.eq.s32.totalorder %s28, 1
      %p240 = por %p238, %p239
      %p241 = scmp.ne.s32.totalorder %s232, %s233
      %p242 = scmp.eq.s32.totalorder %s28, 0
      %p243 = por %p241, %p242
      %p244 = scmp.ne.s32.totalorder %s232, %s233
      %p245 = scmp.eq.s32.totalorder %s29, 1
      %p246 = por %p244, %p245
      %p248 = scmp.ne.s32.totalorder %s233, %s247
      %p249 = scmp.eq.s32.totalorder %s29, 0
      %p250 = por %p248, %p249
      %s252 = sadd.s32 %s251, 1
      %p255 = scmp.eq.s32.totalorder %s23, 1
      %p256 = scmp.ne.s32.totalorder %s251, %s253
      %p257 = scmp.eq.s32.totalorder %s23, 0
      %p258 = por %p256, %p257
      %p259 = scmp.ne.s32.totalorder %s251, %s253
      %p260 = scmp.eq.s32.totalorder %s28, 1
      %p261 = por %p259, %p260
      %p262 = scmp.ne.s32.totalorder %s253, %s254
      %p263 = scmp.eq.s32.totalorder %s28, 0
      %p264 = por %p262, %p263
      %p265 = scmp.ne.s32.totalorder %s253, %s254
      %p266 = scmp.eq.s32.totalorder %s29, 1
      %p267 = por %p265, %p266
      %p269 = scmp.ne.s32.totalorder %s254, %s268
      %p270 = scmp.eq.s32.totalorder %s29, 0
      %p271 = por %p269, %p270
      %s273 = sadd.s32 %s272, 1
      %p276 = scmp.eq.s32.totalorder %s23, 1
      %p277 = scmp.ne.s32.totalorder %s272, %s274
      %p278 = scmp.eq.s32.totalorder %s23, 0
      %p279 = por %p277, %p278
      %p280 = scmp.ne.s32.totalorder %s272, %s274
      %p281 = scmp.eq.s32.totalorder %s28, 1
      %p282 = por %p280, %p281
      %p283 = scmp.ne.s32.totalorder %s274, %s275
      %p284 = scmp.eq.s32.totalorder %s28, 0
      %p285 = por %p283, %p284
      %p286 = scmp.ne.s32.totalorder %s274, %s275
      %p287 = scmp.eq.s32.totalorder %s29, 1
      %p288 = por %p286, %p287
      %p290 = scmp.ne.s32.totalorder %s275, %s289
      %p291 = scmp.eq.s32.totalorder %s29, 0
      %p292 = por %p290, %p291
      %s294 = sadd.s32 %s293, 1
      %p297 = scmp.eq.s32.totalorder %s23, 1
      %p298 = scmp.ne.s32.totalorder %s293, %s295
      %p299 = scmp.eq.s32.totalorder %s23, 0
      %p300 = por %p298, %p299
      %p301 = scmp.ne.s32.totalorder %s293, %s295
      %p302 = scmp.eq.s32.totalorder %s28, 1
      %p303 = por %p301, %p302
      %p304 = scmp.ne.s32.totalorder %s295, %s296
      %p305 = scmp.eq.s32.totalorder %s28, 0
      %p306 = por %p304, %p305
      %p307 = scmp.ne.s32.totalorder %s295, %s296
      %p308 = scmp.eq.s32.totalorder %s29, 1
      %p309 = por %p307, %p308
      %p311 = scmp.ne.s32.totalorder %s296, %s310
      %p312 = scmp.eq.s32.totalorder %s29, 0
      %p313 = por %p311, %p312
      %s315 = sadd.s32 %s314, 1
      %p318 = scmp.eq.s32.totalorder %s23, 1
      %p319 = scmp.ne.s32.totalorder %s314, %s316
      %p320 = scmp.eq.s32.totalorder %s23, 0
      %p321 = por %p319, %p320
      %p322 = scmp.ne.s32.totalorder %s314, %s316
      %p323 = scmp.eq.s32.totalorder %s28, 1
      %p324 = por %p322, %p323
      %p325 = scmp.ne.s32.totalorder %s316, %s317
      %p326 = scmp.eq.s32.totalorder %s28, 0
      %p327 = por %p325, %p326
      %p328 = scmp.ne.s32.totalorder %s316, %s317
      %p329 = scmp.eq.s32.totalorder %s29, 1
      %p330 = por %p328, %p329
      %p332 = scmp.ne.s32.totalorder %s317, %s331
      %p333 = scmp.eq.s32.totalorder %s29, 0
      %p334 = por %p332, %p333
      %s335 = ssub.s32 %s23, %s30
      %p336 = scmp.eq.s32.totalorder %s335, 0
      %s338 = sadd.s32 %s337, 1
      %s339 = scalar_select %p336, %s337, %s338
      %p342 = pneg %p336
      %p343 = scmp.eq.s32.totalorder %s23, 1
      %p344 = por %p342, %p343
      %p345 = scmp.ne.s32.totalorder %s337, %s340
      %p346 = scmp.eq.s32.totalorder %s23, 0
      %p347 = por %p345, %p346
      %p348 = scmp.ne.s32.totalorder %s337, %s340
      %p349 = scmp.eq.s32.totalorder %s28, 1
      %p350 = por %p348, %p349
      %p351 = scmp.ne.s32.totalorder %s340, %s341
      %p352 = scmp.eq.s32.totalorder %s28, 0
      %p353 = por %p351, %p352
      %p354 = scmp.ne.s32.totalorder %s340, %s341
      %p355 = scmp.eq.s32.totalorder %s29, 1
      %p356 = por %p354, %p355
      %p358 = scmp.ne.s32.totalorder %s341, %s357
      %p359 = scmp.eq.s32.totalorder %s29, 0
      %p360 = por %p358, %p359
      %p361 = scmp.le.s32.totalorder 1, %s23
      %p362 = scmp.lt.s32.totalorder %s23, 3
      %p363 = pnand %p361, %p362
      %p364 = pneg %p363
      // Predicated region
      $region9: #{hierarchical_forward.1} parent=5 // pred_check
        _
      $region10: #{hierarchical_forward.1} parent=5 // pred_check_branch
        %366 = sbr.rel (%p363) target = $region12
      $region11: #{hierarchical_forward.1} parent=5 // pred_region
        %s367 = ssub.s32 %s23, 1
        // Predicated region
        $region13: #{hierarchical_forward.1} parent=11 // pred_check
          %p368 = pneg %p96
        $region14: #{hierarchical_forward.1} parent=11 // pred_check_branch
          %370 = sbr.rel (%p368) target = $region16
        $region15: #{hierarchical_forward.1} parent=11 // pred_region
          _
        $region16: #{hierarchical_forward.1} parent=11 // pred_fallthru
          _
        // Predicated region
        $region17: #{hierarchical_forward.1} parent=11 // pred_check
          %p371 = pneg %p117
        $region18: #{hierarchical_forward.1} parent=11 // pred_check_branch
          %373 = sbr.rel (%p371) target = $region20
        $region19: #{hierarchical_forward.1} parent=11 // pred_region
          _
        $region20: #{hierarchical_forward.1} parent=11 // pred_fallthru
          _
        // Predicated region
        $region21: #{hierarchical_forward.1} parent=11 // pred_check
          %p374 = pneg %p138
        $region22: #{hierarchical_forward.1} parent=11 // pred_check_branch
          %376 = sbr.rel (%p374) target = $region24
        $region23: #{hierarchical_forward.1} parent=11 // pred_region
          _
        $region24: #{hierarchical_forward.1} parent=11 // pred_fallthru
          _
        // Predicated region
        $region25: #{hierarchical_forward.1} parent=11 // pred_check
          %p377 = pneg %p159
        $region26: #{hierarchical_forward.1} parent=11 // pred_check_branch
          %379 = sbr.rel (%p377) target = $region28
        $region27: #{hierarchical_forward.1} parent=11 // pred_region
          _
        $region28: #{hierarchical_forward.1} parent=11 // pred_fallthru
          _
        // Predicated region
        $region29: #{hierarchical_forward.1} parent=11 // pred_check
          %p380 = pneg %p180
        $region30: #{hierarchical_forward.1} parent=11 // pred_check_branch
          %382 = sbr.rel (%p380) target = $region32
        $region31: #{hierarchical_forward.1} parent=11 // pred_region
          _
        $region32: #{hierarchical_forward.1} parent=11 // pred_fallthru
          _
        // Predicated region
        $region33: #{hierarchical_forward.1} parent=11 // pred_check
          %p383 = pneg %p201
        $region34: #{hierarchical_forward.1} parent=11 // pred_check_branch
          %385 = sbr.rel (%p383) target = $region36
        $region35: #{hierarchical_forward.1} parent=11 // pred_region
          _
        $region36: #{hierarchical_forward.1} parent=11 // pred_fallthru
          _
        // Predicated region
        $region37: #{hierarchical_forward.1} parent=11 // pred_check
          %p386 = pneg %p222
        $region38: #{hierarchical_forward.1} parent=11 // pred_check_branch
          %388 = sbr.rel (%p386) target = $region40
        $region39: #{hierarchical_forward.1} parent=11 // pred_region
          _
        $region40: #{hierarchical_forward.1} parent=11 // pred_fallthru
          _
        // Predicated region
        $region41: #{hierarchical_forward.1} parent=11 // pred_check
          %p389 = pneg %p243
        $region42: #{hierarchical_forward.1} parent=11 // pred_check_branch
          %391 = sbr.rel (%p389) target = $region44
        $region43: #{hierarchical_forward.1} parent=11 // pred_region
          _
        $region44: #{hierarchical_forward.1} parent=11 // pred_fallthru
          _
        // Predicated region
        $region45: #{hierarchical_forward.1} parent=11 // pred_check
          %p392 = pneg %p264
        $region46: #{hierarchical_forward.1} parent=11 // pred_check_branch
          %394 = sbr.rel (%p392) target = $region48
        $region47: #{hierarchical_forward.1} parent=11 // pred_region
          _
        $region48: #{hierarchical_forward.1} parent=11 // pred_fallthru
          _
        // Predicated region
        $region49: #{hierarchical_forward.1} parent=11 // pred_check
          %p395 = pneg %p285
        $region50: #{hierarchical_forward.1} parent=11 // pred_check_branch
          %397 = sbr.rel (%p395) target = $region52
        $region51: #{hierarchical_forward.1} parent=11 // pred_region
          _
        $region52: #{hierarchical_forward.1} parent=11 // pred_fallthru
          _
        // Predicated region
        $region53: #{hierarchical_forward.1} parent=11 // pred_check
          %p398 = pneg %p306
        $region54: #{hierarchical_forward.1} parent=11 // pred_check_branch
          %400 = sbr.rel (%p398) target = $region56
        $region55: #{hierarchical_forward.1} parent=11 // pred_region
          _
        $region56: #{hierarchical_forward.1} parent=11 // pred_fallthru
          _
        // Predicated region
        $region57: #{hierarchical_forward.1} parent=11 // pred_check
          %p401 = pneg %p327
        $region58: #{hierarchical_forward.1} parent=11 // pred_check_branch
          %403 = sbr.rel (%p401) target = $region60
        $region59: #{hierarchical_forward.1} parent=11 // pred_region
          _
        $region60: #{hierarchical_forward.1} parent=11 // pred_fallthru
          _
      $region12: #{hierarchical_forward.1} parent=5 // pred_fallthru
        _
      %p404 = scmp.lt.s32.totalorder %s23, 2
      // Predicated region
      $region61: #{hierarchical_forward.1} parent=5 // pred_check
        %p405 = pneg %p404
      $region62: #{hierarchical_forward.1} parent=5 // pred_check_branch
        %407 = sbr.rel (%p405) target = $region64
      $region63: #{hierarchical_forward.1} parent=5 // pred_region
        // Predicated region
        $region65: #{hierarchical_forward.1} parent=63 // pred_check
          %p408 = pneg %p43
        $region66: #{hierarchical_forward.1} parent=63 // pred_check_branch
          %410 = sbr.rel (%p408) target = $region68
        $region67: #{hierarchical_forward.1} parent=63 // pred_region
          %p411 = scmp.lt.s32.totalorder %s23, 1
          %s412 = scalar_select %p411, %s23, 1
          %s413 = smul.addr %s412, 2
          %s414 = smul.addr %s413, 8
          %s415 = scalar_lea.vmem %s0, %s414
        $region68: #{hierarchical_forward.1} parent=63 // pred_fallthru
          _
        // Predicated region
        $region69: #{hierarchical_forward.1} parent=63 // pred_check
          %p416 = pneg %p69
        $region70: #{hierarchical_forward.1} parent=63 // pred_check_branch
          %418 = sbr.rel (%p416) target = $region72
        $region71: #{hierarchical_forward.1} parent=63 // pred_region
          %p419 = scmp.lt.s32.totalorder %s23, 1
          %s420 = scalar_select %p419, %s23, 1
          %s421 = smul.addr %s420, 2
          %s422 = smul.addr %s421, 8
          %s423 = scalar_lea.vmem %s1, %s422
        $region72: #{hierarchical_forward.1} parent=63 // pred_fallthru
          _
      $region64: #{hierarchical_forward.1} parent=5 // pred_fallthru
        _
      %p424 = scmp.le.s32.totalorder 1, %s23
      %p425 = scmp.lt.s32.totalorder %s23, 3
      %p426 = pnand %p424, %p425
      %p427 = pneg %p426
      // Predicated region
      $region73: #{hierarchical_forward.1} parent=5 // pred_check
        _
      $region74: #{hierarchical_forward.1} parent=5 // pred_check_branch
        %429 = sbr.rel (%p426) target = $region76
      $region75: #{hierarchical_forward.1} parent=5 // pred_region
        %s430 = ssub.s32 %s23, 1
        %p431 = scmp.lt.s32.totalorder %s28, 1
        %s432 = scalar_select %p431, %s28, 1
        %s433 = smul.addr %s432, 2
        %s434 = smul.addr %s433, 8
        %s435 = scalar_lea.vmem %s0, %s434
        %p436 = pneg %p49
        %p437 = pneg %p46
        %p438 = scmp.lt.s32.totalorder %s28, 1
        %s439 = scalar_select %p438, %s28, 1
        %s440 = smul.addr %s439, 2
        %s441 = smul.addr %s440, 8
        %s442 = scalar_lea.vmem %s1, %s441
        %p443 = pneg %p75
        %p444 = pneg %p72
        %p445 = pneg %p96
        %p446 = pneg %p93
        %p447 = pneg %p117
        %p448 = pneg %p114
        %p449 = pneg %p138
        %p450 = pneg %p135
        %p451 = pneg %p159
        %p452 = pneg %p156
        %p453 = pneg %p180
        %p454 = pneg %p177
        %p455 = pneg %p201
        %p456 = pneg %p198
        %p457 = pneg %p222
        %p458 = pneg %p219
        %p459 = pneg %p243
        %p460 = pneg %p240
        %p461 = pneg %p264
        %p462 = pneg %p261
        %p463 = pneg %p285
        %p464 = pneg %p282
        %p465 = pneg %p306
        %p466 = pneg %p303
        %p467 = pneg %p327
        %p468 = pneg %p324
        %p469 = pneg %p353
        %p470 = pneg %p350
        %s471 = sand.u32 %s340, 1
        %s472 = scalar_lea.sflag [#allocation3], %s471
        %s473 = sand.u32 %s340, 1
        %s474 = scalar_lea.vmem [#allocation2], %s473
        %p475 = scmp.lt.s32.totalorder %s28, 1
        %s476 = scalar_select %p475, %s28, 1
        %s477 = smul.addr %s476, 2
        %s478 = smul.addr %s477, 8
        %s479 = scalar_lea.vmem %s0, %s478
        %p480 = scmp.lt.s32.totalorder %s28, 1
        %s481 = scalar_select %p480, %s28, 1
        %s482 = smul.addr %s481, 2
        %s483 = smul.addr %s482, 8
        %s484 = scalar_lea.vmem %s1, %s483
        %v486 = vlaneseq
        %v487 = vand.u32 %v486, 127
        %vm488 = vcmp.ge.s32.totalorder %v487, 0
        %vm489 = vcmp.lt.s32.totalorder %v487, 16
        %vm490 = vmand %vm488, %vm489
        %v491 = vsel %vm490, 1, 0
        %v492 = vcvt.s32.f32 %v491
        %vm493 = vcmp.ge.s32.totalorder %v487, 16
        %vm494 = vcmp.lt.s32.totalorder %v487, 32
        %vm495 = vmand %vm493, %vm494
        %v496 = vsel %vm495, 1, 0
        %v497 = vcvt.s32.f32 %v496
        %v498 = vmul.f32 %v492, 0.25
        %v499 = vmul.f32 %v497, 0.25
        %v500 = vld [vmem:[%s484] sm:$0xff]
        %v501 = vld [vmem:[%s484 + $0x8] sm:$0x3]
        %v502 = vsub.f32 %v501, 1.0
        %v503 = vmul.f32 %v502, 1e+09
        %v504 = vld [vmem:[%s2] sm:$0xff]
        %v505 = vld [vmem:[%s2 + $0x8] sm:$0x3f]
        %v506 = vld [vmem:[%s479] sm:$0xff]
        %v507 = vld [vmem:[%s479 + $0x8] sm:$0xff]
        %vm508 = vcmask 261120
        %v509 = vsel %vm508, %v506, 0.0
        %510 = vadd.xlane.f32.xlu0 %v509
        %v511 = vpop.xlane.xlu0 %510
        %v512 = vsel %vm508, %v507, 0.0
        %513 = vadd.xlane.f32.xlu0 %v512
        %v514 = vpop.xlane.xlu0 %513
        %v515 = vrcp.pop 32.0
        %v516 = vmul.f32 %v511, %v515
        %v517 = vmul.f32 %v514, %v515
        %v518 = vsub.f32 %v506, %v516
        %v519 = vsub.f32 %v507, %v517
        %v520 = vmul.f32 %v518, %v518
        %v521 = vmul.f32 %v519, %v519
        %v522 = vsel %vm508, %v520, 0.0
        %523 = vadd.xlane.f32.xlu0 %v522
        %v524 = vpop.xlane.xlu0 %523
        %v525 = vsel %vm508, %v521, 0.0
        %526 = vadd.xlane.f32.xlu0 %v525
        %v527 = vpop.xlane.xlu0 %526
        %v528 = vmul.f32 %v524, %v515
        %v529 = vmul.f32 %v527, %v515
        %v530 = vadd.f32 %v528, 1e-12
        %v531 = vadd.f32 %v529, 1e-12
        %v532 = vrsqrt.pop %v530
        %v533 = vrsqrt.pop %v531
        %v534 = vmul.f32 %v518, %v532
        %v535 = vmul.f32 %v519, %v533
        %v536 = vlaneseq
        %v537 = vshrl.u32 %v536, 7
        %v538 = vsub.s32 0, %v537
        %v539 = vrot.slane %v505, %v538
        %v540 = vmul.f32 %v534, %v539
        %v541 = vmul.f32 %v535, %v539
        %v542 = vlaneseq
        %v543 = vshrl.u32 %v542, 7
        %v544 = vsub.s32 1, %v543
        %v545 = vrot.slane %v505, %v544
        %v546 = vadd.f32 %v540, %v545
        %v547 = vadd.f32 %v541, %v545
        %v548 = vld [vmem:[%s7] sm:$0xff]
        %v549 = vld [vmem:[%s7 + $0x8] sm:$0x3]
        %v550 = vpack.c.bf16 %v547, %v546
        %v551 = vld [vmem:[%s3] sm:$0xf]
        %v552 = vld [vmem:[%s3 + $0x4] sm:$0xf]
        %v553 = vld [vmem:[%s3 + $0x8] sm:$0xf]
        %v554 = vld [vmem:[%s3 + $0xc] sm:$0xf]
        %v559 = vunpack.c.l.b16 %v551
        %v560 = vunpack.c.l.b16 %v552
        %v561 = vunpack.c.l.b16 %v553
        %v562 = vunpack.c.l.b16 %v554
        %v563 = vpack.c.b16 %v560, %v559
        %v564 = vpack.c.b16 %v562, %v561
        %v568 = vsel %vm508, %v550, 0
        %570 = vmatprep.subr.bf16.mxu0 0
        %571 = vmatpush1.bf16.msra.mxu0 0
        %572 = vmatprep.subr.bf16.mxu0 0
        %573 = vmatpush1.bf16.msra.mxu0 0
        %574 = vmatprep.subr.bf16.mxu0 0
        %575 = vmatpush1.bf16.msra.mxu0 0
        %576 = vmatprep.subr.bf16.mxu0 0
        %577 = vmatpush1.bf16.msra.mxu0 0
        %578 = vmatprep.subr.bf16.mxu0 0
        %579 = vmatpush1.bf16.msra.mxu0 0
        %580 = vmatprep.subr.bf16.mxu0 0
        %581 = vmatpush1.bf16.msra.mxu0 0
        %582 = vmatprep.subr.bf16.mxu0 0
        %583 = vmatpush1.bf16.msra.mxu0 %v564
        %584 = vmatprep.subr.bf16.mxu0 0
        %585 = vmatpush1.bf16.msra.mxu0 %v563
        %586 = vmatprep.subr.bf16.mxu0 0
        %587 = vmatpush2.bf16.msra.mxu0 0
        %588 = vmatprep.subr.bf16.mxu0 0
        %589 = vmatpush2.bf16.msra.mxu0 0
        %590 = vmatprep.subr.bf16.mxu0 0
        %591 = vmatpush2.bf16.msra.mxu0 0
        %592 = vmatprep.subr.bf16.mxu0 0
        %593 = vmatpush2.bf16.msra.mxu0 0
        %594 = vmatprep.subr.bf16.mxu0 0
        %595 = vmatpush2.bf16.msra.mxu0 0
        %596 = vmatprep.subr.bf16.mxu0 0
        %597 = vmatpush2.bf16.msra.mxu0 0
        %598 = vmatprep.subr.bf16.mxu0 0
        %599 = vmatpush2.bf16.msra.mxu0 0
        %600 = vmatprep.subr.bf16.mxu0 0
        %601 = vmatpush2.bf16.msra.mxu0 0
        %602 = vmatprep.mubr.bf16.mxu0 0
        %603 = vmatmul.mubr.bf16.gmra.mxu0 %v568
        %v604 = vpop.f32.mrf.mxu0
        %v605 = vadd.f32 0.0, %v604
        %v606 = vpop.f32.mrf.mxu0
        %v607 = vpop.f32.mrf.mxu0
        %v608 = vadd.f32 0.0, %v607
        %v609 = vpop.f32.mrf.mxu0
        %610 = vdwg.mxu0
        %v611 = vlaneseq
        %v612 = vshrl.u32 %v611, 7
        %v613 = vsub.s32 0, %v612
        %v614 = vrot.slane %v548, %v613
        %v615 = vadd.f32 %v605, %v614
        %v616 = vadd.f32 %v608, %v614
        %v617 = vlaneseq
        %v618 = vshrl.u32 %v617, 7
        %v619 = vsub.s32 1, %v618
        %v620 = vrot.slane %v548, %v619
        %622 = vrot.lane.b32.xlu0 %v620, 32
        %v623 = vpop.permute.xlu0 %622
        %v625 = vadd.f32 %v605, %v623
        %v626 = vadd.f32 %v608, %v623
        %v627 = vlaneseq
        %v628 = vshrl.u32 %v627, 7
        %v629 = vsub.s32 2, %v628
        %v630 = vrot.slane %v548, %v629
        %632 = vrot.lane.b32.xlu0 %v630, 64
        %v633 = vpop.permute.xlu0 %632
        %v635 = vadd.f32 %v605, %v633
        %v636 = vadd.f32 %v608, %v633
        %v637 = vmul.f32 %v615, %v498
        %v638 = vmul.f32 %v616, %v498
        %v639 = vmul.f32 %v615, %v499
        %v640 = vmul.f32 %v616, %v499
        %v641 = vpack.c.bf16 %v638, %v637
        %v642 = vpack.c.bf16 %v640, %v639
        %v643 = vpack.c.bf16 %v626, %v625
        %v644 = vlaneseq
        %v645 = vshrl.u32 %v644, 7
        %v646 = vsub.s32 0, %v645
        %v647 = vrot.slane %v503, %v646
        %649 = vrot.lane.b32.xlu0 %v643, 96
        %v650 = vpop.permute.xlu0 %649
        %v652 = vsel %vm508, %v641, 0
        %v655 = vsel %vm508, %v642, 0
        %v658 = vsel %vm508, %v650, 0
        %660 = vmatprep.subr.bf16.mxu0 0
        %661 = vmatpush1.bf16.xpose.msra.mxu0 0
        %662 = vmatprep.subr.bf16.mxu0 0
        %663 = vmatpush1.bf16.xpose.msra.mxu0 0
        %664 = vmatprep.subr.bf16.mxu0 0
        %665 = vmatpush1.bf16.xpose.msra.mxu0 0
        %666 = vmatprep.subr.bf16.mxu0 0
        %667 = vmatpush1.bf16.xpose.msra.mxu0 0
        %668 = vmatprep.subr.bf16.mxu0 0
        %669 = vmatpush1.bf16.xpose.msra.mxu0 0
        %670 = vmatprep.subr.bf16.mxu0 0
        %671 = vmatpush1.bf16.xpose.msra.mxu0 0
        %672 = vmatprep.subr.bf16.mxu0 0
        %673 = vmatpush1.bf16.xpose.msra.mxu0 0
        %674 = vmatprep.subr.bf16.mxu0 0
        %675 = vmatpush1.bf16.xpose.msra.mxu0 %v658
        %676 = vmatprep.subr.bf16.mxu0 0
        %677 = vmatpush2.bf16.xpose.msra.mxu0 0
        %678 = vmatprep.subr.bf16.mxu0 0
        %679 = vmatpush2.bf16.xpose.msra.mxu0 0
        %680 = vmatprep.subr.bf16.mxu0 0
        %681 = vmatpush2.bf16.xpose.msra.mxu0 0
        %682 = vmatprep.subr.bf16.mxu0 0
        %683 = vmatpush2.bf16.xpose.msra.mxu0 0
        %684 = vmatprep.subr.bf16.mxu0 0
        %685 = vmatpush2.bf16.xpose.msra.mxu0 0
        %686 = vmatprep.subr.bf16.mxu0 0
        %687 = vmatpush2.bf16.xpose.msra.mxu0 0
        %688 = vmatprep.subr.bf16.mxu0 0
        %689 = vmatpush2.bf16.xpose.msra.mxu0 0
        %690 = vmatprep.subr.bf16.mxu0 0
        %691 = vmatpush2.bf16.xpose.msra.mxu0 0
        %692 = vmatprep.mubr.bf16.mxu0 0
        %693 = vmatmul.mubr.bf16.gmra.mxu0 %v652
        %v694 = vpop.f32.mrf.mxu0
        %v695 = vadd.f32 %v647, %v694
        %v696 = vpop.f32.mrf.mxu0
        %v697 = vpop.f32.mrf.mxu0
        %v698 = vadd.f32 %v647, %v697
        %v699 = vpop.f32.mrf.mxu0
        %700 = vmatprep.mubr.bf16.mxu0 0
        %701 = vmatmul.mubr.bf16.gmra.mxu0 %v655
        %v702 = vpop.f32.mrf.mxu0
        %v703 = vadd.f32 %v647, %v702
        %v704 = vpop.f32.mrf.mxu0
        %v705 = vpop.f32.mrf.mxu0
        %v706 = vadd.f32 %v647, %v705
        %v707 = vpop.f32.mrf.mxu0
        %708 = vdwg.mxu0
        %vm709 = vcmask 130048
        %v710 = vsel %vm709, %v695, -inf
        %711 = vmax.xlane.f32.xlu0 %v710
        %v712 = vpop.xlane.xlu0 %711
        %v713 = vsel %vm709, %v698, -inf
        %714 = vmax.xlane.f32.xlu0 %v713
        %v715 = vpop.xlane.xlu0 %714
        %v716 = vsel %vm709, %v703, -inf
        %717 = vmax.xlane.f32.xlu0 %v716
        %v718 = vpop.xlane.xlu0 %717
        %v719 = vsel %vm709, %v706, -inf
        %720 = vmax.xlane.f32.xlu0 %v719
        %v721 = vpop.xlane.xlu0 %720
        %v722 = vsub.f32 %v695, %v712
        %v723 = vsub.f32 %v698, %v715
        %v724 = vsub.f32 %v703, %v718
        %v725 = vsub.f32 %v706, %v721
        %v726 = vmul.f32 %v722, 1.442695
        %v727 = vpow.pop %v726
        %v728 = vmul.f32 %v723, 1.442695
        %v729 = vpow.pop %v728
        %v730 = vmul.f32 %v724, 1.442695
        %v731 = vpow.pop %v730
        %v732 = vmul.f32 %v725, 1.442695
        %v733 = vpow.pop %v732
        %v734 = vsel %vm709, %v727, 0.0
        %735 = vadd.xlane.f32.xlu0 %v734
        %v736 = vpop.xlane.xlu0 %735
        %v737 = vsel %vm709, %v729, 0.0
        %738 = vadd.xlane.f32.xlu0 %v737
        %v739 = vpop.xlane.xlu0 %738
        %v740 = vsel %vm709, %v731, 0.0
        %741 = vadd.xlane.f32.xlu0 %v740
        %v742 = vpop.xlane.xlu0 %741
        %v743 = vsel %vm709, %v733, 0.0
        %744 = vadd.xlane.f32.xlu0 %v743
        %v745 = vpop.xlane.xlu0 %744
        %v746 = vrcp.pop %v736
        %v747 = vrcp.pop %v739
        %v748 = vrcp.pop %v742
        %v749 = vrcp.pop %v745
        %v750 = vmul.f32 %v727, %v746
        %v751 = vmul.f32 %v729, %v747
        %v752 = vmul.f32 %v731, %v748
        %v753 = vmul.f32 %v733, %v749
        %v754 = vpack.c.bf16 %v751, %v750
        %v755 = vpack.c.bf16 %v753, %v752
        %v756 = vpack.c.bf16 %v636, %v635
        %758 = vrot.lane.b32.xlu0 %v756, 64
        %v759 = vpop.permute.xlu0 %758
        %v762 = vsel %vm709, %v754, 0
        %v765 = vsel %vm709, %v755, 0
        %767 = vmatprep.subr.bf16.mxu0 0
        %768 = vmatpush1.bf16.msra.mxu0 0
        %769 = vmatprep.subr.bf16.mxu0 0
        %770 = vmatpush1.bf16.msra.mxu0 0
        %771 = vmatprep.subr.bf16.mxu0 0
        %772 = vmatpush1.bf16.msra.mxu0 0
        %773 = vmatprep.subr.bf16.mxu0 0
        %774 = vmatpush1.bf16.msra.mxu0 0
        %775 = vmatprep.subr.bf16.mxu0 0
        %776 = vmatpush1.bf16.msra.mxu0 0
        %777 = vmatprep.subr.bf16.mxu0 0
        %778 = vmatpush1.bf16.msra.mxu0 0
        %779 = vmatprep.subr.bf16.mxu0 0
        %780 = vmatpush1.bf16.msra.mxu0 0
        %781 = vmatprep.subr.bf16.mxu0 0
        %782 = vmatpush1.bf16.msra.mxu0 %v759
        %783 = vmatprep.subr.bf16.mxu0 0
        %784 = vmatpush2.bf16.msra.mxu0 0
        %785 = vmatprep.subr.bf16.mxu0 0
        %786 = vmatpush2.bf16.msra.mxu0 0
        %787 = vmatprep.subr.bf16.mxu0 0
        %788 = vmatpush2.bf16.msra.mxu0 0
        %789 = vmatprep.subr.bf16.mxu0 0
        %790 = vmatpush2.bf16.msra.mxu0 0
        %791 = vmatprep.subr.bf16.mxu0 0
        %792 = vmatpush2.bf16.msra.mxu0 0
        %793 = vmatprep.subr.bf16.mxu0 0
        %794 = vmatpush2.bf16.msra.mxu0 0
        %795 = vmatprep.subr.bf16.mxu0 0
        %796 = vmatpush2.bf16.msra.mxu0 0
        %797 = vmatprep.subr.bf16.mxu0 0
        %798 = vmatpush2.bf16.msra.mxu0 0
        %799 = vmatprep.mubr.bf16.mxu0 0
        %800 = vmatmul.mubr.bf16.gmra.mxu0 %v762
        %v801 = vpop.f32.mrf.mxu0
        %v802 = vadd.f32 0.0, %v801
        %v803 = vpop.f32.mrf.mxu0
        %v804 = vpop.f32.mrf.mxu0
        %v805 = vadd.f32 0.0, %v804
        %v806 = vpop.f32.mrf.mxu0
        %807 = vmatprep.mubr.bf16.mxu0 0
        %808 = vmatmul.mubr.bf16.gmra.mxu0 %v765
        %v809 = vpop.f32.mrf.mxu0
        %v810 = vadd.f32 0.0, %v809
        %v811 = vpop.f32.mrf.mxu0
        %v812 = vpop.f32.mrf.mxu0
        %v813 = vadd.f32 0.0, %v812
        %v814 = vpop.f32.mrf.mxu0
        %815 = vdwg.mxu0
        %v816 = vmul.f32 %v802, %v492
        %v817 = vmul.f32 %v805, %v492
        %v818 = vmul.f32 %v810, %v497
        %v819 = vmul.f32 %v813, %v497
        %v820 = vadd.f32 %v816, %v818
        %v821 = vadd.f32 %v817, %v819
        %v822 = vpack.c.bf16 %v821, %v820
        %v823 = vld [vmem:[%s4] sm:$0xf]
        %v824 = vld [vmem:[%s4 + $0x4] sm:$0xf]
        %v825 = vld [vmem:[%s4 + $0x8] sm:$0xf]
        %v826 = vld [vmem:[%s4 + $0xc] sm:$0xf]
        %v827 = vlaneseq
        %v828 = vshrl.u32 %v827, 7
        %v829 = vsub.s32 3, %v828
        %v830 = vrot.slane %v548, %v829
        %v835 = vunpack.c.l.b16 %v823
        %v836 = vunpack.c.l.b16 %v824
        %v837 = vunpack.c.l.b16 %v825
        %v838 = vunpack.c.l.b16 %v826
        %v839 = vpack.c.b16 %v836, %v835
        %v840 = vpack.c.b16 %v838, %v837
        %v844 = vsel %vm508, %v822, 0
        %846 = vmatprep.subr.bf16.mxu0 0
        %847 = vmatpush1.bf16.msra.mxu0 0
        %848 = vmatprep.subr.bf16.mxu0 0
        %849 = vmatpush1.bf16.msra.mxu0 0
        %850 = vmatprep.subr.bf16.mxu0 0
        %851 = vmatpush1.bf16.msra.mxu0 0
        %852 = vmatprep.subr.bf16.mxu0 0
        %853 = vmatpush1.bf16.msra.mxu0 0
        %854 = vmatprep.subr.bf16.mxu0 0
        %855 = vmatpush1.bf16.msra.mxu0 0
        %856 = vmatprep.subr.bf16.mxu0 0
        %857 = vmatpush1.bf16.msra.mxu0 0
        %858 = vmatprep.subr.bf16.mxu0 0
        %859 = vmatpush1.bf16.msra.mxu0 %v840
        %860 = vmatprep.subr.bf16.mxu0 0
        %861 = vmatpush1.bf16.msra.mxu0 %v839
        %862 = vmatprep.subr.bf16.mxu0 0
        %863 = vmatpush2.bf16.msra.mxu0 0
        %864 = vmatprep.subr.bf16.mxu0 0
        %865 = vmatpush2.bf16.msra.mxu0 0
        %866 = vmatprep.subr.bf16.mxu0 0
        %867 = vmatpush2.bf16.msra.mxu0 0
        %868 = vmatprep.subr.bf16.mxu0 0
        %869 = vmatpush2.bf16.msra.mxu0 0
        %870 = vmatprep.subr.bf16.mxu0 0
        %871 = vmatpush2.bf16.msra.mxu0 0
        %872 = vmatprep.subr.bf16.mxu0 0
        %873 = vmatpush2.bf16.msra.mxu0 0
        %874 = vmatprep.subr.bf16.mxu0 0
        %875 = vmatpush2.bf16.msra.mxu0 0
        %876 = vmatprep.subr.bf16.mxu0 0
        %877 = vmatpush2.bf16.msra.mxu0 0
        %878 = vmatprep.mubr.bf16.mxu0 0
        %879 = vmatmul.mubr.bf16.gmra.mxu0 %v844
        %v880 = vpop.f32.mrf.mxu0
        %v881 = vadd.f32 %v830, %v880
        %v882 = vpop.f32.mrf.mxu0
        %v883 = vpop.f32.mrf.mxu0
        %v884 = vadd.f32 %v830, %v883
        %v885 = vpop.f32.mrf.mxu0
        %886 = vdwg.mxu0
        %v887 = vadd.f32 %v546, %v881
        %v888 = vadd.f32 %v547, %v884
        %v889 = vsel %vm508, %v887, 0.0
        %890 = vadd.xlane.f32.xlu0 %v889
        %v891 = vpop.xlane.xlu0 %890
        %v892 = vsel %vm508, %v888, 0.0
        %893 = vadd.xlane.f32.xlu0 %v892
        %v894 = vpop.xlane.xlu0 %893
        %v895 = vmul.f32 %v891, %v515
        %v896 = vmul.f32 %v894, %v515
        %v897 = vsub.f32 %v887, %v895
        %v898 = vsub.f32 %v888, %v896
        %v899 = vmul.f32 %v897, %v897
        %v900 = vmul.f32 %v898, %v898
        %v901 = vsel %vm508, %v899, 0.0
        %902 = vadd.xlane.f32.xlu0 %v901
        %v903 = vpop.xlane.xlu0 %902
        %v904 = vsel %vm508, %v900, 0.0
        %905 = vadd.xlane.f32.xlu0 %v904
        %v906 = vpop.xlane.xlu0 %905
        %v907 = vmul.f32 %v903, %v515
        %v908 = vmul.f32 %v906, %v515
        %v909 = vadd.f32 %v907, 1e-12
        %v910 = vadd.f32 %v908, 1e-12
        %v911 = vrsqrt.pop %v909
        %v912 = vrsqrt.pop %v910
        %v913 = vmul.f32 %v897, %v911
        %v914 = vmul.f32 %v898, %v912
        %v915 = vlaneseq
        %v916 = vshrl.u32 %v915, 7
        %v917 = vsub.s32 5, %v916
        %v918 = vrot.slane %v548, %v917
        %v919 = vmul.f32 %v913, %v918
        %v920 = vmul.f32 %v914, %v918
        %v921 = vlaneseq
        %v922 = vshrl.u32 %v921, 7
        %v923 = vsub.s32 6, %v922
        %v924 = vrot.slane %v548, %v923
        %v925 = vadd.f32 %v919, %v924
        %v926 = vadd.f32 %v920, %v924
        %v927 = vpack.c.bf16 %v926, %v925
        %v928 = vld [vmem:[%s5] sm:$0xf]
        %v929 = vld [vmem:[%s5 + $0x4] sm:$0xf]
        %v930 = vld [vmem:[%s5 + $0x8] sm:$0xf]
        %v931 = vld [vmem:[%s5 + $0xc] sm:$0xf]
        %v932 = vlaneseq
        %v933 = vshrl.u32 %v932, 7
        %v934 = vsub.s32 1, %v933
        %v935 = vrot.slane %v549, %v934
        %v940 = vunpack.c.l.b16 %v928
        %v941 = vunpack.c.l.b16 %v929
        %v942 = vunpack.c.l.b16 %v930
        %v943 = vunpack.c.l.b16 %v931
        %v944 = vpack.c.b16 %v941, %v940
        %v945 = vpack.c.b16 %v943, %v942
        %v949 = vsel %vm508, %v927, 0
        %951 = vmatprep.subr.bf16.mxu0 0
        %952 = vmatpush1.bf16.msra.mxu0 0
        %953 = vmatprep.subr.bf16.mxu0 0
        %954 = vmatpush1.bf16.msra.mxu0 0
        %955 = vmatprep.subr.bf16.mxu0 0
        %956 = vmatpush1.bf16.msra.mxu0 0
        %957 = vmatprep.subr.bf16.mxu0 0
        %958 = vmatpush1.bf16.msra.mxu0 0
        %959 = vmatprep.subr.bf16.mxu0 0
        %960 = vmatpush1.bf16.msra.mxu0 0
        %961 = vmatprep.subr.bf16.mxu0 0
        %962 = vmatpush1.bf16.msra.mxu0 0
        %963 = vmatprep.subr.bf16.mxu0 0
        %964 = vmatpush1.bf16.msra.mxu0 %v945
        %965 = vmatprep.subr.bf16.mxu0 0
        %966 = vmatpush1.bf16.msra.mxu0 %v944
        %967 = vmatprep.subr.bf16.mxu0 0
        %968 = vmatpush2.bf16.msra.mxu0 0
        %969 = vmatprep.subr.bf16.mxu0 0
        %970 = vmatpush2.bf16.msra.mxu0 0
        %971 = vmatprep.subr.bf16.mxu0 0
        %972 = vmatpush2.bf16.msra.mxu0 0
        %973 = vmatprep.subr.bf16.mxu0 0
        %974 = vmatpush2.bf16.msra.mxu0 0
        %975 = vmatprep.subr.bf16.mxu0 0
        %976 = vmatpush2.bf16.msra.mxu0 0
        %977 = vmatprep.subr.bf16.mxu0 0
        %978 = vmatpush2.bf16.msra.mxu0 0
        %979 = vmatprep.subr.bf16.mxu0 0
        %980 = vmatpush2.bf16.msra.mxu0 0
        %981 = vmatprep.subr.bf16.mxu0 0
        %982 = vmatpush2.bf16.msra.mxu0 0
        %983 = vmatprep.mubr.bf16.mxu0 0
        %984 = vmatmul.mubr.bf16.gmra.mxu0 %v949
        %v985 = vpop.f32.mrf.mxu0
        %v986 = vadd.f32 %v935, %v985
        %v987 = vpop.f32.mrf.mxu0
        %v988 = vpop.f32.mrf.mxu0
        %v989 = vadd.f32 %v935, %v988
        %v990 = vpop.f32.mrf.mxu0
        %991 = vdwg.mxu0
        %v992 = vmul.f32 %v986, %v986
        %v993 = vmul.f32 %v989, %v989
        %v994 = vmul.f32 %v986, %v992
        %v995 = vmul.f32 %v989, %v993
        %v996 = vmul.f32 %v994, 0.044715
        %v997 = vmul.f32 %v995, 0.044715
        %v998 = vadd.f32 %v986, %v996
        %v999 = vadd.f32 %v989, %v997
        %v1000 = vmul.f32 %v998, 0.7978846
        %v1001 = vmul.f32 %v999, 0.7978846
        %v1002 = vtanh.pop %v1000
        %v1003 = vtanh.pop %v1001
        %v1004 = vadd.f32 %v1002, 1.0
        %v1005 = vadd.f32 %v1003, 1.0
        %v1006 = vmul.f32 %v1004, 0.5
        %v1007 = vmul.f32 %v1005, 0.5
        %v1008 = vmul.f32 %v986, %v1006
        %v1009 = vmul.f32 %v989, %v1007
        %v1010 = vpack.c.bf16 %v1009, %v1008
        %v1011 = vld [vmem:[%s6] sm:$0xf]
        %v1012 = vld [vmem:[%s6 + $0x4] sm:$0xf]
        %v1013 = vld [vmem:[%s6 + $0x8] sm:$0xf]
        %v1014 = vld [vmem:[%s6 + $0xc] sm:$0xf]
        %v1015 = vld [vmem:[%s6 + $0x10] sm:$0xf]
        %v1016 = vld [vmem:[%s6 + $0x14] sm:$0xf]
        %v1017 = vld [vmem:[%s6 + $0x18] sm:$0xf]
        %v1018 = vld [vmem:[%s6 + $0x1c] sm:$0xf]
        %v1019 = vlaneseq
        %v1020 = vshrl.u32 %v1019, 7
        %v1021 = vsub.s32 4, %v1020
        %v1022 = vrot.slane %v548, %v1021
        %v1031 = vunpack.c.l.b16 %v1011
        %v1032 = vunpack.c.l.b16 %v1012
        %v1033 = vunpack.c.l.b16 %v1013
        %v1034 = vunpack.c.l.b16 %v1014
        %v1035 = vunpack.c.l.b16 %v1015
        %v1036 = vunpack.c.l.b16 %v1016
        %v1037 = vunpack.c.l.b16 %v1017
        %v1038 = vunpack.c.l.b16 %v1018
        %v1039 = vpack.c.b16 %v1032, %v1031
        %v1040 = vpack.c.b16 %v1034, %v1033
        %v1041 = vpack.c.b16 %v1036, %v1035
        %v1042 = vpack.c.b16 %v1038, %v1037
        %vm1047 = vcmask 523264
        %v1049 = vsel %vm1047, %v1010, 0
        %1051 = vmatprep.subr.bf16.mxu0 0
        %1052 = vmatpush1.bf16.msra.mxu0 0
        %1053 = vmatprep.subr.bf16.mxu0 0
        %1054 = vmatpush1.bf16.msra.mxu0 0
        %1055 = vmatprep.subr.bf16.mxu0 0
        %1056 = vmatpush1.bf16.msra.mxu0 0
        %1057 = vmatprep.subr.bf16.mxu0 0
        %1058 = vmatpush1.bf16.msra.mxu0 0
        %1059 = vmatprep.subr.bf16.mxu0 0
        %1060 = vmatpush1.bf16.msra.mxu0 %v1042
        %1061 = vmatprep.subr.bf16.mxu0 0
        %1062 = vmatpush1.bf16.msra.mxu0 %v1041
        %1063 = vmatprep.subr.bf16.mxu0 0
        %1064 = vmatpush1.bf16.msra.mxu0 %v1040
        %1065 = vmatprep.subr.bf16.mxu0 0
        %1066 = vmatpush1.bf16.msra.mxu0 %v1039
        %1067 = vmatprep.subr.bf16.mxu0 0
        %1068 = vmatpush2.bf16.msra.mxu0 0
        %1069 = vmatprep.subr.bf16.mxu0 0
        %1070 = vmatpush2.bf16.msra.mxu0 0
        %1071 = vmatprep.subr.bf16.mxu0 0
        %1072 = vmatpush2.bf16.msra.mxu0 0
        %1073 = vmatprep.subr.bf16.mxu0 0
        %1074 = vmatpush2.bf16.msra.mxu0 0
        %1075 = vmatprep.subr.bf16.mxu0 0
        %1076 = vmatpush2.bf16.msra.mxu0 0
        %1077 = vmatprep.subr.bf16.mxu0 0
        %1078 = vmatpush2.bf16.msra.mxu0 0
        %1079 = vmatprep.subr.bf16.mxu0 0
        %1080 = vmatpush2.bf16.msra.mxu0 0
        %1081 = vmatprep.subr.bf16.mxu0 0
        %1082 = vmatpush2.bf16.msra.mxu0 0
        %1083 = vmatprep.mubr.bf16.mxu0 0
        %1084 = vmatmul.mubr.bf16.gmra.mxu0 %v1049
        %v1085 = vpop.f32.mrf.mxu0
        %v1086 = vadd.f32 %v1022, %v1085
        %v1087 = vpop.f32.mrf.mxu0
        %v1088 = vpop.f32.mrf.mxu0
        %v1089 = vadd.f32 %v1022, %v1088
        %v1090 = vpop.f32.mrf.mxu0
        %1091 = vdwg.mxu0
        %v1092 = vadd.f32 %v925, %v1086
        %v1093 = vadd.f32 %v926, %v1089
        %v1094 = vsel %vm508, %v1092, 0.0
        %1095 = vadd.xlane.f32.xlu0 %v1094
        %v1096 = vpop.xlane.xlu0 %1095
        %v1097 = vsel %vm508, %v1093, 0.0
        %1098 = vadd.xlane.f32.xlu0 %v1097
        %v1099 = vpop.xlane.xlu0 %1098
        %v1100 = vmul.f32 %v1096, %v515
        %v1101 = vmul.f32 %v1099, %v515
        %v1102 = vsub.f32 %v1092, %v1100
        %v1103 = vsub.f32 %v1093, %v1101
        %v1104 = vmul.f32 %v1102, %v1102
        %v1105 = vmul.f32 %v1103, %v1103
        %v1106 = vsel %vm508, %v1104, 0.0
        %1107 = vadd.xlane.f32.xlu0 %v1106
        %v1108 = vpop.xlane.xlu0 %1107
        %v1109 = vsel %vm508, %v1105, 0.0
        %1110 = vadd.xlane.f32.xlu0 %v1109
        %v1111 = vpop.xlane.xlu0 %1110
        %v1112 = vmul.f32 %v1108, %v515
        %v1113 = vmul.f32 %v1111, %v515
        %v1114 = vadd.f32 %v1112, 1e-12
        %v1115 = vadd.f32 %v1113, 1e-12
        %v1116 = vrsqrt.pop %v1114
        %v1117 = vrsqrt.pop %v1115
        %v1118 = vmul.f32 %v1102, %v1116
        %v1119 = vmul.f32 %v1103, %v1117
        %v1120 = vlaneseq
        %v1121 = vshrl.u32 %v1120, 7
        %v1122 = vsub.s32 7, %v1121
        %v1123 = vrot.slane %v548, %v1122
        %v1124 = vmul.f32 %v1118, %v1123
        %v1125 = vmul.f32 %v1119, %v1123
        %v1126 = vlaneseq
        %v1127 = vshrl.u32 %v1126, 7
        %v1128 = vsub.s32 0, %v1127
        %v1129 = vrot.slane %v549, %v1128
        %v1130 = vadd.f32 %v1124, %v1129
        %v1131 = vadd.f32 %v1125, %v1129
        %s1132 = scalar_lea.vmem %s7, 16
        %v1133 = vld [vmem:[%s1132] sm:$0xff]
        %v1134 = vld [vmem:[%s1132 + $0x8] sm:$0x3]
        %v1135 = vpack.c.bf16 %v1131, %v1130
        %s1136 = scalar_lea.vmem %s3, 16
        %v1137 = vld [vmem:[%s1136] sm:$0xf]
        %v1138 = vld [vmem:[%s1136 + $0x4] sm:$0xf]
        %v1139 = vld [vmem:[%s1136 + $0x8] sm:$0xf]
        %v1140 = vld [vmem:[%s1136 + $0xc] sm:$0xf]
        %v1145 = vunpack.c.l.b16 %v1137
        %v1146 = vunpack.c.l.b16 %v1138
        %v1147 = vunpack.c.l.b16 %v1139
        %v1148 = vunpack.c.l.b16 %v1140
        %v1149 = vpack.c.b16 %v1146, %v1145
        %v1150 = vpack.c.b16 %v1148, %v1147
        %v1154 = vsel %vm508, %v1135, 0
        %1156 = vmatprep.subr.bf16.mxu0 0
        %1157 = vmatpush1.bf16.msra.mxu0 0
        %1158 = vmatprep.subr.bf16.mxu0 0
        %1159 = vmatpush1.bf16.msra.mxu0 0
        %1160 = vmatprep.subr.bf16.mxu0 0
        %1161 = vmatpush1.bf16.msra.mxu0 0
        %1162 = vmatprep.subr.bf16.mxu0 0
        %1163 = vmatpush1.bf16.msra.mxu0 0
        %1164 = vmatprep.subr.bf16.mxu0 0
        %1165 = vmatpush1.bf16.msra.mxu0 0
        %1166 = vmatprep.subr.bf16.mxu0 0
        %1167 = vmatpush1.bf16.msra.mxu0 0
        %1168 = vmatprep.subr.bf16.mxu0 0
        %1169 = vmatpush1.bf16.msra.mxu0 %v1150
        %1170 = vmatprep.subr.bf16.mxu0 0
        %1171 = vmatpush1.bf16.msra.mxu0 %v1149
        %1172 = vmatprep.subr.bf16.mxu0 0
        %1173 = vmatpush2.bf16.msra.mxu0 0
        %1174 = vmatprep.subr.bf16.mxu0 0
        %1175 = vmatpush2.bf16.msra.mxu0 0
        %1176 = vmatprep.subr.bf16.mxu0 0
        %1177 = vmatpush2.bf16.msra.mxu0 0
        %1178 = vmatprep.subr.bf16.mxu0 0
        %1179 = vmatpush2.bf16.msra.mxu0 0
        %1180 = vmatprep.subr.bf16.mxu0 0
        %1181 = vmatpush2.bf16.msra.mxu0 0
        %1182 = vmatprep.subr.bf16.mxu0 0
        %1183 = vmatpush2.bf16.msra.mxu0 0
        %1184 = vmatprep.subr.bf16.mxu0 0
        %1185 = vmatpush2.bf16.msra.mxu0 0
        %1186 = vmatprep.subr.bf16.mxu0 0
        %1187 = vmatpush2.bf16.msra.mxu0 0
        %1188 = vmatprep.mubr.bf16.mxu0 0
        %1189 = vmatmul.mubr.bf16.gmra.mxu0 %v1154
        %v1190 = vpop.f32.mrf.mxu0
        %v1191 = vadd.f32 0.0, %v1190
        %v1192 = vpop.f32.mrf.mxu0
        %v1193 = vpop.f32.mrf.mxu0
        %v1194 = vadd.f32 0.0, %v1193
        %v1195 = vpop.f32.mrf.mxu0
        %1196 = vdwg.mxu0
        %v1197 = vlaneseq
        %v1198 = vshrl.u32 %v1197, 7
        %v1199 = vsub.s32 0, %v1198
        %v1200 = vrot.slane %v1133, %v1199
        %v1201 = vadd.f32 %v1191, %v1200
        %v1202 = vadd.f32 %v1194, %v1200
        %v1203 = vlaneseq
        %v1204 = vshrl.u32 %v1203, 7
        %v1205 = vsub.s32 1, %v1204
        %v1206 = vrot.slane %v1133, %v1205
        %1208 = vrot.lane.b32.xlu0 %v1206, 32
        %v1209 = vpop.permute.xlu0 %1208
        %v1211 = vadd.f32 %v1191, %v1209
        %v1212 = vadd.f32 %v1194, %v1209
        %v1213 = vlaneseq
        %v1214 = vshrl.u32 %v1213, 7
        %v1215 = vsub.s32 2, %v1214
        %v1216 = vrot.slane %v1133, %v1215
        %1218 = vrot.lane.b32.xlu0 %v1216, 64
        %v1219 = vpop.permute.xlu0 %1218
        %v1221 = vadd.f32 %v1191, %v1219
        %v1222 = vadd.f32 %v1194, %v1219
        %v1223 = vmul.f32 %v1201, %v498
        %v1224 = vmul.f32 %v1202, %v498
        %v1225 = vmul.f32 %v1201, %v499
        %v1226 = vmul.f32 %v1202, %v499
        %v1227 = vpack.c.bf16 %v1224, %v1223
        %v1228 = vpack.c.bf16 %v1226, %v1225
        %v1229 = vpack.c.bf16 %v1212, %v1211
        %1231 = vrot.lane.b32.xlu0 %v1229, 96
        %v1232 = vpop.permute.xlu0 %1231
        %v1234 = vsel %vm508, %v1227, 0
        %v1237 = vsel %vm508, %v1228, 0
        %v1240 = vsel %vm508, %v1232, 0
        %1242 = vmatprep.subr.bf16.mxu0 0
        %1243 = vmatpush1.bf16.xpose.msra.mxu0 0
        %1244 = vmatprep.subr.bf16.mxu0 0
        %1245 = vmatpush1.bf16.xpose.msra.mxu0 0
        %1246 = vmatprep.subr.bf16.mxu0 0
        %1247 = vmatpush1.bf16.xpose.msra.mxu0 0
        %1248 = vmatprep.subr.bf16.mxu0 0
        %1249 = vmatpush1.bf16.xpose.msra.mxu0 0
        %1250 = vmatprep.subr.bf16.mxu0 0
        %1251 = vmatpush1.bf16.xpose.msra.mxu0 0
        %1252 = vmatprep.subr.bf16.mxu0 0
        %1253 = vmatpush1.bf16.xpose.msra.mxu0 0
        %1254 = vmatprep.subr.bf16.mxu0 0
        %1255 = vmatpush1.bf16.xpose.msra.mxu0 0
        %1256 = vmatprep.subr.bf16.mxu0 0
        %1257 = vmatpush1.bf16.xpose.msra.mxu0 %v1240
        %1258 = vmatprep.subr.bf16.mxu0 0
        %1259 = vmatpush2.bf16.xpose.msra.mxu0 0
        %1260 = vmatprep.subr.bf16.mxu0 0
        %1261 = vmatpush2.bf16.xpose.msra.mxu0 0
        %1262 = vmatprep.subr.bf16.mxu0 0
        %1263 = vmatpush2.bf16.xpose.msra.mxu0 0
        %1264 = vmatprep.subr.bf16.mxu0 0
        %1265 = vmatpush2.bf16.xpose.msra.mxu0 0
        %1266 = vmatprep.subr.bf16.mxu0 0
        %1267 = vmatpush2.bf16.xpose.msra.mxu0 0
        %1268 = vmatprep.subr.bf16.mxu0 0
        %1269 = vmatpush2.bf16.xpose.msra.mxu0 0
        %1270 = vmatprep.subr.bf16.mxu0 0
        %1271 = vmatpush2.bf16.xpose.msra.mxu0 0
        %1272 = vmatprep.subr.bf16.mxu0 0
        %1273 = vmatpush2.bf16.xpose.msra.mxu0 0
        %1274 = vmatprep.mubr.bf16.mxu0 0
        %1275 = vmatmul.mubr.bf16.gmra.mxu0 %v1234
        %v1276 = vpop.f32.mrf.mxu0
        %v1277 = vadd.f32 %v647, %v1276
        %v1278 = vpop.f32.mrf.mxu0
        %v1279 = vpop.f32.mrf.mxu0
        %v1280 = vadd.f32 %v647, %v1279
        %v1281 = vpop.f32.mrf.mxu0
        %1282 = vmatprep.mubr.bf16.mxu0 0
        %1283 = vmatmul.mubr.bf16.gmra.mxu0 %v1237
        %v1284 = vpop.f32.mrf.mxu0
        %v1285 = vadd.f32 %v647, %v1284
        %v1286 = vpop.f32.mrf.mxu0
        %v1287 = vpop.f32.mrf.mxu0
        %v1288 = vadd.f32 %v647, %v1287
        %v1289 = vpop.f32.mrf.mxu0
        %1290 = vdwg.mxu0
        %v1291 = vsel %vm709, %v1277, -inf
        %1292 = vmax.xlane.f32.xlu0 %v1291
        %v1293 = vpop.xlane.xlu0 %1292
        %v1294 = vsel %vm709, %v1280, -inf
        %1295 = vmax.xlane.f32.xlu0 %v1294
        %v1296 = vpop.xlane.xlu0 %1295
        %v1297 = vsel %vm709, %v1285, -inf
        %1298 = vmax.xlane.f32.xlu0 %v1297
        %v1299 = vpop.xlane.xlu0 %1298
        %v1300 = vsel %vm709, %v1288, -inf
        %1301 = vmax.xlane.f32.xlu0 %v1300
        %v1302 = vpop.xlane.xlu0 %1301
        %v1303 = vsub.f32 %v1277, %v1293
        %v1304 = vsub.f32 %v1280, %v1296
        %v1305 = vsub.f32 %v1285, %v1299
        %v1306 = vsub.f32 %v1288, %v1302
        %v1307 = vmul.f32 %v1303, 1.442695
        %v1308 = vpow.pop %v1307
        %v1309 = vmul.f32 %v1304, 1.442695
        %v1310 = vpow.pop %v1309
        %v1311 = vmul.f32 %v1305, 1.442695
        %v1312 = vpow.pop %v1311
        %v1313 = vmul.f32 %v1306, 1.442695
        %v1314 = vpow.pop %v1313
        %v1315 = vsel %vm709, %v1308, 0.0
        %1316 = vadd.xlane.f32.xlu0 %v1315
        %v1317 = vpop.xlane.xlu0 %1316
        %v1318 = vsel %vm709, %v1310, 0.0
        %1319 = vadd.xlane.f32.xlu0 %v1318
        %v1320 = vpop.xlane.xlu0 %1319
        %v1321 = vsel %vm709, %v1312, 0.0
        %1322 = vadd.xlane.f32.xlu0 %v1321
        %v1323 = vpop.xlane.xlu0 %1322
        %v1324 = vsel %vm709, %v1314, 0.0
        %1325 = vadd.xlane.f32.xlu0 %v1324
        %v1326 = vpop.xlane.xlu0 %1325
        %v1327 = vrcp.pop %v1317
        %v1328 = vrcp.pop %v1320
        %v1329 = vrcp.pop %v1323
        %v1330 = vrcp.pop %v1326
        %v1331 = vmul.f32 %v1308, %v1327
        %v1332 = vmul.f32 %v1310, %v1328
        %v1333 = vmul.f32 %v1312, %v1329
        %v1334 = vmul.f32 %v1314, %v1330
        %v1335 = vpack.c.bf16 %v1332, %v1331
        %v1336 = vpack.c.bf16 %v1334, %v1333
        %v1337 = vpack.c.bf16 %v1222, %v1221
        %1339 = vrot.lane.b32.xlu0 %v1337, 64
        %v1340 = vpop.permute.xlu0 %1339
        %v1343 = vsel %vm709, %v1335, 0
        %v1346 = vsel %vm709, %v1336, 0
        %1348 = vmatprep.subr.bf16.mxu0 0
        %1349 = vmatpush1.bf16.msra.mxu0 0
        %1350 = vmatprep.subr.bf16.mxu0 0
        %1351 = vmatpush1.bf16.msra.mxu0 0
        %1352 = vmatprep.subr.bf16.mxu0 0
        %1353 = vmatpush1.bf16.msra.mxu0 0
        %1354 = vmatprep.subr.bf16.mxu0 0
        %1355 = vmatpush1.bf16.msra.mxu0 0
        %1356 = vmatprep.subr.bf16.mxu0 0
        %1357 = vmatpush1.bf16.msra.mxu0 0
        %1358 = vmatprep.subr.bf16.mxu0 0
        %1359 = vmatpush1.bf16.msra.mxu0 0
        %1360 = vmatprep.subr.bf16.mxu0 0
        %1361 = vmatpush1.bf16.msra.mxu0 0
        %1362 = vmatprep.subr.bf16.mxu0 0
        %1363 = vmatpush1.bf16.msra.mxu0 %v1340
        %1364 = vmatprep.subr.bf16.mxu0 0
        %1365 = vmatpush2.bf16.msra.mxu0 0
        %1366 = vmatprep.subr.bf16.mxu0 0
        %1367 = vmatpush2.bf16.msra.mxu0 0
        %1368 = vmatprep.subr.bf16.mxu0 0
        %1369 = vmatpush2.bf16.msra.mxu0 0
        %1370 = vmatprep.subr.bf16.mxu0 0
        %1371 = vmatpush2.bf16.msra.mxu0 0
        %1372 = vmatprep.subr.bf16.mxu0 0
        %1373 = vmatpush2.bf16.msra.mxu0 0
        %1374 = vmatprep.subr.bf16.mxu0 0
        %1375 = vmatpush2.bf16.msra.mxu0 0
        %1376 = vmatprep.subr.bf16.mxu0 0
        %1377 = vmatpush2.bf16.msra.mxu0 0
        %1378 = vmatprep.subr.bf16.mxu0 0
        %1379 = vmatpush2.bf16.msra.mxu0 0
        %1380 = vmatprep.mubr.bf16.mxu0 0
        %1381 = vmatmul.mubr.bf16.gmra.mxu0 %v1343
        %v1382 = vpop.f32.mrf.mxu0
        %v1383 = vadd.f32 0.0, %v1382
        %v1384 = vpop.f32.mrf.mxu0
        %v1385 = vpop.f32.mrf.mxu0
        %v1386 = vadd.f32 0.0, %v1385
        %v1387 = vpop.f32.mrf.mxu0
        %1388 = vmatprep.mubr.bf16.mxu0 0
        %1389 = vmatmul.mubr.bf16.gmra.mxu0 %v1346
        %v1390 = vpop.f32.mrf.mxu0
        %v1391 = vadd.f32 0.0, %v1390
        %v1392 = vpop.f32.mrf.mxu0
        %v1393 = vpop.f32.mrf.mxu0
        %v1394 = vadd.f32 0.0, %v1393
        %v1395 = vpop.f32.mrf.mxu0
        %1396 = vdwg.mxu0
        %v1397 = vmul.f32 %v1383, %v492
        %v1398 = vmul.f32 %v1386, %v492
        %v1399 = vmul.f32 %v1391, %v497
        %v1400 = vmul.f32 %v1394, %v497
        %v1401 = vadd.f32 %v1397, %v1399
        %v1402 = vadd.f32 %v1398, %v1400
        %v1403 = vpack.c.bf16 %v1402, %v1401
        %s1404 = scalar_lea.vmem %s4, 16
        %v1405 = vld [vmem:[%s1404] sm:$0xf]
        %v1406 = vld [vmem:[%s1404 + $0x4] sm:$0xf]
        %v1407 = vld [vmem:[%s1404 + $0x8] sm:$0xf]
        %v1408 = vld [vmem:[%s1404 + $0xc] sm:$0xf]
        %v1409 = vlaneseq
        %v1410 = vshrl.u32 %v1409, 7
        %v1411 = vsub.s32 3, %v1410
        %v1412 = vrot.slane %v1133, %v1411
        %v1417 = vunpack.c.l.b16 %v1405
        %v1418 = vunpack.c.l.b16 %v1406
        %v1419 = vunpack.c.l.b16 %v1407
        %v1420 = vunpack.c.l.b16 %v1408
        %v1421 = vpack.c.b16 %v1418, %v1417
        %v1422 = vpack.c.b16 %v1420, %v1419
        %v1426 = vsel %vm508, %v1403, 0
        %1428 = vmatprep.subr.bf16.mxu0 0
        %1429 = vmatpush1.bf16.msra.mxu0 0
        %1430 = vmatprep.subr.bf16.mxu0 0
        %1431 = vmatpush1.bf16.msra.mxu0 0
        %1432 = vmatprep.subr.bf16.mxu0 0
        %1433 = vmatpush1.bf16.msra.mxu0 0
        %1434 = vmatprep.subr.bf16.mxu0 0
        %1435 = vmatpush1.bf16.msra.mxu0 0
        %1436 = vmatprep.subr.bf16.mxu0 0
        %1437 = vmatpush1.bf16.msra.mxu0 0
        %1438 = vmatprep.subr.bf16.mxu0 0
        %1439 = vmatpush1.bf16.msra.mxu0 0
        %1440 = vmatprep.subr.bf16.mxu0 0
        %1441 = vmatpush1.bf16.msra.mxu0 %v1422
        %1442 = vmatprep.subr.bf16.mxu0 0
        %1443 = vmatpush1.bf16.msra.mxu0 %v1421
        %1444 = vmatprep.subr.bf16.mxu0 0
        %1445 = vmatpush2.bf16.msra.mxu0 0
        %1446 = vmatprep.subr.bf16.mxu0 0
        %1447 = vmatpush2.bf16.msra.mxu0 0
        %1448 = vmatprep.subr.bf16.mxu0 0
        %1449 = vmatpush2.bf16.msra.mxu0 0
        %1450 = vmatprep.subr.bf16.mxu0 0
        %1451 = vmatpush2.bf16.msra.mxu0 0
        %1452 = vmatprep.subr.bf16.mxu0 0
        %1453 = vmatpush2.bf16.msra.mxu0 0
        %1454 = vmatprep.subr.bf16.mxu0 0
        %1455 = vmatpush2.bf16.msra.mxu0 0
        %1456 = vmatprep.subr.bf16.mxu0 0
        %1457 = vmatpush2.bf16.msra.mxu0 0
        %1458 = vmatprep.subr.bf16.mxu0 0
        %1459 = vmatpush2.bf16.msra.mxu0 0
        %1460 = vmatprep.mubr.bf16.mxu0 0
        %1461 = vmatmul.mubr.bf16.gmra.mxu0 %v1426
        %v1462 = vpop.f32.mrf.mxu0
        %v1463 = vadd.f32 %v1412, %v1462
        %v1464 = vpop.f32.mrf.mxu0
        %v1465 = vpop.f32.mrf.mxu0
        %v1466 = vadd.f32 %v1412, %v1465
        %v1467 = vpop.f32.mrf.mxu0
        %1468 = vdwg.mxu0
        %v1469 = vadd.f32 %v1130, %v1463
        %v1470 = vadd.f32 %v1131, %v1466
        %v1471 = vsel %vm508, %v1469, 0.0
        %1472 = vadd.xlane.f32.xlu0 %v1471
        %v1473 = vpop.xlane.xlu0 %1472
        %v1474 = vsel %vm508, %v1470, 0.0
        %1475 = vadd.xlane.f32.xlu0 %v1474
        %v1476 = vpop.xlane.xlu0 %1475
        %v1477 = vmul.f32 %v1473, %v515
        %v1478 = vmul.f32 %v1476, %v515
        %v1479 = vsub.f32 %v1469, %v1477
        %v1480 = vsub.f32 %v1470, %v1478
        %v1481 = vmul.f32 %v1479, %v1479
        %v1482 = vmul.f32 %v1480, %v1480
        %v1483 = vsel %vm508, %v1481, 0.0
        %1484 = vadd.xlane.f32.xlu0 %v1483
        %v1485 = vpop.xlane.xlu0 %1484
        %v1486 = vsel %vm508, %v1482, 0.0
        %1487 = vadd.xlane.f32.xlu0 %v1486
        %v1488 = vpop.xlane.xlu0 %1487
        %v1489 = vmul.f32 %v1485, %v515
        %v1490 = vmul.f32 %v1488, %v515
        %v1491 = vadd.f32 %v1489, 1e-12
        %v1492 = vadd.f32 %v1490, 1e-12
        %v1493 = vrsqrt.pop %v1491
        %v1494 = vrsqrt.pop %v1492
        %v1495 = vmul.f32 %v1479, %v1493
        %v1496 = vmul.f32 %v1480, %v1494
        %v1497 = vlaneseq
        %v1498 = vshrl.u32 %v1497, 7
        %v1499 = vsub.s32 5, %v1498
        %v1500 = vrot.slane %v1133, %v1499
        %v1501 = vmul.f32 %v1495, %v1500
        %v1502 = vmul.f32 %v1496, %v1500
        %v1503 = vlaneseq
        %v1504 = vshrl.u32 %v1503, 7
        %v1505 = vsub.s32 6, %v1504
        %v1506 = vrot.slane %v1133, %v1505
        %v1507 = vadd.f32 %v1501, %v1506
        %v1508 = vadd.f32 %v1502, %v1506
        %v1509 = vpack.c.bf16 %v1508, %v1507
        %s1510 = scalar_lea.vmem %s5, 16
        %v1511 = vld [vmem:[%s1510] sm:$0xf]
        %v1512 = vld [vmem:[%s1510 + $0x4] sm:$0xf]
        %v1513 = vld [vmem:[%s1510 + $0x8] sm:$0xf]
        %v1514 = vld [vmem:[%s1510 + $0xc] sm:$0xf]
        %v1515 = vlaneseq
        %v1516 = vshrl.u32 %v1515, 7
        %v1517 = vsub.s32 1, %v1516
        %v1518 = vrot.slane %v1134, %v1517
        %v1523 = vunpack.c.l.b16 %v1511
        %v1524 = vunpack.c.l.b16 %v1512
        %v1525 = vunpack.c.l.b16 %v1513
        %v1526 = vunpack.c.l.b16 %v1514
        %v1527 = vpack.c.b16 %v1524, %v1523
        %v1528 = vpack.c.b16 %v1526, %v1525
        %v1532 = vsel %vm508, %v1509, 0
        %1534 = vmatprep.subr.bf16.mxu0 0
        %1535 = vmatpush1.bf16.msra.mxu0 0
        %1536 = vmatprep.subr.bf16.mxu0 0
        %1537 = vmatpush1.bf16.msra.mxu0 0
        %1538 = vmatprep.subr.bf16.mxu0 0
        %1539 = vmatpush1.bf16.msra.mxu0 0
        %1540 = vmatprep.subr.bf16.mxu0 0
        %1541 = vmatpush1.bf16.msra.mxu0 0
        %1542 = vmatprep.subr.bf16.mxu0 0
        %1543 = vmatpush1.bf16.msra.mxu0 0
        %1544 = vmatprep.subr.bf16.mxu0 0
        %1545 = vmatpush1.bf16.msra.mxu0 0
        %1546 = vmatprep.subr.bf16.mxu0 0
        %1547 = vmatpush1.bf16.msra.mxu0 %v1528
        %1548 = vmatprep.subr.bf16.mxu0 0
        %1549 = vmatpush1.bf16.msra.mxu0 %v1527
        %1550 = vmatprep.subr.bf16.mxu0 0
        %1551 = vmatpush2.bf16.msra.mxu0 0
        %1552 = vmatprep.subr.bf16.mxu0 0
        %1553 = vmatpush2.bf16.msra.mxu0 0
        %1554 = vmatprep.subr.bf16.mxu0 0
        %1555 = vmatpush2.bf16.msra.mxu0 0
        %1556 = vmatprep.subr.bf16.mxu0 0
        %1557 = vmatpush2.bf16.msra.mxu0 0
        %1558 = vmatprep.subr.bf16.mxu0 0
        %1559 = vmatpush2.bf16.msra.mxu0 0
        %1560 = vmatprep.subr.bf16.mxu0 0
        %1561 = vmatpush2.bf16.msra.mxu0 0
        %1562 = vmatprep.subr.bf16.mxu0 0
        %1563 = vmatpush2.bf16.msra.mxu0 0
        %1564 = vmatprep.subr.bf16.mxu0 0
        %1565 = vmatpush2.bf16.msra.mxu0 0
        %1566 = vmatprep.mubr.bf16.mxu0 0
        %1567 = vmatmul.mubr.bf16.gmra.mxu0 %v1532
        %v1568 = vpop.f32.mrf.mxu0
        %v1569 = vadd.f32 %v1518, %v1568
        %v1570 = vpop.f32.mrf.mxu0
        %v1571 = vpop.f32.mrf.mxu0
        %v1572 = vadd.f32 %v1518, %v1571
        %v1573 = vpop.f32.mrf.mxu0
        %1574 = vdwg.mxu0
        %v1575 = vmul.f32 %v1569, %v1569
        %v1576 = vmul.f32 %v1572, %v1572
        %v1577 = vmul.f32 %v1569, %v1575
        %v1578 = vmul.f32 %v1572, %v1576
        %v1579 = vmul.f32 %v1577, 0.044715
        %v1580 = vmul.f32 %v1578, 0.044715
        %v1581 = vadd.f32 %v1569, %v1579
        %v1582 = vadd.f32 %v1572, %v1580
        %v1583 = vmul.f32 %v1581, 0.7978846
        %v1584 = vmul.f32 %v1582, 0.7978846
        %v1585 = vtanh.pop %v1583
        %v1586 = vtanh.pop %v1584
        %v1587 = vadd.f32 %v1585, 1.0
        %v1588 = vadd.f32 %v1586, 1.0
        %v1589 = vmul.f32 %v1587, 0.5
        %v1590 = vmul.f32 %v1588, 0.5
        %v1591 = vmul.f32 %v1569, %v1589
        %v1592 = vmul.f32 %v1572, %v1590
        %v1593 = vpack.c.bf16 %v1592, %v1591
        %s1594 = scalar_lea.vmem %s6, 32
        %v1595 = vld [vmem:[%s1594] sm:$0xf]
        %v1596 = vld [vmem:[%s1594 + $0x4] sm:$0xf]
        %v1597 = vld [vmem:[%s1594 + $0x8] sm:$0xf]
        %v1598 = vld [vmem:[%s1594 + $0xc] sm:$0xf]
        %v1599 = vld [vmem:[%s1594 + $0x10] sm:$0xf]
        %v1600 = vld [vmem:[%s1594 + $0x14] sm:$0xf]
        %v1601 = vld [vmem:[%s1594 + $0x18] sm:$0xf]
        %v1602 = vld [vmem:[%s1594 + $0x1c] sm:$0xf]
        %v1603 = vlaneseq
        %v1604 = vshrl.u32 %v1603, 7
        %v1605 = vsub.s32 4, %v1604
        %v1606 = vrot.slane %v1133, %v1605
        %v1615 = vunpack.c.l.b16 %v1595
        %v1616 = vunpack.c.l.b16 %v1596
        %v1617 = vunpack.c.l.b16 %v1597
        %v1618 = vunpack.c.l.b16 %v1598
        %v1619 = vunpack.c.l.b16 %v1599
        %v1620 = vunpack.c.l.b16 %v1600
        %v1621 = vunpack.c.l.b16 %v1601
        %v1622 = vunpack.c.l.b16 %v1602
        %v1623 = vpack.c.b16 %v1616, %v1615
        %v1624 = vpack.c.b16 %v1618, %v1617
        %v1625 = vpack.c.b16 %v1620, %v1619
        %v1626 = vpack.c.b16 %v1622, %v1621
        %v1632 = vsel %vm1047, %v1593, 0
        %1634 = vmatprep.subr.bf16.mxu0 0
        %1635 = vmatpush1.bf16.msra.mxu0 0
        %1636 = vmatprep.subr.bf16.mxu0 0
        %1637 = vmatpush1.bf16.msra.mxu0 0
        %1638 = vmatprep.subr.bf16.mxu0 0
        %1639 = vmatpush1.bf16.msra.mxu0 0
        %1640 = vmatprep.subr.bf16.mxu0 0
        %1641 = vmatpush1.bf16.msra.mxu0 0
        %1642 = vmatprep.subr.bf16.mxu0 0
        %1643 = vmatpush1.bf16.msra.mxu0 %v1626
        %1644 = vmatprep.subr.bf16.mxu0 0
        %1645 = vmatpush1.bf16.msra.mxu0 %v1625
        %1646 = vmatprep.subr.bf16.mxu0 0
        %1647 = vmatpush1.bf16.msra.mxu0 %v1624
        %1648 = vmatprep.subr.bf16.mxu0 0
        %1649 = vmatpush1.bf16.msra.mxu0 %v1623
        %1650 = vmatprep.subr.bf16.mxu0 0
        %1651 = vmatpush2.bf16.msra.mxu0 0
        %1652 = vmatprep.subr.bf16.mxu0 0
        %1653 = vmatpush2.bf16.msra.mxu0 0
        %1654 = vmatprep.subr.bf16.mxu0 0
        %1655 = vmatpush2.bf16.msra.mxu0 0
        %1656 = vmatprep.subr.bf16.mxu0 0
        %1657 = vmatpush2.bf16.msra.mxu0 0
        %1658 = vmatprep.subr.bf16.mxu0 0
        %1659 = vmatpush2.bf16.msra.mxu0 0
        %1660 = vmatprep.subr.bf16.mxu0 0
        %1661 = vmatpush2.bf16.msra.mxu0 0
        %1662 = vmatprep.subr.bf16.mxu0 0
        %1663 = vmatpush2.bf16.msra.mxu0 0
        %1664 = vmatprep.subr.bf16.mxu0 0
        %1665 = vmatpush2.bf16.msra.mxu0 0
        %1666 = vmatprep.mubr.bf16.mxu0 0
        %1667 = vmatmul.mubr.bf16.gmra.mxu0 %v1632
        %v1668 = vpop.f32.mrf.mxu0
        %v1669 = vadd.f32 %v1606, %v1668
        %v1670 = vpop.f32.mrf.mxu0
        %v1671 = vpop.f32.mrf.mxu0
        %v1672 = vadd.f32 %v1606, %v1671
        %v1673 = vpop.f32.mrf.mxu0
        %1674 = vdwg.mxu0
        %v1675 = vadd.f32 %v1507, %v1669
        %v1676 = vadd.f32 %v1508, %v1672
        %v1677 = vsel %vm508, %v1675, 0.0
        %1678 = vadd.xlane.f32.xlu0 %v1677
        %v1679 = vpop.xlane.xlu0 %1678
        %v1680 = vsel %vm508, %v1676, 0.0
        %1681 = vadd.xlane.f32.xlu0 %v1680
        %v1682 = vpop.xlane.xlu0 %1681
        %v1683 = vmul.f32 %v1679, %v515
        %v1684 = vmul.f32 %v1682, %v515
        %v1685 = vsub.f32 %v1675, %v1683
        %v1686 = vsub.f32 %v1676, %v1684
        %v1687 = vmul.f32 %v1685, %v1685
        %v1688 = vmul.f32 %v1686, %v1686
        %v1689 = vsel %vm508, %v1687, 0.0
        %1690 = vadd.xlane.f32.xlu0 %v1689
        %v1691 = vpop.xlane.xlu0 %1690
        %v1692 = vsel %vm508, %v1688, 0.0
        %1693 = vadd.xlane.f32.xlu0 %v1692
        %v1694 = vpop.xlane.xlu0 %1693
        %v1695 = vmul.f32 %v1691, %v515
        %v1696 = vmul.f32 %v1694, %v515
        %v1697 = vadd.f32 %v1695, 1e-12
        %v1698 = vadd.f32 %v1696, 1e-12
        %v1699 = vrsqrt.pop %v1697
        %v1700 = vrsqrt.pop %v1698
        %v1701 = vmul.f32 %v1685, %v1699
        %v1702 = vmul.f32 %v1686, %v1700
        %v1703 = vlaneseq
        %v1704 = vshrl.u32 %v1703, 7
        %v1705 = vsub.s32 7, %v1704
        %v1706 = vrot.slane %v1133, %v1705
        %v1707 = vmul.f32 %v1701, %v1706
        %v1708 = vmul.f32 %v1702, %v1706
        %v1709 = vlaneseq
        %v1710 = vshrl.u32 %v1709, 7
        %v1711 = vsub.s32 0, %v1710
        %v1712 = vrot.slane %v1134, %v1711
        %v1713 = vadd.f32 %v1707, %v1712
        %v1714 = vadd.f32 %v1708, %v1712
        %v1715 = vpack.c.bf16 %v1714, %v1713
        %v1716 = vld [vmem:[%s8] sm:$0xf]
        %v1717 = vld [vmem:[%s8 + $0x4] sm:$0xf]
        %v1718 = vld [vmem:[%s8 + $0x8] sm:$0xf]
        %v1719 = vld [vmem:[%s8 + $0xc] sm:$0xf]
        %v1720 = vlaneseq
        %v1721 = vshrl.u32 %v1720, 7
        %v1722 = vsub.s32 4, %v1721
        %v1723 = vrot.slane %v505, %v1722
        %v1728 = vunpack.c.l.b16 %v1716
        %v1729 = vunpack.c.l.b16 %v1717
        %v1730 = vunpack.c.l.b16 %v1718
        %v1731 = vunpack.c.l.b16 %v1719
        %v1732 = vpack.c.b16 %v1729, %v1728
        %v1733 = vpack.c.b16 %v1731, %v1730
        %v1737 = vsel %vm508, %v1715, 0
        %1739 = vmatprep.subr.bf16.mxu0 0
        %1740 = vmatpush1.bf16.msra.mxu0 0
        %1741 = vmatprep.subr.bf16.mxu0 0
        %1742 = vmatpush1.bf16.msra.mxu0 0
        %1743 = vmatprep.subr.bf16.mxu0 0
        %1744 = vmatpush1.bf16.msra.mxu0 0
        %1745 = vmatprep.subr.bf16.mxu0 0
        %1746 = vmatpush1.bf16.msra.mxu0 0
        %1747 = vmatprep.subr.bf16.mxu0 0
        %1748 = vmatpush1.bf16.msra.mxu0 0
        %1749 = vmatprep.subr.bf16.mxu0 0
        %1750 = vmatpush1.bf16.msra.mxu0 0
        %1751 = vmatprep.subr.bf16.mxu0 0
        %1752 = vmatpush1.bf16.msra.mxu0 %v1733
        %1753 = vmatprep.subr.bf16.mxu0 0
        %1754 = vmatpush1.bf16.msra.mxu0 %v1732
        %1755 = vmatprep.subr.bf16.mxu0 0
        %1756 = vmatpush2.bf16.msra.mxu0 0
        %1757 = vmatprep.subr.bf16.mxu0 0
        %1758 = vmatpush2.bf16.msra.mxu0 0
        %1759 = vmatprep.subr.bf16.mxu0 0
        %1760 = vmatpush2.bf16.msra.mxu0 0
        %1761 = vmatprep.subr.bf16.mxu0 0
        %1762 = vmatpush2.bf16.msra.mxu0 0
        %1763 = vmatprep.subr.bf16.mxu0 0
        %1764 = vmatpush2.bf16.msra.mxu0 0
        %1765 = vmatprep.subr.bf16.mxu0 0
        %1766 = vmatpush2.bf16.msra.mxu0 0
        %1767 = vmatprep.subr.bf16.mxu0 0
        %1768 = vmatpush2.bf16.msra.mxu0 0
        %1769 = vmatprep.subr.bf16.mxu0 0
        %1770 = vmatpush2.bf16.msra.mxu0 0
        %1771 = vmatprep.mubr.bf16.mxu0 0
        %1772 = vmatmul.mubr.bf16.gmra.mxu0 %v1737
        %v1773 = vpop.f32.mrf.mxu0
        %v1774 = vadd.f32 %v1723, %v1773
        %v1775 = vpop.f32.mrf.mxu0
        %v1776 = vpop.f32.mrf.mxu0
        %v1777 = vadd.f32 %v1723, %v1776
        %v1778 = vpop.f32.mrf.mxu0
        %1779 = vdwg.mxu0
        %v1780 = vtanh.pop %v1774
        %v1781 = vtanh.pop %v1777
        %v1782 = vlaneseq
        %v1783 = vshrl.u32 %v1782, 7
        %v1784 = vsub.s32 5, %v1783
        %v1785 = vrot.slane %v505, %v1784
        %v1786 = vmul.f32 %v1780, %v1785
        %v1787 = vmul.f32 %v1781, %v1785
        %v1788 = vsel %vm508, %v1786, 0.0
        %1789 = vadd.xlane.f32.xlu0 %v1788
        %v1790 = vpop.xlane.xlu0 %1789
        %v1791 = vsel %vm508, %v1787, 0.0
        %1792 = vadd.xlane.f32.xlu0 %v1791
        %v1793 = vpop.xlane.xlu0 %1792
        %v1794 = vmax.f32 %v1790, %v1793
        %v1795 = vrot.slane %v1794, 4
        %v1796 = vmax.f32 %v1794, %v1795
        %v1797 = vrot.slane %v1796, 2
        %v1798 = vmax.f32 %v1796, %v1797
        %v1799 = vrot.slane %v1798, 1
        %v1800 = vmax.f32 %v1798, %v1799
        %s1801 = vtos %v1800
        %v1802 = vstv %s1801
        %v1803 = vsub.f32 %v1790, %v1802
        %v1804 = vsub.f32 %v1793, %v1802
        %v1805 = vmul.f32 %v1803, 1.442695
        %v1806 = vpow.pop %v1805
        %v1807 = vmul.f32 %v1804, 1.442695
        %v1808 = vpow.pop %v1807
        %v1809 = vmul.f32 %v1806, %v1713
        %v1810 = vmul.f32 %v1808, %v1714
        %v1812 = vsel %vm709, %v500, 0
        %1814 = vmatprep.subr.mxu0 0.0
        %1815 = vmatpush1.msra.mxu0 0.0
        %1816 = vmatprep.subr.mxu0 0.0
        %1817 = vmatpush1.msra.mxu0 0.0
        %1818 = vmatprep.subr.mxu0 0.0
        %1819 = vmatpush1.msra.mxu0 0.0
        %1820 = vmatprep.subr.mxu0 0.0
        %1821 = vmatpush1.msra.mxu0 0.0
        %1822 = vmatprep.subr.mxu0 0.0
        %1823 = vmatpush1.msra.mxu0 0.0
        %1824 = vmatprep.subr.mxu0 0.0
        %1825 = vmatpush1.msra.mxu0 0.0
        %1826 = vmatprep.subr.mxu0 0.0
        %1827 = vmatpush1.msra.mxu0 0.0
        %1828 = vmatprep.subr.mxu0 0.0
        %1829 = vmatpush1.msra.mxu0 0.0
        %1830 = vmatprep.subr.mxu0 0.0
        %1831 = vmatpush1.msra.mxu0 0.0
        %1832 = vmatprep.subr.mxu0 0.0
        %1833 = vmatpush1.msra.mxu0 0.0
        %1834 = vmatprep.subr.mxu0 0.0
        %1835 = vmatpush1.msra.mxu0 0.0
        %1836 = vmatprep.subr.mxu0 0.0
        %1837 = vmatpush1.msra.mxu0 0.0
        %1838 = vmatprep.subr.mxu0 0.0
        %1839 = vmatpush1.msra.mxu0 0.0
        %1840 = vmatprep.subr.mxu0 0.0
        %1841 = vmatpush1.msra.mxu0 0.0
        %1842 = vmatprep.subr.mxu0 0.0
        %1843 = vmatpush1.msra.mxu0 %v1810
        %1844 = vmatprep.subr.mxu0 0.0
        %1845 = vmatpush1.msra.mxu0 %v1809
        %1846 = vmatprep.subr.mxu0 0.0
        %1847 = vmatpush2.msra.mxu0 0.0
        %1848 = vmatprep.subr.mxu0 0.0
        %1849 = vmatpush2.msra.mxu0 0.0
        %1850 = vmatprep.subr.mxu0 0.0
        %1851 = vmatpush2.msra.mxu0 0.0
        %1852 = vmatprep.subr.mxu0 0.0
        %1853 = vmatpush2.msra.mxu0 0.0
        %1854 = vmatprep.subr.mxu0 0.0
        %1855 = vmatpush2.msra.mxu0 0.0
        %1856 = vmatprep.subr.mxu0 0.0
        %1857 = vmatpush2.msra.mxu0 0.0
        %1858 = vmatprep.subr.mxu0 0.0
        %1859 = vmatpush2.msra.mxu0 0.0
        %1860 = vmatprep.subr.mxu0 0.0
        %1861 = vmatpush2.msra.mxu0 0.0
        %1862 = vmatprep.subr.mxu0 0.0
        %1863 = vmatpush2.msra.mxu0 0.0
        %1864 = vmatprep.subr.mxu0 0.0
        %1865 = vmatpush2.msra.mxu0 0.0
        %1866 = vmatprep.subr.mxu0 0.0
        %1867 = vmatpush2.msra.mxu0 0.0
        %1868 = vmatprep.subr.mxu0 0.0
        %1869 = vmatpush2.msra.mxu0 0.0
        %1870 = vmatprep.subr.mxu0 0.0
        %1871 = vmatpush2.msra.mxu0 0.0
        %1872 = vmatprep.subr.mxu0 0.0
        %1873 = vmatpush2.msra.mxu0 0.0
        %1874 = vmatprep.subr.mxu0 0.0
        %1875 = vmatpush2.msra.mxu0 0.0
        %1876 = vmatprep.subr.mxu0 0.0
        %1877 = vmatpush2.msra.mxu0 0.0
        %1878 = vmatprep.mubr.f32.mxu0 0.0
        %1879 = vmatmul.mubr.f32.gmra.mxu0 %v1812
        %v1880 = vpop.f32.mrf.mxu0
        %v1881 = vadd.f32 0.0, %v1880
        %v1882 = vpop.f32.mrf.mxu0
        %1883 = vdwg.mxu0
        %1884 = vmatprep.subr.mxu0 0.0
        %1885 = vmatpush1.msra.mxu0 0.0
        %1886 = vmatprep.subr.mxu0 0.0
        %1887 = vmatpush1.msra.mxu0 0.0
        %1888 = vmatprep.subr.mxu0 0.0
        %1889 = vmatpush1.msra.mxu0 0.0
        %1890 = vmatprep.subr.mxu0 0.0
        %1891 = vmatpush1.msra.mxu0 0.0
        %1892 = vmatprep.subr.mxu0 0.0
        %1893 = vmatpush1.msra.mxu0 0.0
        %1894 = vmatprep.subr.mxu0 0.0
        %1895 = vmatpush1.msra.mxu0 0.0
        %1896 = vmatprep.subr.mxu0 0.0
        %1897 = vmatpush1.msra.mxu0 0.0
        %1898 = vmatprep.subr.mxu0 0.0
        %1899 = vmatpush1.msra.mxu0 0.0
        %1900 = vmatprep.subr.mxu0 0.0
        %1901 = vmatpush1.msra.mxu0 0.0
        %1902 = vmatprep.subr.mxu0 0.0
        %1903 = vmatpush1.msra.mxu0 0.0
        %1904 = vmatprep.subr.mxu0 0.0
        %1905 = vmatpush1.msra.mxu0 0.0
        %1906 = vmatprep.subr.mxu0 0.0
        %1907 = vmatpush1.msra.mxu0 0.0
        %1908 = vmatprep.subr.mxu0 0.0
        %1909 = vmatpush1.msra.mxu0 0.0
        %1910 = vmatprep.subr.mxu0 0.0
        %1911 = vmatpush1.msra.mxu0 0.0
        %1912 = vmatprep.subr.mxu0 0.0
        %1913 = vmatpush1.msra.mxu0 %v1808
        %1914 = vmatprep.subr.mxu0 0.0
        %1915 = vmatpush1.msra.mxu0 %v1806
        %1916 = vmatprep.subr.mxu0 0.0
        %1917 = vmatpush2.msra.mxu0 0.0
        %1918 = vmatprep.subr.mxu0 0.0
        %1919 = vmatpush2.msra.mxu0 0.0
        %1920 = vmatprep.subr.mxu0 0.0
        %1921 = vmatpush2.msra.mxu0 0.0
        %1922 = vmatprep.subr.mxu0 0.0
        %1923 = vmatpush2.msra.mxu0 0.0
        %1924 = vmatprep.subr.mxu0 0.0
        %1925 = vmatpush2.msra.mxu0 0.0
        %1926 = vmatprep.subr.mxu0 0.0
        %1927 = vmatpush2.msra.mxu0 0.0
        %1928 = vmatprep.subr.mxu0 0.0
        %1929 = vmatpush2.msra.mxu0 0.0
        %1930 = vmatprep.subr.mxu0 0.0
        %1931 = vmatpush2.msra.mxu0 0.0
        %1932 = vmatprep.subr.mxu0 0.0
        %1933 = vmatpush2.msra.mxu0 0.0
        %1934 = vmatprep.subr.mxu0 0.0
        %1935 = vmatpush2.msra.mxu0 0.0
        %1936 = vmatprep.subr.mxu0 0.0
        %1937 = vmatpush2.msra.mxu0 0.0
        %1938 = vmatprep.subr.mxu0 0.0
        %1939 = vmatpush2.msra.mxu0 0.0
        %1940 = vmatprep.subr.mxu0 0.0
        %1941 = vmatpush2.msra.mxu0 0.0
        %1942 = vmatprep.subr.mxu0 0.0
        %1943 = vmatpush2.msra.mxu0 0.0
        %1944 = vmatprep.subr.mxu0 0.0
        %1945 = vmatpush2.msra.mxu0 0.0
        %1946 = vmatprep.subr.mxu0 0.0
        %1947 = vmatpush2.msra.mxu0 0.0
        %1948 = vmatprep.mubr.f32.mxu0 0.0
        %1949 = vmatmul.mubr.f32.gmra.mxu0 %v1812
        %v1950 = vpop.f32.mrf.mxu0
        %v1951 = vadd.f32 0.0, %v1950
        %v1952 = vpop.f32.mrf.mxu0
        %1953 = vdwg.mxu0
        %vm1954 = vcmp.gt.f32.partialorder %v1951, 0.0
        %v1955 = vsel %vm1954, %v1951, 1.0
        %1957 = vset.pattern.permute.xlu0 0
        %1958 = vperm.xlu0 %1957, %v1955
        %v1959 = vpop.permute.xlu0 %1958
        %v1961 = vrcp.pop %v1959
        %v1962 = vmul.f32 %v1881, %v1961
        %v1963 = vadd.f32 %v1962, %v504
        %v1964 = vsel %vm508, %v1963, 0.0
        %1965 = vadd.xlane.f32.xlu0 %v1964
        %v1966 = vpop.xlane.xlu0 %1965
        %v1967 = vmul.f32 %v1966, %v515
        %v1968 = vsub.f32 %v1963, %v1967
        %v1969 = vmul.f32 %v1968, %v1968
        %v1970 = vsel %vm508, %v1969, 0.0
        %1971 = vadd.xlane.f32.xlu0 %v1970
        %v1972 = vpop.xlane.xlu0 %1971
        %v1973 = vmul.f32 %v1972, %v515
        %v1974 = vadd.f32 %v1973, 1e-12
        %v1975 = vrsqrt.pop %v1974
        %v1976 = vmul.f32 %v1968, %v1975
        %v1977 = vlaneseq
        %v1978 = vshrl.u32 %v1977, 7
        %v1979 = vsub.s32 2, %v1978
        %v1980 = vrot.slane %v505, %v1979
        %v1981 = vmul.f32 %v1976, %v1980
        %v1982 = vlaneseq
        %v1983 = vshrl.u32 %v1982, 7
        %v1984 = vsub.s32 3, %v1983
        %v1985 = vrot.slane %v505, %v1984
        %v1986 = vadd.f32 %v1981, %v1985
        %v1987 = vld [vmem:[%s13] sm:$0xff]
        %v1988 = vld [vmem:[%s13 + $0x8] sm:$0x3]
        %v1989 = vpack.c.bf16 %v1986, %v1986
        %v1990 = vld [vmem:[%s9] sm:$0xf]
        %v1991 = vld [vmem:[%s9 + $0x4] sm:$0xf]
        %v1992 = vld [vmem:[%s9 + $0x8] sm:$0xf]
        %v1993 = vld [vmem:[%s9 + $0xc] sm:$0xf]
        %v1998 = vunpack.c.l.b16 %v1990
        %v1999 = vunpack.c.l.b16 %v1991
        %v2000 = vunpack.c.l.b16 %v1992
        %v2001 = vunpack.c.l.b16 %v1993
        %v2002 = vpack.c.b16 %v1999, %v1998
        %v2003 = vpack.c.b16 %v2001, %v2000
        %v2007 = vsel %vm508, %v1989, 0
        %2009 = vmatprep.subr.bf16.mxu0 0
        %2010 = vmatpush1.bf16.msra.mxu0 0
        %2011 = vmatprep.subr.bf16.mxu0 0
        %2012 = vmatpush1.bf16.msra.mxu0 0
        %2013 = vmatprep.subr.bf16.mxu0 0
        %2014 = vmatpush1.bf16.msra.mxu0 0
        %2015 = vmatprep.subr.bf16.mxu0 0
        %2016 = vmatpush1.bf16.msra.mxu0 0
        %2017 = vmatprep.subr.bf16.mxu0 0
        %2018 = vmatpush1.bf16.msra.mxu0 0
        %2019 = vmatprep.subr.bf16.mxu0 0
        %2020 = vmatpush1.bf16.msra.mxu0 0
        %2021 = vmatprep.subr.bf16.mxu0 0
        %2022 = vmatpush1.bf16.msra.mxu0 %v2003
        %2023 = vmatprep.subr.bf16.mxu0 0
        %2024 = vmatpush1.bf16.msra.mxu0 %v2002
        %2025 = vmatprep.subr.bf16.mxu0 0
        %2026 = vmatpush2.bf16.msra.mxu0 0
        %2027 = vmatprep.subr.bf16.mxu0 0
        %2028 = vmatpush2.bf16.msra.mxu0 0
        %2029 = vmatprep.subr.bf16.mxu0 0
        %2030 = vmatpush2.bf16.msra.mxu0 0
        %2031 = vmatprep.subr.bf16.mxu0 0
        %2032 = vmatpush2.bf16.msra.mxu0 0
        %2033 = vmatprep.subr.bf16.mxu0 0
        %2034 = vmatpush2.bf16.msra.mxu0 0
        %2035 = vmatprep.subr.bf16.mxu0 0
        %2036 = vmatpush2.bf16.msra.mxu0 0
        %2037 = vmatprep.subr.bf16.mxu0 0
        %2038 = vmatpush2.bf16.msra.mxu0 0
        %2039 = vmatprep.subr.bf16.mxu0 0
        %2040 = vmatpush2.bf16.msra.mxu0 0
        %2041 = vmatprep.mubr.bf16.mxu0 0
        %2042 = vmatmul.mubr.bf16.gmra.mxu0 %v2007
        %v2043 = vpop.f32.mrf.mxu0
        %v2044 = vadd.f32 0.0, %v2043
        %v2045 = vpop.f32.mrf.mxu0
        %v2046 = vpop.f32.mrf.mxu0
        %v2047 = vpop.f32.mrf.mxu0
        %2048 = vdwg.mxu0
        %v2049 = vlaneseq
        %v2050 = vshrl.u32 %v2049, 7
        %v2051 = vsub.s32 0, %v2050
        %v2052 = vrot.slane %v1987, %v2051
        %v2053 = vadd.f32 %v2044, %v2052
        %v2054 = vlaneseq
        %v2055 = vshrl.u32 %v2054, 7
        %v2056 = vsub.s32 1, %v2055
        %v2057 = vrot.slane %v1987, %v2056
        %2059 = vrot.lane.b32.xlu0 %v2057, 32
        %v2060 = vpop.permute.xlu0 %2059
        %v2062 = vadd.f32 %v2044, %v2060
        %v2063 = vlaneseq
        %v2064 = vshrl.u32 %v2063, 7
        %v2065 = vsub.s32 2, %v2064
        %v2066 = vrot.slane %v1987, %v2065
        %2068 = vrot.lane.b32.xlu0 %v2066, 64
        %v2069 = vpop.permute.xlu0 %2068
        %v2071 = vadd.f32 %v2044, %v2069
        %v2072 = vmul.f32 %v2053, %v498
        %v2073 = vmul.f32 %v2053, %v499
        %v2074 = vpack.c.bf16 %v2073, %v2072
        %v2075 = vpack.c.bf16 %v2062, %v2062
        %v2076 = vlaneseq
        %v2077 = vshrl.u32 %v2076, 7
        %v2078 = vsub.s32 1, %v2077
        %v2079 = vrot.slane %v503, %v2078
        %2081 = vrot.lane.b32.xlu0 %v2075, 96
        %v2082 = vpop.permute.xlu0 %2081
        %v2084 = vsel %vm508, %v2074, 0
        %v2087 = vsel %vm508, %v2082, 0
        %2089 = vmatprep.subr.bf16.mxu0 0
        %2090 = vmatpush1.bf16.xpose.msra.mxu0 0
        %2091 = vmatprep.subr.bf16.mxu0 0
        %2092 = vmatpush1.bf16.xpose.msra.mxu0 0
        %2093 = vmatprep.subr.bf16.mxu0 0
        %2094 = vmatpush1.bf16.xpose.msra.mxu0 0
        %2095 = vmatprep.subr.bf16.mxu0 0
        %2096 = vmatpush1.bf16.xpose.msra.mxu0 0
        %2097 = vmatprep.subr.bf16.mxu0 0
        %2098 = vmatpush1.bf16.xpose.msra.mxu0 0
        %2099 = vmatprep.subr.bf16.mxu0 0
        %2100 = vmatpush1.bf16.xpose.msra.mxu0 0
        %2101 = vmatprep.subr.bf16.mxu0 0
        %2102 = vmatpush1.bf16.xpose.msra.mxu0 0
        %2103 = vmatprep.subr.bf16.mxu0 0
        %2104 = vmatpush1.bf16.xpose.msra.mxu0 %v2087
        %2105 = vmatprep.subr.bf16.mxu0 0
        %2106 = vmatpush2.bf16.xpose.msra.mxu0 0
        %2107 = vmatprep.subr.bf16.mxu0 0
        %2108 = vmatpush2.bf16.xpose.msra.mxu0 0
        %2109 = vmatprep.subr.bf16.mxu0 0
        %2110 = vmatpush2.bf16.xpose.msra.mxu0 0
        %2111 = vmatprep.subr.bf16.mxu0 0
        %2112 = vmatpush2.bf16.xpose.msra.mxu0 0
        %2113 = vmatprep.subr.bf16.mxu0 0
        %2114 = vmatpush2.bf16.xpose.msra.mxu0 0
        %2115 = vmatprep.subr.bf16.mxu0 0
        %2116 = vmatpush2.bf16.xpose.msra.mxu0 0
        %2117 = vmatprep.subr.bf16.mxu0 0
        %2118 = vmatpush2.bf16.xpose.msra.mxu0 0
        %2119 = vmatprep.subr.bf16.mxu0 0
        %2120 = vmatpush2.bf16.xpose.msra.mxu0 0
        %2121 = vmatprep.mubr.bf16.mxu0 0
        %2122 = vmatmul.mubr.bf16.gmra.mxu0 %v2084
        %v2123 = vpop.f32.mrf.mxu0
        %v2124 = vadd.f32 %v2079, %v2123
        %v2125 = vpop.f32.mrf.mxu0
        %v2126 = vpop.f32.mrf.mxu0
        %v2127 = vadd.f32 %v2079, %v2126
        %v2128 = vpop.f32.mrf.mxu0
        %2129 = vdwg.mxu0
        %vm2130 = vcmask 64512
        %v2131 = vsel %vm2130, %v2124, -inf
        %2132 = vmax.xlane.f32.xlu0 %v2131
        %v2133 = vpop.xlane.xlu0 %2132
        %v2134 = vsel %vm2130, %v2127, -inf
        %2135 = vmax.xlane.f32.xlu0 %v2134
        %v2136 = vpop.xlane.xlu0 %2135
        %v2137 = vsub.f32 %v2124, %v2133
        %v2138 = vsub.f32 %v2127, %v2136
        %v2139 = vmul.f32 %v2137, 1.442695
        %v2140 = vpow.pop %v2139
        %v2141 = vmul.f32 %v2138, 1.442695
        %v2142 = vpow.pop %v2141
        %v2143 = vsel %vm2130, %v2140, 0.0
        %2144 = vadd.xlane.f32.xlu0 %v2143
        %v2145 = vpop.xlane.xlu0 %2144
        %v2146 = vsel %vm2130, %v2142, 0.0
        %2147 = vadd.xlane.f32.xlu0 %v2146
        %v2148 = vpop.xlane.xlu0 %2147
        %v2149 = vrcp.pop %v2145
        %v2150 = vrcp.pop %v2148
        %v2151 = vmul.f32 %v2140, %v2149
        %v2152 = vmul.f32 %v2142, %v2150
        %v2153 = vpack.c.bf16 %v2152, %v2151
        %v2154 = vpack.c.bf16 %v2071, %v2071
        %2156 = vrot.lane.b32.xlu0 %v2154, 64
        %v2157 = vpop.permute.xlu0 %2156
        %v2159 = vsel %vm2130, %v2153, 0
        %vm2161 = vcmask 1043456
        %v2163 = vsel %vm2161, %v2157, 0
        %2165 = vmatprep.subr.bf16.mxu0 0
        %2166 = vmatpush1.bf16.msra.mxu0 0
        %2167 = vmatprep.subr.bf16.mxu0 0
        %2168 = vmatpush1.bf16.msra.mxu0 0
        %2169 = vmatprep.subr.bf16.mxu0 0
        %2170 = vmatpush1.bf16.msra.mxu0 0
        %2171 = vmatprep.subr.bf16.mxu0 0
        %2172 = vmatpush1.bf16.msra.mxu0 0
        %2173 = vmatprep.subr.bf16.mxu0 0
        %2174 = vmatpush1.bf16.msra.mxu0 0
        %2175 = vmatprep.subr.bf16.mxu0 0
        %2176 = vmatpush1.bf16.msra.mxu0 0
        %2177 = vmatprep.subr.bf16.mxu0 0
        %2178 = vmatpush1.bf16.msra.mxu0 0
        %2179 = vmatprep.subr.bf16.mxu0 0
        %2180 = vmatpush1.bf16.msra.mxu0 %v2163
        %2181 = vmatprep.subr.bf16.mxu0 0
        %2182 = vmatpush2.bf16.msra.mxu0 0
        %2183 = vmatprep.subr.bf16.mxu0 0
        %2184 = vmatpush2.bf16.msra.mxu0 0
        %2185 = vmatprep.subr.bf16.mxu0 0
        %2186 = vmatpush2.bf16.msra.mxu0 0
        %2187 = vmatprep.subr.bf16.mxu0 0
        %2188 = vmatpush2.bf16.msra.mxu0 0
        %2189 = vmatprep.subr.bf16.mxu0 0
        %2190 = vmatpush2.bf16.msra.mxu0 0
        %2191 = vmatprep.subr.bf16.mxu0 0
        %2192 = vmatpush2.bf16.msra.mxu0 0
        %2193 = vmatprep.subr.bf16.mxu0 0
        %2194 = vmatpush2.bf16.msra.mxu0 0
        %2195 = vmatprep.subr.bf16.mxu0 0
        %2196 = vmatpush2.bf16.msra.mxu0 0
        %2197 = vmatprep.mubr.bf16.mxu0 0
        %2198 = vmatmul.mubr.bf16.gmra.mxu0 %v2159
        %v2199 = vpop.f32.mrf.mxu0
        %v2200 = vadd.f32 0.0, %v2199
        %v2201 = vpop.f32.mrf.mxu0
        %v2202 = vpop.f32.mrf.mxu0
        %v2203 = vadd.f32 0.0, %v2202
        %v2204 = vpop.f32.mrf.mxu0
        %2205 = vdwg.mxu0
        %v2206 = vmul.f32 %v2200, %v492
        %v2207 = vmul.f32 %v2203, %v497
        %v2208 = vadd.f32 %v2206, %v2207
        %v2209 = vpack.c.bf16 %v2208, %v2208
        %v2210 = vld [vmem:[%s10] sm:$0xf]
        %v2211 = vld [vmem:[%s10 + $0x4] sm:$0xf]
        %v2212 = vld [vmem:[%s10 + $0x8] sm:$0xf]
        %v2213 = vld [vmem:[%s10 + $0xc] sm:$0xf]
        %v2214 = vlaneseq
        %v2215 = vshrl.u32 %v2214, 7
        %v2216 = vsub.s32 3, %v2215
        %v2217 = vrot.slane %v1987, %v2216
        %v2222 = vunpack.c.l.b16 %v2210
        %v2223 = vunpack.c.l.b16 %v2211
        %v2224 = vunpack.c.l.b16 %v2212
        %v2225 = vunpack.c.l.b16 %v2213
        %v2226 = vpack.c.b16 %v2223, %v2222
        %v2227 = vpack.c.b16 %v2225, %v2224
        %v2231 = vsel %vm508, %v2209, 0
        %2233 = vmatprep.subr.bf16.mxu0 0
        %2234 = vmatpush1.bf16.msra.mxu0 0
        %2235 = vmatprep.subr.bf16.mxu0 0
        %2236 = vmatpush1.bf16.msra.mxu0 0
        %2237 = vmatprep.subr.bf16.mxu0 0
        %2238 = vmatpush1.bf16.msra.mxu0 0
        %2239 = vmatprep.subr.bf16.mxu0 0
        %2240 = vmatpush1.bf16.msra.mxu0 0
        %2241 = vmatprep.subr.bf16.mxu0 0
        %2242 = vmatpush1.bf16.msra.mxu0 0
        %2243 = vmatprep.subr.bf16.mxu0 0
        %2244 = vmatpush1.bf16.msra.mxu0 0
        %2245 = vmatprep.subr.bf16.mxu0 0
        %2246 = vmatpush1.bf16.msra.mxu0 %v2227
        %2247 = vmatprep.subr.bf16.mxu0 0
        %2248 = vmatpush1.bf16.msra.mxu0 %v2226
        %2249 = vmatprep.subr.bf16.mxu0 0
        %2250 = vmatpush2.bf16.msra.mxu0 0
        %2251 = vmatprep.subr.bf16.mxu0 0
        %2252 = vmatpush2.bf16.msra.mxu0 0
        %2253 = vmatprep.subr.bf16.mxu0 0
        %2254 = vmatpush2.bf16.msra.mxu0 0
        %2255 = vmatprep.subr.bf16.mxu0 0
        %2256 = vmatpush2.bf16.msra.mxu0 0
        %2257 = vmatprep.subr.bf16.mxu0 0
        %2258 = vmatpush2.bf16.msra.mxu0 0
        %2259 = vmatprep.subr.bf16.mxu0 0
        %2260 = vmatpush2.bf16.msra.mxu0 0
        %2261 = vmatprep.subr.bf16.mxu0 0
        %2262 = vmatpush2.bf16.msra.mxu0 0
        %2263 = vmatprep.subr.bf16.mxu0 0
        %2264 = vmatpush2.bf16.msra.mxu0 0
        %2265 = vmatprep.mubr.bf16.mxu0 0
        %2266 = vmatmul.mubr.bf16.gmra.mxu0 %v2231
        %v2267 = vpop.f32.mrf.mxu0
        %v2268 = vadd.f32 %v2217, %v2267
        %v2269 = vpop.f32.mrf.mxu0
        %v2270 = vpop.f32.mrf.mxu0
        %v2271 = vpop.f32.mrf.mxu0
        %2272 = vdwg.mxu0
        %v2273 = vadd.f32 %v1986, %v2268
        %v2274 = vsel %vm508, %v2273, 0.0
        %2275 = vadd.xlane.f32.xlu0 %v2274
        %v2276 = vpop.xlane.xlu0 %2275
        %v2277 = vmul.f32 %v2276, %v515
        %v2278 = vsub.f32 %v2273, %v2277
        %v2279 = vmul.f32 %v2278, %v2278
        %v2280 = vsel %vm508, %v2279, 0.0
        %2281 = vadd.xlane.f32.xlu0 %v2280
        %v2282 = vpop.xlane.xlu0 %2281
        %v2283 = vmul.f32 %v2282, %v515
        %v2284 = vadd.f32 %v2283, 1e-12
        %v2285 = vrsqrt.pop %v2284
        %v2286 = vmul.f32 %v2278, %v2285
        %v2287 = vlaneseq
        %v2288 = vshrl.u32 %v2287, 7
        %v2289 = vsub.s32 5, %v2288
        %v2290 = vrot.slane %v1987, %v2289
        %v2291 = vmul.f32 %v2286, %v2290
        %v2292 = vlaneseq
        %v2293 = vshrl.u32 %v2292, 7
        %v2294 = vsub.s32 6, %v2293
        %v2295 = vrot.slane %v1987, %v2294
        %v2296 = vadd.f32 %v2291, %v2295
        %v2297 = vpack.c.bf16 %v2296, %v2296
        %v2298 = vld [vmem:[%s11] sm:$0xf]
        %v2299 = vld [vmem:[%s11 + $0x4] sm:$0xf]
        %v2300 = vld [vmem:[%s11 + $0x8] sm:$0xf]
        %v2301 = vld [vmem:[%s11 + $0xc] sm:$0xf]
        %v2302 = vlaneseq
        %v2303 = vshrl.u32 %v2302, 7
        %v2304 = vsub.s32 1, %v2303
        %v2305 = vrot.slane %v1988, %v2304
        %v2310 = vunpack.c.l.b16 %v2298
        %v2311 = vunpack.c.l.b16 %v2299
        %v2312 = vunpack.c.l.b16 %v2300
        %v2313 = vunpack.c.l.b16 %v2301
        %v2314 = vpack.c.b16 %v2311, %v2310
        %v2315 = vpack.c.b16 %v2313, %v2312
        %v2319 = vsel %vm508, %v2297, 0
        %2321 = vmatprep.subr.bf16.mxu0 0
        %2322 = vmatpush1.bf16.msra.mxu0 0
        %2323 = vmatprep.subr.bf16.mxu0 0
        %2324 = vmatpush1.bf16.msra.mxu0 0
        %2325 = vmatprep.subr.bf16.mxu0 0
        %2326 = vmatpush1.bf16.msra.mxu0 0
        %2327 = vmatprep.subr.bf16.mxu0 0
        %2328 = vmatpush1.bf16.msra.mxu0 0
        %2329 = vmatprep.subr.bf16.mxu0 0
        %2330 = vmatpush1.bf16.msra.mxu0 0
        %2331 = vmatprep.subr.bf16.mxu0 0
        %2332 = vmatpush1.bf16.msra.mxu0 0
        %2333 = vmatprep.subr.bf16.mxu0 0
        %2334 = vmatpush1.bf16.msra.mxu0 %v2315
        %2335 = vmatprep.subr.bf16.mxu0 0
        %2336 = vmatpush1.bf16.msra.mxu0 %v2314
        %2337 = vmatprep.subr.bf16.mxu0 0
        %2338 = vmatpush2.bf16.msra.mxu0 0
        %2339 = vmatprep.subr.bf16.mxu0 0
        %2340 = vmatpush2.bf16.msra.mxu0 0
        %2341 = vmatprep.subr.bf16.mxu0 0
        %2342 = vmatpush2.bf16.msra.mxu0 0
        %2343 = vmatprep.subr.bf16.mxu0 0
        %2344 = vmatpush2.bf16.msra.mxu0 0
        %2345 = vmatprep.subr.bf16.mxu0 0
        %2346 = vmatpush2.bf16.msra.mxu0 0
        %2347 = vmatprep.subr.bf16.mxu0 0
        %2348 = vmatpush2.bf16.msra.mxu0 0
        %2349 = vmatprep.subr.bf16.mxu0 0
        %2350 = vmatpush2.bf16.msra.mxu0 0
        %2351 = vmatprep.subr.bf16.mxu0 0
        %2352 = vmatpush2.bf16.msra.mxu0 0
        %2353 = vmatprep.mubr.bf16.mxu0 0
        %2354 = vmatmul.mubr.bf16.gmra.mxu0 %v2319
        %v2355 = vpop.f32.mrf.mxu0
        %v2356 = vadd.f32 %v2305, %v2355
        %v2357 = vpop.f32.mrf.mxu0
        %v2358 = vpop.f32.mrf.mxu0
        %v2359 = vpop.f32.mrf.mxu0
        %2360 = vdwg.mxu0
        %v2361 = vmul.f32 %v2356, %v2356
        %v2362 = vmul.f32 %v2356, %v2361
        %v2363 = vmul.f32 %v2362, 0.044715
        %v2364 = vadd.f32 %v2356, %v2363
        %v2365 = vmul.f32 %v2364, 0.7978846
        %v2366 = vtanh.pop %v2365
        %v2367 = vadd.f32 %v2366, 1.0
        %v2368 = vmul.f32 %v2367, 0.5
        %v2369 = vmul.f32 %v2356, %v2368
        %v2370 = vpack.c.bf16 %v2369, %v2369
        %v2371 = vld [vmem:[%s12] sm:$0xf]
        %v2372 = vld [vmem:[%s12 + $0x4] sm:$0xf]
        %v2373 = vld [vmem:[%s12 + $0x8] sm:$0xf]
        %v2374 = vld [vmem:[%s12 + $0xc] sm:$0xf]
        %v2375 = vld [vmem:[%s12 + $0x10] sm:$0xf]
        %v2376 = vld [vmem:[%s12 + $0x14] sm:$0xf]
        %v2377 = vld [vmem:[%s12 + $0x18] sm:$0xf]
        %v2378 = vld [vmem:[%s12 + $0x1c] sm:$0xf]
        %v2379 = vlaneseq
        %v2380 = vshrl.u32 %v2379, 7
        %v2381 = vsub.s32 4, %v2380
        %v2382 = vrot.slane %v1987, %v2381
        %v2391 = vunpack.c.l.b16 %v2371
        %v2392 = vunpack.c.l.b16 %v2372
        %v2393 = vunpack.c.l.b16 %v2373
        %v2394 = vunpack.c.l.b16 %v2374
        %v2395 = vunpack.c.l.b16 %v2375
        %v2396 = vunpack.c.l.b16 %v2376
        %v2397 = vunpack.c.l.b16 %v2377
        %v2398 = vunpack.c.l.b16 %v2378
        %v2399 = vpack.c.b16 %v2392, %v2391
        %v2400 = vpack.c.b16 %v2394, %v2393
        %v2401 = vpack.c.b16 %v2396, %v2395
        %v2402 = vpack.c.b16 %v2398, %v2397
        %v2408 = vsel %vm1047, %v2370, 0
        %2410 = vmatprep.subr.bf16.mxu0 0
        %2411 = vmatpush1.bf16.msra.mxu0 0
        %2412 = vmatprep.subr.bf16.mxu0 0
        %2413 = vmatpush1.bf16.msra.mxu0 0
        %2414 = vmatprep.subr.bf16.mxu0 0
        %2415 = vmatpush1.bf16.msra.mxu0 0
        %2416 = vmatprep.subr.bf16.mxu0 0
        %2417 = vmatpush1.bf16.msra.mxu0 0
        %2418 = vmatprep.subr.bf16.mxu0 0
        %2419 = vmatpush1.bf16.msra.mxu0 %v2402
        %2420 = vmatprep.subr.bf16.mxu0 0
        %2421 = vmatpush1.bf16.msra.mxu0 %v2401
        %2422 = vmatprep.subr.bf16.mxu0 0
        %2423 = vmatpush1.bf16.msra.mxu0 %v2400
        %2424 = vmatprep.subr.bf16.mxu0 0
        %2425 = vmatpush1.bf16.msra.mxu0 %v2399
        %2426 = vmatprep.subr.bf16.mxu0 0
        %2427 = vmatpush2.bf16.msra.mxu0 0
        %2428 = vmatprep.subr.bf16.mxu0 0
        %2429 = vmatpush2.bf16.msra.mxu0 0
        %2430 = vmatprep.subr.bf16.mxu0 0
        %2431 = vmatpush2.bf16.msra.mxu0 0
        %2432 = vmatprep.subr.bf16.mxu0 0
        %2433 = vmatpush2.bf16.msra.mxu0 0
        %2434 = vmatprep.subr.bf16.mxu0 0
        %2435 = vmatpush2.bf16.msra.mxu0 0
        %2436 = vmatprep.subr.bf16.mxu0 0
        %2437 = vmatpush2.bf16.msra.mxu0 0
        %2438 = vmatprep.subr.bf16.mxu0 0
        %2439 = vmatpush2.bf16.msra.mxu0 0
        %2440 = vmatprep.subr.bf16.mxu0 0
        %2441 = vmatpush2.bf16.msra.mxu0 0
        %2442 = vmatprep.mubr.bf16.mxu0 0
        %2443 = vmatmul.mubr.bf16.gmra.mxu0 %v2408
        %v2444 = vpop.f32.mrf.mxu0
        %v2445 = vadd.f32 %v2382, %v2444
        %v2446 = vpop.f32.mrf.mxu0
        %v2447 = vpop.f32.mrf.mxu0
        %v2448 = vpop.f32.mrf.mxu0
        %2449 = vdwg.mxu0
        %v2450 = vadd.f32 %v2296, %v2445
        %v2451 = vsel %vm508, %v2450, 0.0
        %2452 = vadd.xlane.f32.xlu0 %v2451
        %v2453 = vpop.xlane.xlu0 %2452
        %v2454 = vmul.f32 %v2453, %v515
        %v2455 = vsub.f32 %v2450, %v2454
        %v2456 = vmul.f32 %v2455, %v2455
        %v2457 = vsel %vm508, %v2456, 0.0
        %2458 = vadd.xlane.f32.xlu0 %v2457
        %v2459 = vpop.xlane.xlu0 %2458
        %v2460 = vmul.f32 %v2459, %v515
        %v2461 = vadd.f32 %v2460, 1e-12
        %v2462 = vrsqrt.pop %v2461
        %v2463 = vmul.f32 %v2455, %v2462
        %v2464 = vlaneseq
        %v2465 = vshrl.u32 %v2464, 7
        %v2466 = vsub.s32 7, %v2465
        %v2467 = vrot.slane %v1987, %v2466
        %v2468 = vmul.f32 %v2463, %v2467
        %v2469 = vlaneseq
        %v2470 = vshrl.u32 %v2469, 7
        %v2471 = vsub.s32 0, %v2470
        %v2472 = vrot.slane %v1988, %v2471
        %v2473 = vadd.f32 %v2468, %v2472
        %s2474 = scalar_lea.vmem %s13, 16
        %v2475 = vld [vmem:[%s2474] sm:$0xff]
        %v2476 = vld [vmem:[%s2474 + $0x8] sm:$0x3]
        %v2477 = vpack.c.bf16 %v2473, %v2473
        %s2478 = scalar_lea.vmem %s9, 16
        %v2479 = vld [vmem:[%s2478] sm:$0xf]
        %v2480 = vld [vmem:[%s2478 + $0x4] sm:$0xf]
        %v2481 = vld [vmem:[%s2478 + $0x8] sm:$0xf]
        %v2482 = vld [vmem:[%s2478 + $0xc] sm:$0xf]
        %v2487 = vunpack.c.l.b16 %v2479
        %v2488 = vunpack.c.l.b16 %v2480
        %v2489 = vunpack.c.l.b16 %v2481
        %v2490 = vunpack.c.l.b16 %v2482
        %v2491 = vpack.c.b16 %v2488, %v2487
        %v2492 = vpack.c.b16 %v2490, %v2489
        %v2496 = vsel %vm508, %v2477, 0
        %2498 = vmatprep.subr.bf16.mxu0 0
        %2499 = vmatpush1.bf16.msra.mxu0 0
        %2500 = vmatprep.subr.bf16.mxu0 0
        %2501 = vmatpush1.bf16.msra.mxu0 0
        %2502 = vmatprep.subr.bf16.mxu0 0
        %2503 = vmatpush1.bf16.msra.mxu0 0
        %2504 = vmatprep.subr.bf16.mxu0 0
        %2505 = vmatpush1.bf16.msra.mxu0 0
        %2506 = vmatprep.subr.bf16.mxu0 0
        %2507 = vmatpush1.bf16.msra.mxu0 0
        %2508 = vmatprep.subr.bf16.mxu0 0
        %2509 = vmatpush1.bf16.msra.mxu0 0
        %2510 = vmatprep.subr.bf16.mxu0 0
        %2511 = vmatpush1.bf16.msra.mxu0 %v2492
        %2512 = vmatprep.subr.bf16.mxu0 0
        %2513 = vmatpush1.bf16.msra.mxu0 %v2491
        %2514 = vmatprep.subr.bf16.mxu0 0
        %2515 = vmatpush2.bf16.msra.mxu0 0
        %2516 = vmatprep.subr.bf16.mxu0 0
        %2517 = vmatpush2.bf16.msra.mxu0 0
        %2518 = vmatprep.subr.bf16.mxu0 0
        %2519 = vmatpush2.bf16.msra.mxu0 0
        %2520 = vmatprep.subr.bf16.mxu0 0
        %2521 = vmatpush2.bf16.msra.mxu0 0
        %2522 = vmatprep.subr.bf16.mxu0 0
        %2523 = vmatpush2.bf16.msra.mxu0 0
        %2524 = vmatprep.subr.bf16.mxu0 0
        %2525 = vmatpush2.bf16.msra.mxu0 0
        %2526 = vmatprep.subr.bf16.mxu0 0
        %2527 = vmatpush2.bf16.msra.mxu0 0
        %2528 = vmatprep.subr.bf16.mxu0 0
        %2529 = vmatpush2.bf16.msra.mxu0 0
        %2530 = vmatprep.mubr.bf16.mxu0 0
        %2531 = vmatmul.mubr.bf16.gmra.mxu0 %v2496
        %v2532 = vpop.f32.mrf.mxu0
        %v2533 = vadd.f32 0.0, %v2532
        %v2534 = vpop.f32.mrf.mxu0
        %v2535 = vpop.f32.mrf.mxu0
        %v2536 = vpop.f32.mrf.mxu0
        %2537 = vdwg.mxu0
        %v2538 = vlaneseq
        %v2539 = vshrl.u32 %v2538, 7
        %v2540 = vsub.s32 0, %v2539
        %v2541 = vrot.slane %v2475, %v2540
        %v2542 = vadd.f32 %v2533, %v2541
        %v2543 = vlaneseq
        %v2544 = vshrl.u32 %v2543, 7
        %v2545 = vsub.s32 1, %v2544
        %v2546 = vrot.slane %v2475, %v2545
        %2548 = vrot.lane.b32.xlu0 %v2546, 32
        %v2549 = vpop.permute.xlu0 %2548
        %v2551 = vadd.f32 %v2533, %v2549
        %v2552 = vlaneseq
        %v2553 = vshrl.u32 %v2552, 7
        %v2554 = vsub.s32 2, %v2553
        %v2555 = vrot.slane %v2475, %v2554
        %2557 = vrot.lane.b32.xlu0 %v2555, 64
        %v2558 = vpop.permute.xlu0 %2557
        %v2560 = vadd.f32 %v2533, %v2558
        %v2561 = vmul.f32 %v2542, %v498
        %v2562 = vmul.f32 %v2542, %v499
        %v2563 = vpack.c.bf16 %v2562, %v2561
        %v2564 = vpack.c.bf16 %v2551, %v2551
        %2566 = vrot.lane.b32.xlu0 %v2564, 96
        %v2567 = vpop.permute.xlu0 %2566
        %v2569 = vsel %vm508, %v2563, 0
        %v2572 = vsel %vm508, %v2567, 0
        %2574 = vmatprep.subr.bf16.mxu0 0
        %2575 = vmatpush1.bf16.xpose.msra.mxu0 0
        %2576 = vmatprep.subr.bf16.mxu0 0
        %2577 = vmatpush1.bf16.xpose.msra.mxu0 0
        %2578 = vmatprep.subr.bf16.mxu0 0
        %2579 = vmatpush1.bf16.xpose.msra.mxu0 0
        %2580 = vmatprep.subr.bf16.mxu0 0
        %2581 = vmatpush1.bf16.xpose.msra.mxu0 0
        %2582 = vmatprep.subr.bf16.mxu0 0
        %2583 = vmatpush1.bf16.xpose.msra.mxu0 0
        %2584 = vmatprep.subr.bf16.mxu0 0
        %2585 = vmatpush1.bf16.xpose.msra.mxu0 0
        %2586 = vmatprep.subr.bf16.mxu0 0
        %2587 = vmatpush1.bf16.xpose.msra.mxu0 0
        %2588 = vmatprep.subr.bf16.mxu0 0
        %2589 = vmatpush1.bf16.xpose.msra.mxu0 %v2572
        %2590 = vmatprep.subr.bf16.mxu0 0
        %2591 = vmatpush2.bf16.xpose.msra.mxu0 0
        %2592 = vmatprep.subr.bf16.mxu0 0
        %2593 = vmatpush2.bf16.xpose.msra.mxu0 0
        %2594 = vmatprep.subr.bf16.mxu0 0
        %2595 = vmatpush2.bf16.xpose.msra.mxu0 0
        %2596 = vmatprep.subr.bf16.mxu0 0
        %2597 = vmatpush2.bf16.xpose.msra.mxu0 0
        %2598 = vmatprep.subr.bf16.mxu0 0
        %2599 = vmatpush2.bf16.xpose.msra.mxu0 0
        %2600 = vmatprep.subr.bf16.mxu0 0
        %2601 = vmatpush2.bf16.xpose.msra.mxu0 0
        %2602 = vmatprep.subr.bf16.mxu0 0
        %2603 = vmatpush2.bf16.xpose.msra.mxu0 0
        %2604 = vmatprep.subr.bf16.mxu0 0
        %2605 = vmatpush2.bf16.xpose.msra.mxu0 0
        %2606 = vmatprep.mubr.bf16.mxu0 0
        %2607 = vmatmul.mubr.bf16.gmra.mxu0 %v2569
        %v2608 = vpop.f32.mrf.mxu0
        %v2609 = vadd.f32 %v2079, %v2608
        %v2610 = vpop.f32.mrf.mxu0
        %v2611 = vpop.f32.mrf.mxu0
        %v2612 = vadd.f32 %v2079, %v2611
        %v2613 = vpop.f32.mrf.mxu0
        %2614 = vdwg.mxu0
        %v2615 = vsel %vm2130, %v2609, -inf
        %2616 = vmax.xlane.f32.xlu0 %v2615
        %v2617 = vpop.xlane.xlu0 %2616
        %v2618 = vsel %vm2130, %v2612, -inf
        %2619 = vmax.xlane.f32.xlu0 %v2618
        %v2620 = vpop.xlane.xlu0 %2619
        %v2621 = vsub.f32 %v2609, %v2617
        %v2622 = vsub.f32 %v2612, %v2620
        %v2623 = vmul.f32 %v2621, 1.442695
        %v2624 = vpow.pop %v2623
        %v2625 = vmul.f32 %v2622, 1.442695
        %v2626 = vpow.pop %v2625
        %v2627 = vsel %vm2130, %v2624, 0.0
        %2628 = vadd.xlane.f32.xlu0 %v2627
        %v2629 = vpop.xlane.xlu0 %2628
        %v2630 = vsel %vm2130, %v2626, 0.0
        %2631 = vadd.xlane.f32.xlu0 %v2630
        %v2632 = vpop.xlane.xlu0 %2631
        %v2633 = vrcp.pop %v2629
        %v2634 = vrcp.pop %v2632
        %v2635 = vmul.f32 %v2624, %v2633
        %v2636 = vmul.f32 %v2626, %v2634
        %v2637 = vpack.c.bf16 %v2636, %v2635
        %v2638 = vpack.c.bf16 %v2560, %v2560
        %2640 = vrot.lane.b32.xlu0 %v2638, 64
        %v2641 = vpop.permute.xlu0 %2640
        %v2643 = vsel %vm2130, %v2637, 0
        %v2646 = vsel %vm2161, %v2641, 0
        %2648 = vmatprep.subr.bf16.mxu0 0
        %2649 = vmatpush1.bf16.msra.mxu0 0
        %2650 = vmatprep.subr.bf16.mxu0 0
        %2651 = vmatpush1.bf16.msra.mxu0 0
        %2652 = vmatprep.subr.bf16.mxu0 0
        %2653 = vmatpush1.bf16.msra.mxu0 0
        %2654 = vmatprep.subr.bf16.mxu0 0
        %2655 = vmatpush1.bf16.msra.mxu0 0
        %2656 = vmatprep.subr.bf16.mxu0 0
        %2657 = vmatpush1.bf16.msra.mxu0 0
        %2658 = vmatprep.subr.bf16.mxu0 0
        %2659 = vmatpush1.bf16.msra.mxu0 0
        %2660 = vmatprep.subr.bf16.mxu0 0
        %2661 = vmatpush1.bf16.msra.mxu0 0
        %2662 = vmatprep.subr.bf16.mxu0 0
        %2663 = vmatpush1.bf16.msra.mxu0 %v2646
        %2664 = vmatprep.subr.bf16.mxu0 0
        %2665 = vmatpush2.bf16.msra.mxu0 0
        %2666 = vmatprep.subr.bf16.mxu0 0
        %2667 = vmatpush2.bf16.msra.mxu0 0
        %2668 = vmatprep.subr.bf16.mxu0 0
        %2669 = vmatpush2.bf16.msra.mxu0 0
        %2670 = vmatprep.subr.bf16.mxu0 0
        %2671 = vmatpush2.bf16.msra.mxu0 0
        %2672 = vmatprep.subr.bf16.mxu0 0
        %2673 = vmatpush2.bf16.msra.mxu0 0
        %2674 = vmatprep.subr.bf16.mxu0 0
        %2675 = vmatpush2.bf16.msra.mxu0 0
        %2676 = vmatprep.subr.bf16.mxu0 0
        %2677 = vmatpush2.bf16.msra.mxu0 0
        %2678 = vmatprep.subr.bf16.mxu0 0
        %2679 = vmatpush2.bf16.msra.mxu0 0
        %2680 = vmatprep.mubr.bf16.mxu0 0
        %2681 = vmatmul.mubr.bf16.gmra.mxu0 %v2643
        %v2682 = vpop.f32.mrf.mxu0
        %v2683 = vadd.f32 0.0, %v2682
        %v2684 = vpop.f32.mrf.mxu0
        %v2685 = vpop.f32.mrf.mxu0
        %v2686 = vadd.f32 0.0, %v2685
        %v2687 = vpop.f32.mrf.mxu0
        %2688 = vdwg.mxu0
        %v2689 = vmul.f32 %v2683, %v492
        %v2690 = vmul.f32 %v2686, %v497
        %v2691 = vadd.f32 %v2689, %v2690
        %v2692 = vpack.c.bf16 %v2691, %v2691
        %s2693 = scalar_lea.vmem %s10, 16
        %v2694 = vld [vmem:[%s2693] sm:$0xf]
        %v2695 = vld [vmem:[%s2693 + $0x4] sm:$0xf]
        %v2696 = vld [vmem:[%s2693 + $0x8] sm:$0xf]
        %v2697 = vld [vmem:[%s2693 + $0xc] sm:$0xf]
        %v2698 = vlaneseq
        %v2699 = vshrl.u32 %v2698, 7
        %v2700 = vsub.s32 3, %v2699
        %v2701 = vrot.slane %v2475, %v2700
        %v2706 = vunpack.c.l.b16 %v2694
        %v2707 = vunpack.c.l.b16 %v2695
        %v2708 = vunpack.c.l.b16 %v2696
        %v2709 = vunpack.c.l.b16 %v2697
        %v2710 = vpack.c.b16 %v2707, %v2706
        %v2711 = vpack.c.b16 %v2709, %v2708
        %v2715 = vsel %vm508, %v2692, 0
        %2717 = vmatprep.subr.bf16.mxu0 0
        %2718 = vmatpush1.bf16.msra.mxu0 0
        %2719 = vmatprep.subr.bf16.mxu0 0
        %2720 = vmatpush1.bf16.msra.mxu0 0
        %2721 = vmatprep.subr.bf16.mxu0 0
        %2722 = vmatpush1.bf16.msra.mxu0 0
        %2723 = vmatprep.subr.bf16.mxu0 0
        %2724 = vmatpush1.bf16.msra.mxu0 0
        %2725 = vmatprep.subr.bf16.mxu0 0
        %2726 = vmatpush1.bf16.msra.mxu0 0
        %2727 = vmatprep.subr.bf16.mxu0 0
        %2728 = vmatpush1.bf16.msra.mxu0 0
        %2729 = vmatprep.subr.bf16.mxu0 0
        %2730 = vmatpush1.bf16.msra.mxu0 %v2711
        %2731 = vmatprep.subr.bf16.mxu0 0
        %2732 = vmatpush1.bf16.msra.mxu0 %v2710
        %2733 = vmatprep.subr.bf16.mxu0 0
        %2734 = vmatpush2.bf16.msra.mxu0 0
        %2735 = vmatprep.subr.bf16.mxu0 0
        %2736 = vmatpush2.bf16.msra.mxu0 0
        %2737 = vmatprep.subr.bf16.mxu0 0
        %2738 = vmatpush2.bf16.msra.mxu0 0
        %2739 = vmatprep.subr.bf16.mxu0 0
        %2740 = vmatpush2.bf16.msra.mxu0 0
        %2741 = vmatprep.subr.bf16.mxu0 0
        %2742 = vmatpush2.bf16.msra.mxu0 0
        %2743 = vmatprep.subr.bf16.mxu0 0
        %2744 = vmatpush2.bf16.msra.mxu0 0
        %2745 = vmatprep.subr.bf16.mxu0 0
        %2746 = vmatpush2.bf16.msra.mxu0 0
        %2747 = vmatprep.subr.bf16.mxu0 0
        %2748 = vmatpush2.bf16.msra.mxu0 0
        %2749 = vmatprep.mubr.bf16.mxu0 0
        %2750 = vmatmul.mubr.bf16.gmra.mxu0 %v2715
        %v2751 = vpop.f32.mrf.mxu0
        %v2752 = vadd.f32 %v2701, %v2751
        %v2753 = vpop.f32.mrf.mxu0
        %v2754 = vpop.f32.mrf.mxu0
        %v2755 = vpop.f32.mrf.mxu0
        %2756 = vdwg.mxu0
        %v2757 = vadd.f32 %v2473, %v2752
        %v2758 = vsel %vm508, %v2757, 0.0
        %2759 = vadd.xlane.f32.xlu0 %v2758
        %v2760 = vpop.xlane.xlu0 %2759
        %v2761 = vmul.f32 %v2760, %v515
        %v2762 = vsub.f32 %v2757, %v2761
        %v2763 = vmul.f32 %v2762, %v2762
        %v2764 = vsel %vm508, %v2763, 0.0
        %2765 = vadd.xlane.f32.xlu0 %v2764
        %v2766 = vpop.xlane.xlu0 %2765
        %v2767 = vmul.f32 %v2766, %v515
        %v2768 = vadd.f32 %v2767, 1e-12
        %v2769 = vrsqrt.pop %v2768
        %v2770 = vmul.f32 %v2762, %v2769
        %v2771 = vlaneseq
        %v2772 = vshrl.u32 %v2771, 7
        %v2773 = vsub.s32 5, %v2772
        %v2774 = vrot.slane %v2475, %v2773
        %v2775 = vmul.f32 %v2770, %v2774
        %v2776 = vlaneseq
        %v2777 = vshrl.u32 %v2776, 7
        %v2778 = vsub.s32 6, %v2777
        %v2779 = vrot.slane %v2475, %v2778
        %v2780 = vadd.f32 %v2775, %v2779
        %v2781 = vpack.c.bf16 %v2780, %v2780
        %s2782 = scalar_lea.vmem %s11, 16
        %v2783 = vld [vmem:[%s2782] sm:$0xf]
        %v2784 = vld [vmem:[%s2782 + $0x4] sm:$0xf]
        %v2785 = vld [vmem:[%s2782 + $0x8] sm:$0xf]
        %v2786 = vld [vmem:[%s2782 + $0xc] sm:$0xf]
        %v2787 = vlaneseq
        %v2788 = vshrl.u32 %v2787, 7
        %v2789 = vsub.s32 1, %v2788
        %v2790 = vrot.slane %v2476, %v2789
        %v2795 = vunpack.c.l.b16 %v2783
        %v2796 = vunpack.c.l.b16 %v2784
        %v2797 = vunpack.c.l.b16 %v2785
        %v2798 = vunpack.c.l.b16 %v2786
        %v2799 = vpack.c.b16 %v2796, %v2795
        %v2800 = vpack.c.b16 %v2798, %v2797
        %v2804 = vsel %vm508, %v2781, 0
        %2806 = vmatprep.subr.bf16.mxu0 0
        %2807 = vmatpush1.bf16.msra.mxu0 0
        %2808 = vmatprep.subr.bf16.mxu0 0
        %2809 = vmatpush1.bf16.msra.mxu0 0
        %2810 = vmatprep.subr.bf16.mxu0 0
        %2811 = vmatpush1.bf16.msra.mxu0 0
        %2812 = vmatprep.subr.bf16.mxu0 0
        %2813 = vmatpush1.bf16.msra.mxu0 0
        %2814 = vmatprep.subr.bf16.mxu0 0
        %2815 = vmatpush1.bf16.msra.mxu0 0
        %2816 = vmatprep.subr.bf16.mxu0 0
        %2817 = vmatpush1.bf16.msra.mxu0 0
        %2818 = vmatprep.subr.bf16.mxu0 0
        %2819 = vmatpush1.bf16.msra.mxu0 %v2800
        %2820 = vmatprep.subr.bf16.mxu0 0
        %2821 = vmatpush1.bf16.msra.mxu0 %v2799
        %2822 = vmatprep.subr.bf16.mxu0 0
        %2823 = vmatpush2.bf16.msra.mxu0 0
        %2824 = vmatprep.subr.bf16.mxu0 0
        %2825 = vmatpush2.bf16.msra.mxu0 0
        %2826 = vmatprep.subr.bf16.mxu0 0
        %2827 = vmatpush2.bf16.msra.mxu0 0
        %2828 = vmatprep.subr.bf16.mxu0 0
        %2829 = vmatpush2.bf16.msra.mxu0 0
        %2830 = vmatprep.subr.bf16.mxu0 0
        %2831 = vmatpush2.bf16.msra.mxu0 0
        %2832 = vmatprep.subr.bf16.mxu0 0
        %2833 = vmatpush2.bf16.msra.mxu0 0
        %2834 = vmatprep.subr.bf16.mxu0 0
        %2835 = vmatpush2.bf16.msra.mxu0 0
        %2836 = vmatprep.subr.bf16.mxu0 0
        %2837 = vmatpush2.bf16.msra.mxu0 0
        %2838 = vmatprep.mubr.bf16.mxu0 0
        %2839 = vmatmul.mubr.bf16.gmra.mxu0 %v2804
        %v2840 = vpop.f32.mrf.mxu0
        %v2841 = vadd.f32 %v2790, %v2840
        %v2842 = vpop.f32.mrf.mxu0
        %v2843 = vpop.f32.mrf.mxu0
        %v2844 = vpop.f32.mrf.mxu0
        %2845 = vdwg.mxu0
        %v2846 = vmul.f32 %v2841, %v2841
        %v2847 = vmul.f32 %v2841, %v2846
        %v2848 = vmul.f32 %v2847, 0.044715
        %v2849 = vadd.f32 %v2841, %v2848
        %v2850 = vmul.f32 %v2849, 0.7978846
        %v2851 = vtanh.pop %v2850
        %v2852 = vadd.f32 %v2851, 1.0
        %v2853 = vmul.f32 %v2852, 0.5
        %v2854 = vmul.f32 %v2841, %v2853
        %v2855 = vpack.c.bf16 %v2854, %v2854
        %s2856 = scalar_lea.vmem %s12, 32
        %v2857 = vld [vmem:[%s2856] sm:$0xf]
        %v2858 = vld [vmem:[%s2856 + $0x4] sm:$0xf]
        %v2859 = vld [vmem:[%s2856 + $0x8] sm:$0xf]
        %v2860 = vld [vmem:[%s2856 + $0xc] sm:$0xf]
        %v2861 = vld [vmem:[%s2856 + $0x10] sm:$0xf]
        %v2862 = vld [vmem:[%s2856 + $0x14] sm:$0xf]
        %v2863 = vld [vmem:[%s2856 + $0x18] sm:$0xf]
        %v2864 = vld [vmem:[%s2856 + $0x1c] sm:$0xf]
        %v2865 = vlaneseq
        %v2866 = vshrl.u32 %v2865, 7
        %v2867 = vsub.s32 4, %v2866
        %v2868 = vrot.slane %v2475, %v2867
        %v2877 = vunpack.c.l.b16 %v2857
        %v2878 = vunpack.c.l.b16 %v2858
        %v2879 = vunpack.c.l.b16 %v2859
        %v2880 = vunpack.c.l.b16 %v2860
        %v2881 = vunpack.c.l.b16 %v2861
        %v2882 = vunpack.c.l.b16 %v2862
        %v2883 = vunpack.c.l.b16 %v2863
        %v2884 = vunpack.c.l.b16 %v2864
        %v2885 = vpack.c.b16 %v2878, %v2877
        %v2886 = vpack.c.b16 %v2880, %v2879
        %v2887 = vpack.c.b16 %v2882, %v2881
        %v2888 = vpack.c.b16 %v2884, %v2883
        %v2894 = vsel %vm1047, %v2855, 0
        %2896 = vmatprep.subr.bf16.mxu0 0
        %2897 = vmatpush1.bf16.msra.mxu0 0
        %2898 = vmatprep.subr.bf16.mxu0 0
        %2899 = vmatpush1.bf16.msra.mxu0 0
        %2900 = vmatprep.subr.bf16.mxu0 0
        %2901 = vmatpush1.bf16.msra.mxu0 0
        %2902 = vmatprep.subr.bf16.mxu0 0
        %2903 = vmatpush1.bf16.msra.mxu0 0
        %2904 = vmatprep.subr.bf16.mxu0 0
        %2905 = vmatpush1.bf16.msra.mxu0 %v2888
        %2906 = vmatprep.subr.bf16.mxu0 0
        %2907 = vmatpush1.bf16.msra.mxu0 %v2887
        %2908 = vmatprep.subr.bf16.mxu0 0
        %2909 = vmatpush1.bf16.msra.mxu0 %v2886
        %2910 = vmatprep.subr.bf16.mxu0 0
        %2911 = vmatpush1.bf16.msra.mxu0 %v2885
        %2912 = vmatprep.subr.bf16.mxu0 0
        %2913 = vmatpush2.bf16.msra.mxu0 0
        %2914 = vmatprep.subr.bf16.mxu0 0
        %2915 = vmatpush2.bf16.msra.mxu0 0
        %2916 = vmatprep.subr.bf16.mxu0 0
        %2917 = vmatpush2.bf16.msra.mxu0 0
        %2918 = vmatprep.subr.bf16.mxu0 0
        %2919 = vmatpush2.bf16.msra.mxu0 0
        %2920 = vmatprep.subr.bf16.mxu0 0
        %2921 = vmatpush2.bf16.msra.mxu0 0
        %2922 = vmatprep.subr.bf16.mxu0 0
        %2923 = vmatpush2.bf16.msra.mxu0 0
        %2924 = vmatprep.subr.bf16.mxu0 0
        %2925 = vmatpush2.bf16.msra.mxu0 0
        %2926 = vmatprep.subr.bf16.mxu0 0
        %2927 = vmatpush2.bf16.msra.mxu0 0
        %2928 = vmatprep.mubr.bf16.mxu0 0
        %2929 = vmatmul.mubr.bf16.gmra.mxu0 %v2894
        %v2930 = vpop.f32.mrf.mxu0
        %v2931 = vadd.f32 %v2868, %v2930
        %v2932 = vpop.f32.mrf.mxu0
        %v2933 = vpop.f32.mrf.mxu0
        %v2934 = vpop.f32.mrf.mxu0
        %2935 = vdwg.mxu0
        %v2936 = vadd.f32 %v2780, %v2931
        %v2937 = vsel %vm508, %v2936, 0.0
        %2938 = vadd.xlane.f32.xlu0 %v2937
        %v2939 = vpop.xlane.xlu0 %2938
        %v2940 = vmul.f32 %v2939, %v515
        %v2941 = vsub.f32 %v2936, %v2940
        %v2942 = vmul.f32 %v2941, %v2941
        %v2943 = vsel %vm508, %v2942, 0.0
        %2944 = vadd.xlane.f32.xlu0 %v2943
        %v2945 = vpop.xlane.xlu0 %2944
        %v2946 = vmul.f32 %v2945, %v515
        %v2947 = vadd.f32 %v2946, 1e-12
        %v2948 = vrsqrt.pop %v2947
        %v2949 = vmul.f32 %v2941, %v2948
        %v2950 = vlaneseq
        %v2951 = vshrl.u32 %v2950, 7
        %v2952 = vsub.s32 7, %v2951
        %v2953 = vrot.slane %v2475, %v2952
        %v2954 = vmul.f32 %v2949, %v2953
        %v2955 = vlaneseq
        %v2956 = vshrl.u32 %v2955, 7
        %v2957 = vsub.s32 0, %v2956
        %v2958 = vrot.slane %v2476, %v2957
        %v2959 = vadd.f32 %v2954, %v2958
        %vm2960 = vcmask 253952
        %2961 = vst.msk [vmem:[%s474] sm:$0x1] %vm2960, %v2959
        %s2962 = sand.u32 %s340, 1
        %s2963 = scalar_lea.sflag [#allocation3], %s2962
        %s2964 = sand.u32 %s340, 1
        %s2965 = scalar_lea.vmem [#allocation2], %s2964
        // Predicated region
        $region77: #{hierarchical_forward.1} parent=75 // pred_check
          %p2966 = pneg %p350
        $region78: #{hierarchical_forward.1} parent=75 // pred_check_branch
          %2968 = sbr.rel (%p2966) target = $region80
        $region79: #{hierarchical_forward.1} parent=75 // pred_region
          %s2970 = ssub.s32 16, 16
          %2971 = vsyncadd %s2963, %s2970
          %s2972 = smul.addr %s28, 16
          %s2973 = scalar_lea.hbm %s14, %s2972
          %s2975 = sshll.u32 %s2965, 4
          %s2976 = int_to_ptr.vmem [resolvable:$true] %s2975
          %2978 = dma.vmem_to_hbm [thread:$0]  %s2976, 16, %s2973, %s2963
        $region80: #{hierarchical_forward.1} parent=75 // pred_fallthru
          _
      $region76: #{hierarchical_forward.1} parent=5 // pred_fallthru
        _
      %p2979 = scmp.le.s32.totalorder 2, %s23
      // Predicated region
      $region81: #{hierarchical_forward.1} parent=5 // pred_check
        %p2980 = pneg %p2979
      $region82: #{hierarchical_forward.1} parent=5 // pred_check_branch
        %2982 = sbr.rel (%p2980) target = $region84
      $region83: #{hierarchical_forward.1} parent=5 // pred_region
        %s2983 = ssub.s32 %s23, 2
        // Predicated region
        $region85: #{hierarchical_forward.1} parent=83 // pred_check
          %p2984 = pneg %p356
        $region86: #{hierarchical_forward.1} parent=83 // pred_check_branch
          %2986 = sbr.rel (%p2984) target = $region88
        $region87: #{hierarchical_forward.1} parent=83 // pred_region
          %s2987 = sand.u32 %s341, 1
          %s2988 = scalar_lea.sflag [#allocation3], %s2987
          %s2989 = sand.u32 %s341, 1
          %s2990 = scalar_lea.vmem [#allocation2], %s2989
          %2991 = dma.done %s2988, 16
        $region88: #{hierarchical_forward.1} parent=83 // pred_fallthru
          _
      $region84: #{hierarchical_forward.1} parent=5 // pred_fallthru
        _
    $region6: #{hierarchical_forward.1} parent=1 // loop_footer
      %s27 = sadd.s32 1, %s23
    $region7: #{hierarchical_forward.1} parent=1 // loop_footer_branch
      %22 = sbr.rel target = $region3
    $region8: #{hierarchical_forward.1} parent=1 // loop_exit
      _
    %2992 = vsyncpa [#allocation3], 1
    %s2993 = scalar_lea.sflag [#allocation3], 1
    %2994 = vsyncpa %s2993, 1

</llo_original>
